<compile_context>
chip_gen: v7x
topology: tpu7x:2x2x1
jax: 0.10.0
libtpu: 0.0.40
codegen_flags: <defaults>
</compile_context>

<pallas_src>
import math
from functools import partial

import jax
import jax.numpy as jnp
from jax import lax
from jax.experimental import pallas as pl
from jax.experimental.pallas import tpu as pltpu


# ----------------------------- kernel helpers ------------------------------

def _layernorm(x, gamma, beta, eps=1e-5):
    # PyTorch nn.LayerNorm: biased variance over last dim, then affine (f32).
    mu = jnp.mean(x, axis=-1, keepdims=True)
    var = jnp.mean((x - mu) ** 2, axis=-1, keepdims=True)
    return (x - mu) * jax.lax.rsqrt(var + eps) * gamma + beta


def _gelu_exact(x):
    # PyTorch nn.GELU() default = exact (erf) form. Runs on the EUP.
    return 0.5 * x * (1.0 + jax.lax.erf(x * jnp.float32(1.0 / math.sqrt(2.0))))


# --------------------------------- kernel ----------------------------------

def cross_attn_block_kernel(
    x1_ref, x2_ref,                       # (1, TQ, D), (1, N, D) per grid step
    vec_ref,                              # (8, 4D) packed 1-D params (f32)
    wq_ref, wk_ref, wv_ref, wp_ref,       # (D, D) bf16
    w1_ref, w2_ref,                       # (D, 4D), (4D, D) bf16
    o_ref,                                # (1, TQ, D)
    *, num_heads,
):
    x1 = x1_ref[0].astype(jnp.float32)    # (TQ, D) query-side tile
    x2 = x2_ref[0].astype(jnp.float32)    # (N,  D) full key/value side
    TQ, D = x1.shape
    N = x2.shape[0]
    hd = D // num_heads
    scale = jnp.float32(hd ** -0.5)

    # Unpack the 1-D parameter slab (rows: n1_g, n1_b, n2_g, n2_b, bp, b2, b1).
    vec = vec_ref[...]
    n1g, n1b = vec[0, :D], vec[1, :D]
    n2g, n2b = vec[2, :D], vec[3, :D]
    bp, b2 = vec[4, :D], vec[5, :D]
    b1 = vec[6, :]                        # (4D,)

    # --- Cross attention:  q from norm1(x1);  k, v from norm1(x2) ----------
    n1x1 = _layernorm(x1, n1g, n1b).astype(jnp.bfloat16)
    n1x2 = _layernorm(x2, n1g, n1b).astype(jnp.bfloat16)

    q = jnp.dot(n1x1, wq_ref[...], preferred_element_type=jnp.float32)  # (TQ, D)
    k = jnp.dot(n1x2, wk_ref[...], preferred_element_type=jnp.float32)  # (N,  D)
    v = jnp.dot(n1x2, wv_ref[...], preferred_element_type=jnp.float32)  # (N,  D)

    # Head-batched layout (H leading -> batched matmuls, no einsum transposes).
    qh = jnp.transpose(q.reshape(TQ, num_heads, hd), (1, 0, 2)).astype(jnp.bfloat16)
    kh = jnp.transpose(k.reshape(N, num_heads, hd), (1, 0, 2)).astype(jnp.bfloat16)
    vh = jnp.transpose(v.reshape(N, num_heads, hd), (1, 0, 2)).astype(jnp.bfloat16)

    # scores: (H, TQ, N); softmax axis (N) sits on the lane axis.
    # NOTE: hd=8 contraction is intrinsic to the module (dim=64, heads=8);
    # heads cannot be merged into one >=128 contraction without changing math.
    s = lax.dot_general(qh, kh, (((2,), (2,)), ((0,), (0,))),
                        preferred_element_type=jnp.float32) * scale
    s = s - jnp.max(s, axis=-1, keepdims=True)
    p = jnp.exp(s)
    p = p * pl.reciprocal(jnp.sum(p, axis=-1, keepdims=True), approx=True)

    ctx = lax.dot_general(p.astype(jnp.bfloat16), vh,
                          (((2,), (1,)), ((0,), (0,))),
                          preferred_element_type=jnp.float32)            # (H, TQ, hd)
    ctx = jnp.transpose(ctx, (1, 0, 2)).reshape(TQ, D)

    attn_out = jnp.dot(ctx.astype(jnp.bfloat16), wp_ref[...],
                       preferred_element_type=jnp.float32) + bp

    # --- residual 1 ---------------------------------------------------------
    x = attn_out + x1

    # --- MLP on norm2(x), residual 2 ----------------------------------------
    n2x = _layernorm(x, n2g, n2b).astype(jnp.bfloat16)
    h = jnp.dot(n2x, w1_ref[...], preferred_element_type=jnp.float32) + b1
    h = _gelu_exact(h).astype(jnp.bfloat16)
    y = jnp.dot(h, w2_ref[...], preferred_element_type=jnp.float32) + b2

    o_ref[0] = (x + y).astype(o_ref.dtype)


# -------------------------------- wrapper ----------------------------------

def cross_attention_block(x1, x2, params, *, num_heads):
    B, N, D = x1.shape
    assert x1.shape == x2.shape

    # Query tile size: full N for small sequences, otherwise 128-row tiles.
    TQ = N if N <= 128 else 128
    assert N % TQ == 0, "N must be divisible by the query tile size"
    NQ = N // TQ
    P = 4 * D

    # bf16 weight matrices for the MXU; LN params / biases stay f32, packed
    # into a single slab so they form one pipelined input instead of seven.
    wq = params['wq'].astype(jnp.bfloat16)
    wk = params['wk'].astype(jnp.bfloat16)
    wv = params['wv'].astype(jnp.bfloat16)
    wp = params['wp'].astype(jnp.bfloat16)
    w1 = params['w1'].astype(jnp.bfloat16)
    w2 = params['w2'].astype(jnp.bfloat16)

    vec = jnp.zeros((8, P), jnp.float32)
    vec = vec.at[0, :D].set(params['n1_g'])
    vec = vec.at[1, :D].set(params['n1_b'])
    vec = vec.at[2, :D].set(params['n2_g'])
    vec = vec.at[3, :D].set(params['n2_b'])
    vec = vec.at[4, :D].set(params['bp'])
    vec = vec.at[5, :D].set(params['b2'])
    vec = vec.at[6, :].set(params['b1'])

    # Constant-index-map inputs: single-buffer them (no double-buffer DMA).
    def const_spec(arr):
        nd = arr.ndim
        return pl.BlockSpec(arr.shape, lambda b, qi, _nd=nd: (0,) * _nd,
                            pipeline_mode=pl.Buffered(1))

    x1_spec = pl.BlockSpec((1, TQ, D), lambda b, qi: (b, qi, 0))
    x2_spec = pl.BlockSpec((1, N, D), lambda b, qi: (b, 0, 0))
    out_spec = pl.BlockSpec((1, TQ, D), lambda b, qi: (b, qi, 0))

    weights = (vec, wq, wk, wv, wp, w1, w2)

    return pl.pallas_call(
        partial(cross_attn_block_kernel, num_heads=num_heads),
        out_shape=jax.ShapeDtypeStruct((B, N, D), x1.dtype),
        grid_spec=pltpu.PrefetchScalarGridSpec(
            num_scalar_prefetch=0,
            grid=(B, NQ),
            in_specs=[x1_spec, x2_spec] + [const_spec(w) for w in weights],
            out_specs=out_spec,
        ),
        compiler_params=pltpu.CompilerParams(
            dimension_semantics=("parallel", "parallel"),
            vmem_limit_bytes=48 * 1024 * 1024,
        ),
    )(x1, x2, *weights)


# ------------------------- pure-JAX reference (f32) -------------------------

def reference(x1, x2, p, *, num_heads):
    B, N, D = x1.shape
    hd = D // num_heads
    ln = lambda x, g, b: _layernorm(x, g, b)

    n1x1 = ln(x1, p['n1_g'], p['n1_b'])
    n1x2 = ln(x2, p['n1_g'], p['n1_b'])
    q = (n1x1 @ p['wq']).reshape(B, N, num_heads, hd).transpose(0, 2, 1, 3)
    k = (n1x2 @ p['wk']).reshape(B, N, num_heads, hd).transpose(0, 2, 1, 3)
    v = (n1x2 @ p['wv']).reshape(B, N, num_heads, hd).transpose(0, 2, 1, 3)
    attn = jax.nn.softmax((q @ k.transpose(0, 1, 3, 2)) * (hd ** -0.5), axis=-1)
    ctx = (attn @ v).transpose(0, 2, 1, 3).reshape(B, N, D)
    x = ctx @ p['wp'] + p['bp'] + x1
    n2x = ln(x, p['n2_g'], p['n2_b'])
    h = _gelu_exact(n2x @ p['w1'] + p['b1'])
    return x + (h @ p['w2'] + p['b2'])


# --------------------------------- main -------------------------------------

if __name__ == "__main__":
    B, N, D, H = 2, 8, 64, 8
    key = jax.random.PRNGKey(0)
    ks = jax.random.split(key, 12)

    def init(k, shape, scale=0.05):
        return (scale * jax.random.normal(k, shape)).astype(jnp.float32)

    params = {
        'n1_g': jnp.ones((D,), jnp.float32),
        'n1_b': jnp.zeros((D,), jnp.float32),
        'n2_g': jnp.ones((D,), jnp.float32),
        'n2_b': jnp.zeros((D,), jnp.float32),
        'wq': init(ks[0], (D, D)),
        'wk': init(ks[1], (D, D)),
        'wv': init(ks[2], (D, D)),
        'wp': init(ks[3], (D, D)),
        'bp': init(ks[4], (D,)),
        'w1': init(ks[5], (D, 4 * D)),
        'b1': init(ks[6], (4 * D,)),
        'w2': init(ks[7], (4 * D, D)),
        'b2': init(ks[8], (D,)),
    }

    x1 = jax.random.normal(ks[9], (B, N, D), jnp.float32)
    x2 = jax.random.normal(ks[10], (B, N, D), jnp.float32)

    out = cross_attention_block(x1, x2, params, num_heads=H)
    out = jax.block_until_ready(out)

    ref = reference(x1, x2, params, num_heads=H)
    assert out.shape == (B, N, D)
    # bf16 MXU operands + approx reciprocal -> relax tolerance vs f32 ref.
    assert jnp.allclose(out, ref, atol=2e-2, rtol=2e-2), \
        f"max err {jnp.max(jnp.abs(out - ref))}"

    print("KERNEL_OK")
</pallas_src>

<mosaic_0001>
module attributes {stable_mosaic.version = 11 : i64} {
  func.func @cross_attn_block_kernel(%arg0: i32, %arg1: i32, %arg2: memref<1x8x64xf32, #tpu.memory_space<vmem>>, %arg3: memref<1x8x64xf32, #tpu.memory_space<vmem>>, %arg4: memref<8x256xf32, #tpu.memory_space<vmem>>, %arg5: memref<64x64xbf16, #tpu.memory_space<vmem>>, %arg6: memref<64x64xbf16, #tpu.memory_space<vmem>>, %arg7: memref<64x64xbf16, #tpu.memory_space<vmem>>, %arg8: memref<64x64xbf16, #tpu.memory_space<vmem>>, %arg9: memref<64x256xbf16, #tpu.memory_space<vmem>>, %arg10: memref<256x64xbf16, #tpu.memory_space<vmem>>, %arg11: memref<1x8x64xf32, #tpu.memory_space<vmem>>) attributes {dimension_semantics = [#tpu.dimension_semantics<parallel>, #tpu.dimension_semantics<parallel>], iteration_bounds = array<i64: 2, 1>, scalar_prefetch = 0 : i64, scratch_operands = 0 : i64, tpu.core_type = #tpu.core_type<tc>, window_params = [{transform_indices = @transform_0, window_bounds = array<i64: 1, 8, 64>}, {transform_indices = @transform_1, window_bounds = array<i64: 1, 8, 64>}, {pipeline_mode = #tpu.pipeline_mode<synchronous>, transform_indices = @transform_2, window_bounds = array<i64: 8, 256>}, {pipeline_mode = #tpu.pipeline_mode<synchronous>, transform_indices = @transform_3, window_bounds = array<i64: 64, 64>}, {pipeline_mode = #tpu.pipeline_mode<synchronous>, transform_indices = @transform_4, window_bounds = array<i64: 64, 64>}, {pipeline_mode = #tpu.pipeline_mode<synchronous>, transform_indices = @transform_5, window_bounds = array<i64: 64, 64>}, {pipeline_mode = #tpu.pipeline_mode<synchronous>, transform_indices = @transform_6, window_bounds = array<i64: 64, 64>}, {pipeline_mode = #tpu.pipeline_mode<synchronous>, transform_indices = @transform_7, window_bounds = array<i64: 64, 256>}, {pipeline_mode = #tpu.pipeline_mode<synchronous>, transform_indices = @transform_8, window_bounds = array<i64: 256, 64>}, {transform_indices = @transform_9, window_bounds = array<i64: 1, 8, 64>}]} {
    %c0 = arith.constant 0 : index
    %c0_0 = arith.constant 0 : index
    %c0_1 = arith.constant 0 : index
    %0 = vector.load %arg2[%c0, %c0_0, %c0_1] : memref<1x8x64xf32, #tpu.memory_space<vmem>>, vector<1x8x64xf32>
    %1 = vector.shape_cast %0 : vector<1x8x64xf32> to vector<8x64xf32>
    %c0_2 = arith.constant 0 : index
    %c0_3 = arith.constant 0 : index
    %c0_4 = arith.constant 0 : index
    %2 = vector.load %arg3[%c0_2, %c0_3, %c0_4] : memref<1x8x64xf32, #tpu.memory_space<vmem>>, vector<1x8x64xf32>
    %3 = vector.shape_cast %2 : vector<1x8x64xf32> to vector<8x64xf32>
    %c0_5 = arith.constant 0 : index
    %c0_6 = arith.constant 0 : index
    %4 = vector.load %arg4[%c0_5, %c0_6] : memref<8x256xf32, #tpu.memory_space<vmem>>, vector<8x256xf32>
    %5 = vector.extract_strided_slice %4 {offsets = [0, 0], sizes = [1, 64], strides = [1, 1]} : vector<8x256xf32> to vector<1x64xf32>
    %6 = vector.shape_cast %5 : vector<1x64xf32> to vector<64xf32>
    %7 = vector.extract_strided_slice %4 {offsets = [1, 0], sizes = [1, 64], strides = [1, 1]} : vector<8x256xf32> to vector<1x64xf32>
    %8 = vector.shape_cast %7 : vector<1x64xf32> to vector<64xf32>
    %9 = vector.extract_strided_slice %4 {offsets = [2, 0], sizes = [1, 64], strides = [1, 1]} : vector<8x256xf32> to vector<1x64xf32>
    %10 = vector.shape_cast %9 : vector<1x64xf32> to vector<64xf32>
    %11 = vector.extract_strided_slice %4 {offsets = [3, 0], sizes = [1, 64], strides = [1, 1]} : vector<8x256xf32> to vector<1x64xf32>
    %12 = vector.shape_cast %11 : vector<1x64xf32> to vector<64xf32>
    %13 = vector.extract_strided_slice %4 {offsets = [4, 0], sizes = [1, 64], strides = [1, 1]} : vector<8x256xf32> to vector<1x64xf32>
    %14 = vector.shape_cast %13 : vector<1x64xf32> to vector<64xf32>
    %15 = vector.extract_strided_slice %4 {offsets = [5, 0], sizes = [1, 64], strides = [1, 1]} : vector<8x256xf32> to vector<1x64xf32>
    %16 = vector.shape_cast %15 : vector<1x64xf32> to vector<64xf32>
    %17 = vector.extract_strided_slice %4 {offsets = [6, 0], sizes = [1, 256], strides = [1, 1]} : vector<8x256xf32> to vector<1x256xf32>
    %18 = vector.shape_cast %17 : vector<1x256xf32> to vector<256xf32>
    %cst = arith.constant dense<0.000000e+00> : vector<8xf32>
    %19 = vector.multi_reduction <add>, %1, %cst [1] : vector<8x64xf32> to vector<8xf32>
    %20 = vector.shape_cast %19 : vector<8xf32> to vector<8x1xf32>
    %cst_7 = arith.constant 6.400000e+01 : f32
    %21 = vector.broadcast %cst_7 : f32 to vector<8x1xf32>
    %22 = arith.divf %20, %21 : vector<8x1xf32>
    %23 = vector.broadcast %22 : vector<8x1xf32> to vector<8x64xf32>
    %24 = arith.subf %1, %23 : vector<8x64xf32>
    %25 = arith.mulf %24, %24 : vector<8x64xf32>
    %cst_8 = arith.constant dense<0.000000e+00> : vector<8xf32>
    %26 = vector.multi_reduction <add>, %25, %cst_8 [1] : vector<8x64xf32> to vector<8xf32>
    %27 = vector.shape_cast %26 : vector<8xf32> to vector<8x1xf32>
    %cst_9 = arith.constant 6.400000e+01 : f32
    %28 = vector.broadcast %cst_9 : f32 to vector<8x1xf32>
    %29 = arith.divf %27, %28 : vector<8x1xf32>
    %30 = vector.broadcast %22 : vector<8x1xf32> to vector<8x64xf32>
    %31 = arith.subf %1, %30 : vector<8x64xf32>
    %cst_10 = arith.constant 9.99999974E-6 : f32
    %32 = vector.broadcast %cst_10 : f32 to vector<8x1xf32>
    %33 = arith.addf %29, %32 : vector<8x1xf32>
    %34 = math.rsqrt %33 : vector<8x1xf32>
    %35 = vector.broadcast %34 : vector<8x1xf32> to vector<8x64xf32>
    %36 = arith.mulf %31, %35 : vector<8x64xf32>
    %37 = vector.shape_cast %6 : vector<64xf32> to vector<1x64xf32>
    %38 = vector.broadcast %37 : vector<1x64xf32> to vector<8x64xf32>
    %39 = arith.mulf %36, %38 : vector<8x64xf32>
    %40 = vector.shape_cast %8 : vector<64xf32> to vector<1x64xf32>
    %41 = vector.broadcast %40 : vector<1x64xf32> to vector<8x64xf32>
    %42 = arith.addf %39, %41 : vector<8x64xf32>
    %43 = arith.truncf %42 : vector<8x64xf32> to vector<8x64xbf16>
    %cst_11 = arith.constant dense<0.000000e+00> : vector<8xf32>
    %44 = vector.multi_reduction <add>, %3, %cst_11 [1] : vector<8x64xf32> to vector<8xf32>
    %45 = vector.shape_cast %44 : vector<8xf32> to vector<8x1xf32>
    %cst_12 = arith.constant 6.400000e+01 : f32
    %46 = vector.broadcast %cst_12 : f32 to vector<8x1xf32>
    %47 = arith.divf %45, %46 : vector<8x1xf32>
    %48 = vector.broadcast %47 : vector<8x1xf32> to vector<8x64xf32>
    %49 = arith.subf %3, %48 : vector<8x64xf32>
    %50 = arith.mulf %49, %49 : vector<8x64xf32>
    %cst_13 = arith.constant dense<0.000000e+00> : vector<8xf32>
    %51 = vector.multi_reduction <add>, %50, %cst_13 [1] : vector<8x64xf32> to vector<8xf32>
    %52 = vector.shape_cast %51 : vector<8xf32> to vector<8x1xf32>
    %cst_14 = arith.constant 6.400000e+01 : f32
    %53 = vector.broadcast %cst_14 : f32 to vector<8x1xf32>
    %54 = arith.divf %52, %53 : vector<8x1xf32>
    %55 = vector.broadcast %47 : vector<8x1xf32> to vector<8x64xf32>
    %56 = arith.subf %3, %55 : vector<8x64xf32>
    %cst_15 = arith.constant 9.99999974E-6 : f32
    %57 = vector.broadcast %cst_15 : f32 to vector<8x1xf32>
    %58 = arith.addf %54, %57 : vector<8x1xf32>
    %59 = math.rsqrt %58 : vector<8x1xf32>
    %60 = vector.broadcast %59 : vector<8x1xf32> to vector<8x64xf32>
    %61 = arith.mulf %56, %60 : vector<8x64xf32>
    %62 = vector.shape_cast %6 : vector<64xf32> to vector<1x64xf32>
    %63 = vector.broadcast %62 : vector<1x64xf32> to vector<8x64xf32>
    %64 = arith.mulf %61, %63 : vector<8x64xf32>
    %65 = vector.shape_cast %8 : vector<64xf32> to vector<1x64xf32>
    %66 = vector.broadcast %65 : vector<1x64xf32> to vector<8x64xf32>
    %67 = arith.addf %64, %66 : vector<8x64xf32>
    %68 = arith.truncf %67 : vector<8x64xf32> to vector<8x64xbf16>
    %c0_16 = arith.constant 0 : index
    %c0_17 = arith.constant 0 : index
    %69 = vector.load %arg5[%c0_16, %c0_17] : memref<64x64xbf16, #tpu.memory_space<vmem>>, vector<64x64xbf16>
    %cst_18 = arith.constant dense<0.000000e+00> : vector<8x64xf32>
    %70 = tpu.matmul %43, %69, %cst_18 {dimension_numbers = #tpu.dot_dimension_numbers<[1], [0], [0], [1], [0, 0, 1, 1], [], []>} : vector<8x64xbf16>, vector<64x64xbf16>, vector<8x64xf32> -> vector<8x64xf32>
    %c0_19 = arith.constant 0 : index
    %c0_20 = arith.constant 0 : index
    %71 = vector.load %arg6[%c0_19, %c0_20] : memref<64x64xbf16, #tpu.memory_space<vmem>>, vector<64x64xbf16>
    %cst_21 = arith.constant dense<0.000000e+00> : vector<8x64xf32>
    %72 = tpu.matmul %68, %71, %cst_21 {dimension_numbers = #tpu.dot_dimension_numbers<[1], [0], [0], [1], [0, 0, 1, 1], [], []>} : vector<8x64xbf16>, vector<64x64xbf16>, vector<8x64xf32> -> vector<8x64xf32>
    %c0_22 = arith.constant 0 : index
    %c0_23 = arith.constant 0 : index
    %73 = vector.load %arg7[%c0_22, %c0_23] : memref<64x64xbf16, #tpu.memory_space<vmem>>, vector<64x64xbf16>
    %cst_24 = arith.constant dense<0.000000e+00> : vector<8x64xf32>
    %74 = tpu.matmul %68, %73, %cst_24 {dimension_numbers = #tpu.dot_dimension_numbers<[1], [0], [0], [1], [0, 0, 1, 1], [], []>} : vector<8x64xbf16>, vector<64x64xbf16>, vector<8x64xf32> -> vector<8x64xf32>
    %75 = vector.shape_cast %70 : vector<8x64xf32> to vector<8x8x8xf32>
    %76 = tpu.transpose %75, [1, 0, 2] : vector<8x8x8xf32> -> vector<8x8x8xf32>
    %77 = arith.truncf %76 : vector<8x8x8xf32> to vector<8x8x8xbf16>
    %78 = vector.shape_cast %72 : vector<8x64xf32> to vector<8x8x8xf32>
    %79 = tpu.transpose %78, [1, 0, 2] : vector<8x8x8xf32> -> vector<8x8x8xf32>
    %80 = arith.truncf %79 : vector<8x8x8xf32> to vector<8x8x8xbf16>
    %81 = vector.shape_cast %74 : vector<8x64xf32> to vector<8x8x8xf32>
    %82 = tpu.transpose %81, [1, 0, 2] : vector<8x8x8xf32> -> vector<8x8x8xf32>
    %83 = arith.truncf %82 : vector<8x8x8xf32> to vector<8x8x8xbf16>
    %cst_25 = arith.constant dense<0.000000e+00> : vector<8x8x8xf32>
    %84 = tpu.matmul %77, %80, %cst_25 {dimension_numbers = #tpu.dot_dimension_numbers<[2], [2], [1], [1], [0, 0, 0, 1, 1, 1], [0], [0]>} : vector<8x8x8xbf16>, vector<8x8x8xbf16>, vector<8x8x8xf32> -> vector<8x8x8xf32>
    %cst_26 = arith.constant 0.353553385 : f32
    %85 = vector.broadcast %cst_26 : f32 to vector<8x8x8xf32>
    %86 = arith.mulf %84, %85 : vector<8x8x8xf32>
    %cst_27 = arith.constant dense<0xFF800000> : vector<8x8xf32>
    %87 = vector.multi_reduction <maximumf>, %86, %cst_27 [2] : vector<8x8x8xf32> to vector<8x8xf32>
    %88 = vector.shape_cast %87 : vector<8x8xf32> to vector<8x8x1xf32>
    %89 = vector.broadcast %88 : vector<8x8x1xf32> to vector<8x8x8xf32>
    %90 = arith.subf %86, %89 : vector<8x8x8xf32>
    %91 = math.exp %90 : vector<8x8x8xf32>
    %cst_28 = arith.constant dense<0.000000e+00> : vector<8x8xf32>
    %92 = vector.multi_reduction <add>, %91, %cst_28 [2] : vector<8x8x8xf32> to vector<8x8xf32>
    %93 = vector.shape_cast %92 : vector<8x8xf32> to vector<8x8x1xf32>
    %94 = tpu.reciprocal %93 {approx = true} : vector<8x8x1xf32> -> vector<8x8x1xf32>
    %95 = vector.broadcast %94 : vector<8x8x1xf32> to vector<8x8x8xf32>
    %96 = arith.mulf %91, %95 : vector<8x8x8xf32>
    %97 = arith.truncf %96 : vector<8x8x8xf32> to vector<8x8x8xbf16>
    %cst_29 = arith.constant dense<0.000000e+00> : vector<8x8x8xf32>
    %98 = tpu.matmul %97, %83, %cst_29 {dimension_numbers = #tpu.dot_dimension_numbers<[2], [1], [1], [2], [0, 0, 0, 1, 1, 2], [0], [0]>} : vector<8x8x8xbf16>, vector<8x8x8xbf16>, vector<8x8x8xf32> -> vector<8x8x8xf32>
    %99 = tpu.transpose %98, [1, 0, 2] : vector<8x8x8xf32> -> vector<8x8x8xf32>
    %100 = vector.shape_cast %99 : vector<8x8x8xf32> to vector<8x64xf32>
    %101 = arith.truncf %100 : vector<8x64xf32> to vector<8x64xbf16>
    %c0_30 = arith.constant 0 : index
    %c0_31 = arith.constant 0 : index
    %102 = vector.load %arg8[%c0_30, %c0_31] : memref<64x64xbf16, #tpu.memory_space<vmem>>, vector<64x64xbf16>
    %cst_32 = arith.constant dense<0.000000e+00> : vector<8x64xf32>
    %103 = tpu.matmul %101, %102, %cst_32 {dimension_numbers = #tpu.dot_dimension_numbers<[1], [0], [0], [1], [0, 0, 1, 1], [], []>} : vector<8x64xbf16>, vector<64x64xbf16>, vector<8x64xf32> -> vector<8x64xf32>
    %104 = vector.shape_cast %14 : vector<64xf32> to vector<1x64xf32>
    %105 = vector.broadcast %104 : vector<1x64xf32> to vector<8x64xf32>
    %106 = arith.addf %103, %105 : vector<8x64xf32>
    %107 = arith.addf %106, %1 : vector<8x64xf32>
    %cst_33 = arith.constant dense<0.000000e+00> : vector<8xf32>
    %108 = vector.multi_reduction <add>, %107, %cst_33 [1] : vector<8x64xf32> to vector<8xf32>
    %109 = vector.shape_cast %108 : vector<8xf32> to vector<8x1xf32>
    %cst_34 = arith.constant 6.400000e+01 : f32
    %110 = vector.broadcast %cst_34 : f32 to vector<8x1xf32>
    %111 = arith.divf %109, %110 : vector<8x1xf32>
    %112 = vector.broadcast %111 : vector<8x1xf32> to vector<8x64xf32>
    %113 = arith.subf %107, %112 : vector<8x64xf32>
    %114 = arith.mulf %113, %113 : vector<8x64xf32>
    %cst_35 = arith.constant dense<0.000000e+00> : vector<8xf32>
    %115 = vector.multi_reduction <add>, %114, %cst_35 [1] : vector<8x64xf32> to vector<8xf32>
    %116 = vector.shape_cast %115 : vector<8xf32> to vector<8x1xf32>
    %cst_36 = arith.constant 6.400000e+01 : f32
    %117 = vector.broadcast %cst_36 : f32 to vector<8x1xf32>
    %118 = arith.divf %116, %117 : vector<8x1xf32>
    %119 = vector.broadcast %111 : vector<8x1xf32> to vector<8x64xf32>
    %120 = arith.subf %107, %119 : vector<8x64xf32>
    %cst_37 = arith.constant 9.99999974E-6 : f32
    %121 = vector.broadcast %cst_37 : f32 to vector<8x1xf32>
    %122 = arith.addf %118, %121 : vector<8x1xf32>
    %123 = math.rsqrt %122 : vector<8x1xf32>
    %124 = vector.broadcast %123 : vector<8x1xf32> to vector<8x64xf32>
    %125 = arith.mulf %120, %124 : vector<8x64xf32>
    %126 = vector.shape_cast %10 : vector<64xf32> to vector<1x64xf32>
    %127 = vector.broadcast %126 : vector<1x64xf32> to vector<8x64xf32>
    %128 = arith.mulf %125, %127 : vector<8x64xf32>
    %129 = vector.shape_cast %12 : vector<64xf32> to vector<1x64xf32>
    %130 = vector.broadcast %129 : vector<1x64xf32> to vector<8x64xf32>
    %131 = arith.addf %128, %130 : vector<8x64xf32>
    %132 = arith.truncf %131 : vector<8x64xf32> to vector<8x64xbf16>
    %c0_38 = arith.constant 0 : index
    %c0_39 = arith.constant 0 : index
    %133 = vector.load %arg9[%c0_38, %c0_39] : memref<64x256xbf16, #tpu.memory_space<vmem>>, vector<64x256xbf16>
    %cst_40 = arith.constant dense<0.000000e+00> : vector<8x256xf32>
    %134 = tpu.matmul %132, %133, %cst_40 {dimension_numbers = #tpu.dot_dimension_numbers<[1], [0], [0], [1], [0, 0, 1, 1], [], []>} : vector<8x64xbf16>, vector<64x256xbf16>, vector<8x256xf32> -> vector<8x256xf32>
    %135 = vector.shape_cast %18 : vector<256xf32> to vector<1x256xf32>
    %136 = vector.broadcast %135 : vector<1x256xf32> to vector<8x256xf32>
    %137 = arith.addf %134, %136 : vector<8x256xf32>
    %cst_41 = arith.constant 5.000000e-01 : f32
    %138 = vector.broadcast %cst_41 : f32 to vector<8x256xf32>
    %139 = arith.mulf %138, %137 : vector<8x256xf32>
    %cst_42 = arith.constant 0.707106769 : f32
    %140 = vector.broadcast %cst_42 : f32 to vector<8x256xf32>
    %141 = arith.mulf %137, %140 : vector<8x256xf32>
    %142 = math.erf %141 : vector<8x256xf32>
    %cst_43 = arith.constant 1.000000e+00 : f32
    %143 = vector.broadcast %cst_43 : f32 to vector<8x256xf32>
    %144 = arith.addf %143, %142 : vector<8x256xf32>
    %145 = arith.mulf %139, %144 : vector<8x256xf32>
    %146 = arith.truncf %145 : vector<8x256xf32> to vector<8x256xbf16>
    %c0_44 = arith.constant 0 : index
    %c0_45 = arith.constant 0 : index
    %147 = vector.load %arg10[%c0_44, %c0_45] : memref<256x64xbf16, #tpu.memory_space<vmem>>, vector<256x64xbf16>
    %cst_46 = arith.constant dense<0.000000e+00> : vector<8x64xf32>
    %148 = tpu.matmul %146, %147, %cst_46 {dimension_numbers = #tpu.dot_dimension_numbers<[1], [0], [0], [1], [0, 0, 1, 1], [], []>} : vector<8x256xbf16>, vector<256x64xbf16>, vector<8x64xf32> -> vector<8x64xf32>
    %149 = vector.shape_cast %16 : vector<64xf32> to vector<1x64xf32>
    %150 = vector.broadcast %149 : vector<1x64xf32> to vector<8x64xf32>
    %151 = arith.addf %148, %150 : vector<8x64xf32>
    %152 = arith.addf %107, %151 : vector<8x64xf32>
    %c0_47 = arith.constant 0 : index
    %c0_48 = arith.constant 0 : index
    %c0_49 = arith.constant 0 : index
    %153 = vector.load %arg11[%c0_47, %c0_48, %c0_49] : memref<1x8x64xf32, #tpu.memory_space<vmem>>, vector<1x8x64xf32>
    %154 = vector.shape_cast %153 : vector<1x8x64xf32> to vector<8x64xf32>
    %155 = vector.shape_cast %152 : vector<8x64xf32> to vector<1x8x64xf32>
    tpu.vector_store %arg11[%c0_47, %c0_48, %c0_49], %155 {strides = array<i32>} : memref<1x8x64xf32, #tpu.memory_space<vmem>>, vector<1x8x64xf32>,
    return
  }
  func.func @transform_0(%arg0: i32, %arg1: i32) -> (i32, i32, i32) {
    %c0_i32 = arith.constant 0 : i32
    %c0_i32_0 = arith.constant 0 : i32
    return %arg0, %arg1, %c0_i32 : i32, i32, i32
  }
  func.func @transform_1(%arg0: i32, %arg1: i32) -> (i32, i32, i32) {
    %c0_i32 = arith.constant 0 : i32
    %c0_i32_0 = arith.constant 0 : i32
    %c0_i32_1 = arith.constant 0 : i32
    return %arg0, %c0_i32, %c0_i32_0 : i32, i32, i32
  }
  func.func @transform_2(%arg0: i32, %arg1: i32) -> (i32, i32) {
    %c0_i32 = arith.constant 0 : i32
    %c0_i32_0 = arith.constant 0 : i32
    %c0_i32_1 = arith.constant 0 : i32
    return %c0_i32, %c0_i32_0 : i32, i32
  }
  func.func @transform_3(%arg0: i32, %arg1: i32) -> (i32, i32) {
    %c0_i32 = arith.constant 0 : i32
    %c0_i32_0 = arith.constant 0 : i32
    %c0_i32_1 = arith.constant 0 : i32
    return %c0_i32, %c0_i32_0 : i32, i32
  }
  func.func @transform_4(%arg0: i32, %arg1: i32) -> (i32, i32) {
    %c0_i32 = arith.constant 0 : i32
    %c0_i32_0 = arith.constant 0 : i32
    %c0_i32_1 = arith.constant 0 : i32
    return %c0_i32, %c0_i32_0 : i32, i32
  }
  func.func @transform_5(%arg0: i32, %arg1: i32) -> (i32, i32) {
    %c0_i32 = arith.constant 0 : i32
    %c0_i32_0 = arith.constant 0 : i32
    %c0_i32_1 = arith.constant 0 : i32
    return %c0_i32, %c0_i32_0 : i32, i32
  }
  func.func @transform_6(%arg0: i32, %arg1: i32) -> (i32, i32) {
    %c0_i32 = arith.constant 0 : i32
    %c0_i32_0 = arith.constant 0 : i32
    %c0_i32_1 = arith.constant 0 : i32
    return %c0_i32, %c0_i32_0 : i32, i32
  }
  func.func @transform_7(%arg0: i32, %arg1: i32) -> (i32, i32) {
    %c0_i32 = arith.constant 0 : i32
    %c0_i32_0 = arith.constant 0 : i32
    %c0_i32_1 = arith.constant 0 : i32
    return %c0_i32, %c0_i32_0 : i32, i32
  }
  func.func @transform_8(%arg0: i32, %arg1: i32) -> (i32, i32) {
    %c0_i32 = arith.constant 0 : i32
    %c0_i32_0 = arith.constant 0 : i32
    %c0_i32_1 = arith.constant 0 : i32
    return %c0_i32, %c0_i32_0 : i32, i32
  }
  func.func @transform_9(%arg0: i32, %arg1: i32) -> (i32, i32, i32) {
    %c0_i32 = arith.constant 0 : i32
    %c0_i32_0 = arith.constant 0 : i32
    return %arg0, %arg1, %c0_i32 : i32, i32, i32
  }
}

</mosaic_0001>

<llo_original>
// kernel: tpu_custom_call.1
$region0: #{tpu_custom_call.1}
  #allocation0 [shape = 'u32[]', space=smem, size = 0x4, offset = 0x4, fixed_abs, tag = 'smem constant byte address 0x4 - core index']
  #allocation1 [shape = 'u32[144,128]{1,0:T(1,128)}', space=vmem, size = 0x12000, scoped, tag = 'internal scratch']
  %s0 = inlined_call_operand.hbm [shape: f32[2,8,64], index: 0, kind: input, shape index: {}]
  %s1 = inlined_call_operand.hbm [shape: f32[2,8,64], index: 1, kind: input, shape index: {}]
  %s2 = inlined_call_operand.hbm [shape: f32[8,256], index: 2, kind: input, shape index: {}]
  %s3 = inlined_call_operand.vmem [shape: bf16[64,64], index: 3, kind: input, shape index: {}]
  %s4 = inlined_call_operand.vmem [shape: bf16[64,64], index: 4, kind: input, shape index: {}]
  %s5 = inlined_call_operand.vmem [shape: bf16[64,64], index: 5, kind: input, shape index: {}]
  %s6 = inlined_call_operand.vmem [shape: bf16[64,64], index: 6, kind: input, shape index: {}]
  %s7 = inlined_call_operand.vmem [shape: bf16[64,256], index: 7, kind: input, shape index: {}]
  %s8 = inlined_call_operand.vmem [shape: bf16[256,64], index: 8, kind: input, shape index: {}]
  %s9 = inlined_call_operand.hbm [shape: f32[2,8,64], index: 9, kind: output, shape index: {}]
  %s10 = sld [smem:[#allocation0]]
  $region81: #{tpu_custom_call.1} parent=0
    _
  %s12 = ssub.s32 1, %s10
  %s13 = scalar_select 0, %s12, %s10
  $region1: #{tpu_custom_call.1} parent=0
    #allocation2 [shape = 'u8[8192]{0}', space=vmem, size = 0x2000, scoped, tag = 'input window, operand 0']
    #allocation3 [shape = 's32[2]{0}', space=sflag, size = 0x8, scoped, tag = 'scoped memory for tpu_custom_call.1']
    #allocation4 [shape = 's32[2]{0}', space=sflag, size = 0x8, scoped, tag = 'scoped memory for tpu_custom_call.1']
    #allocation5 [shape = 'u8[8192]{0}', space=vmem, size = 0x2000, scoped, tag = 'input window, operand 1']
    #allocation6 [shape = 's32[2]{0}', space=sflag, size = 0x8, scoped, tag = 'scoped memory for tpu_custom_call.1']
    #allocation7 [shape = 'u8[8192]{0}', space=vmem, size = 0x2000, scoped, tag = 'input window, operand 2, single buffered']
    #allocation8 [shape = 'u8[8192]{0}', space=vmem, size = 0x2000, scoped, tag = 'output window, operand 0']
    %14 = vsyncpa [#allocation3], 0
    %s15 = scalar_lea.sflag [#allocation3], 1
    %16 = vsyncpa %s15, 0
    %17 = vsyncpa [#allocation6], 0
    %s18 = scalar_lea.sflag [#allocation6], 1
    %19 = vsyncpa %s18, 0
    %20 = vsyncpa [#allocation4], 0
    %s21 = scalar_lea.sflag [#allocation4], 1
    %22 = vsyncpa %s21, 0
    loop: start=0, step=1, limit=4
    $region2: #{tpu_custom_call.1} parent=1 // loop_pre_header
      _
    $region3: #{tpu_custom_call.1} parent=1 // loop_header
      %s24 = sphi 0, %s28
      %p25 = scmp.ge.s32.totalorder %s24, 4
      %s31 = sphi 0, %s43
      %s32 = sphi 0, %s39
      %s33 = sphi 0, %s31
      %s34 = sphi 0, %s32
      %s35 = sphi 0, %s33
      %s36 = sphi 0, %s34
      %s48 = sphi 0, %s50
      %s51 = sphi 0, %s48
      %s52 = sphi 0, %s51
      %s68 = sphi 0, %s52
      %s74 = sphi 0, %s76
      %s77 = sphi 0, %s74
      %s78 = sphi 0, %s77
      %s94 = sphi 0, %s78
      %s98 = sphi 0, %s98
      %s100 = sphi 0, %s98
      %s101 = sphi 0, %s100
      %s115 = sphi 0, %s101
      %s119 = sphi 0, %s119
      %s121 = sphi 0, %s119
      %s122 = sphi 0, %s121
      %s136 = sphi 0, %s122
      %s140 = sphi 0, %s140
      %s142 = sphi 0, %s140
      %s143 = sphi 0, %s142
      %s157 = sphi 0, %s143
      %s161 = sphi 0, %s161
      %s163 = sphi 0, %s161
      %s164 = sphi 0, %s163
      %s178 = sphi 0, %s164
      %s182 = sphi 0, %s182
      %s184 = sphi 0, %s182
      %s185 = sphi 0, %s184
      %s199 = sphi 0, %s185
      %s203 = sphi 0, %s203
      %s205 = sphi 0, %s203
      %s206 = sphi 0, %s205
      %s220 = sphi 0, %s206
      %s224 = sphi 0, %s224
      %s226 = sphi 0, %s224
      %s227 = sphi 0, %s226
      %s241 = sphi 0, %s227
      %s249 = sphi 0, %s251
      %s252 = sphi 0, %s249
      %s253 = sphi 0, %s252
      %s269 = sphi 0, %s253
    $region4: #{tpu_custom_call.1} parent=1 // loop_header_branch
      %27 = sbr.rel (%p25) target = $region8
    $region5: #{tpu_custom_call.1} parent=1 // loop_body
      %s29 = ssub.s32 %s24, 1
      %s30 = ssub.s32 %s24, 2
      %s37 = sadd.s32 1, %s32
      %p38 = scmp.ge.s32.totalorder %s37, 1
      %s39 = scalar_select %p38, 0, %s37
      %s40 = sadd.s32 1, %s31
      %s41 = scalar_select %p38, %s40, %s31
      %p42 = scmp.ge.s32.totalorder %s41, 2
      %s43 = scalar_select %p42, 0, %s41
      %s44 = ssub.s32 %s31, %s43
      %s45 = ssub.s32 %s32, %s39
      %s46 = sor.u32 %s44, %s45
      %p47 = scmp.eq.s32.totalorder %s46, 0
      %s49 = sadd.s32 %s48, 1
      %s50 = scalar_select %p47, %s48, %s49
      %p53 = pneg %p47
      %p54 = scmp.eq.s32.totalorder %s24, 1
      %p55 = por %p53, %p54
      %p56 = scmp.ne.s32.totalorder %s48, %s51
      %p57 = scmp.eq.s32.totalorder %s24, 0
      %p58 = por %p56, %p57
      %p59 = scmp.ne.s32.totalorder %s48, %s51
      %p60 = scmp.eq.s32.totalorder %s29, 1
      %p61 = por %p59, %p60
      %p62 = scmp.ne.s32.totalorder %s51, %s52
      %p63 = scmp.eq.s32.totalorder %s29, 0
      %p64 = por %p62, %p63
      %p65 = scmp.ne.s32.totalorder %s51, %s52
      %p66 = scmp.eq.s32.totalorder %s30, 1
      %p67 = por %p65, %p66
      %p69 = scmp.ne.s32.totalorder %s52, %s68
      %p70 = scmp.eq.s32.totalorder %s30, 0
      %p71 = por %p69, %p70
      %s72 = ssub.s32 %s31, %s43
      %p73 = scmp.eq.s32.totalorder %s72, 0
      %s75 = sadd.s32 %s74, 1
      %s76 = scalar_select %p73, %s74, %s75
      %p79 = pneg %p73
      %p80 = scmp.eq.s32.totalorder %s24, 1
      %p81 = por %p79, %p80
      %p82 = scmp.ne.s32.totalorder %s74, %s77
      %p83 = scmp.eq.s32.totalorder %s24, 0
      %p84 = por %p82, %p83
      %p85 = scmp.ne.s32.totalorder %s74, %s77
      %p86 = scmp.eq.s32.totalorder %s29, 1
      %p87 = por %p85, %p86
      %p88 = scmp.ne.s32.totalorder %s77, %s78
      %p89 = scmp.eq.s32.totalorder %s29, 0
      %p90 = por %p88, %p89
      %p91 = scmp.ne.s32.totalorder %s77, %s78
      %p92 = scmp.eq.s32.totalorder %s30, 1
      %p93 = por %p91, %p92
      %p95 = scmp.ne.s32.totalorder %s78, %s94
      %p96 = scmp.eq.s32.totalorder %s30, 0
      %p97 = por %p95, %p96
      %s99 = sadd.s32 %s98, 1
      %p102 = scmp.eq.s32.totalorder %s24, 1
      %p103 = scmp.ne.s32.totalorder %s98, %s100
      %p104 = scmp.eq.s32.totalorder %s24, 0
      %p105 = por %p103, %p104
      %p106 = scmp.ne.s32.totalorder %s98, %s100
      %p107 = scmp.eq.s32.totalorder %s29, 1
      %p108 = por %p106, %p107
      %p109 = scmp.ne.s32.totalorder %s100, %s101
      %p110 = scmp.eq.s32.totalorder %s29, 0
      %p111 = por %p109, %p110
      %p112 = scmp.ne.s32.totalorder %s100, %s101
      %p113 = scmp.eq.s32.totalorder %s30, 1
      %p114 = por %p112, %p113
      %p116 = scmp.ne.s32.totalorder %s101, %s115
      %p117 = scmp.eq.s32.totalorder %s30, 0
      %p118 = por %p116, %p117
      %s120 = sadd.s32 %s119, 1
      %p123 = scmp.eq.s32.totalorder %s24, 1
      %p124 = scmp.ne.s32.totalorder %s119, %s121
      %p125 = scmp.eq.s32.totalorder %s24, 0
      %p126 = por %p124, %p125
      %p127 = scmp.ne.s32.totalorder %s119, %s121
      %p128 = scmp.eq.s32.totalorder %s29, 1
      %p129 = por %p127, %p128
      %p130 = scmp.ne.s32.totalorder %s121, %s122
      %p131 = scmp.eq.s32.totalorder %s29, 0
      %p132 = por %p130, %p131
      %p133 = scmp.ne.s32.totalorder %s121, %s122
      %p134 = scmp.eq.s32.totalorder %s30, 1
      %p135 = por %p133, %p134
      %p137 = scmp.ne.s32.totalorder %s122, %s136
      %p138 = scmp.eq.s32.totalorder %s30, 0
      %p139 = por %p137, %p138
      %s141 = sadd.s32 %s140, 1
      %p144 = scmp.eq.s32.totalorder %s24, 1
      %p145 = scmp.ne.s32.totalorder %s140, %s142
      %p146 = scmp.eq.s32.totalorder %s24, 0
      %p147 = por %p145, %p146
      %p148 = scmp.ne.s32.totalorder %s140, %s142
      %p149 = scmp.eq.s32.totalorder %s29, 1
      %p150 = por %p148, %p149
      %p151 = scmp.ne.s32.totalorder %s142, %s143
      %p152 = scmp.eq.s32.totalorder %s29, 0
      %p153 = por %p151, %p152
      %p154 = scmp.ne.s32.totalorder %s142, %s143
      %p155 = scmp.eq.s32.totalorder %s30, 1
      %p156 = por %p154, %p155
      %p158 = scmp.ne.s32.totalorder %s143, %s157
      %p159 = scmp.eq.s32.totalorder %s30, 0
      %p160 = por %p158, %p159
      %s162 = sadd.s32 %s161, 1
      %p165 = scmp.eq.s32.totalorder %s24, 1
      %p166 = scmp.ne.s32.totalorder %s161, %s163
      %p167 = scmp.eq.s32.totalorder %s24, 0
      %p168 = por %p166, %p167
      %p169 = scmp.ne.s32.totalorder %s161, %s163
      %p170 = scmp.eq.s32.totalorder %s29, 1
      %p171 = por %p169, %p170
      %p172 = scmp.ne.s32.totalorder %s163, %s164
      %p173 = scmp.eq.s32.totalorder %s29, 0
      %p174 = por %p172, %p173
      %p175 = scmp.ne.s32.totalorder %s163, %s164
      %p176 = scmp.eq.s32.totalorder %s30, 1
      %p177 = por %p175, %p176
      %p179 = scmp.ne.s32.totalorder %s164, %s178
      %p180 = scmp.eq.s32.totalorder %s30, 0
      %p181 = por %p179, %p180
      %s183 = sadd.s32 %s182, 1
      %p186 = scmp.eq.s32.totalorder %s24, 1
      %p187 = scmp.ne.s32.totalorder %s182, %s184
      %p188 = scmp.eq.s32.totalorder %s24, 0
      %p189 = por %p187, %p188
      %p190 = scmp.ne.s32.totalorder %s182, %s184
      %p191 = scmp.eq.s32.totalorder %s29, 1
      %p192 = por %p190, %p191
      %p193 = scmp.ne.s32.totalorder %s184, %s185
      %p194 = scmp.eq.s32.totalorder %s29, 0
      %p195 = por %p193, %p194
      %p196 = scmp.ne.s32.totalorder %s184, %s185
      %p197 = scmp.eq.s32.totalorder %s30, 1
      %p198 = por %p196, %p197
      %p200 = scmp.ne.s32.totalorder %s185, %s199
      %p201 = scmp.eq.s32.totalorder %s30, 0
      %p202 = por %p200, %p201
      %s204 = sadd.s32 %s203, 1
      %p207 = scmp.eq.s32.totalorder %s24, 1
      %p208 = scmp.ne.s32.totalorder %s203, %s205
      %p209 = scmp.eq.s32.totalorder %s24, 0
      %p210 = por %p208, %p209
      %p211 = scmp.ne.s32.totalorder %s203, %s205
      %p212 = scmp.eq.s32.totalorder %s29, 1
      %p213 = por %p211, %p212
      %p214 = scmp.ne.s32.totalorder %s205, %s206
      %p215 = scmp.eq.s32.totalorder %s29, 0
      %p216 = por %p214, %p215
      %p217 = scmp.ne.s32.totalorder %s205, %s206
      %p218 = scmp.eq.s32.totalorder %s30, 1
      %p219 = por %p217, %p218
      %p221 = scmp.ne.s32.totalorder %s206, %s220
      %p222 = scmp.eq.s32.totalorder %s30, 0
      %p223 = por %p221, %p222
      %s225 = sadd.s32 %s224, 1
      %p228 = scmp.eq.s32.totalorder %s24, 1
      %p229 = scmp.ne.s32.totalorder %s224, %s226
      %p230 = scmp.eq.s32.totalorder %s24, 0
      %p231 = por %p229, %p230
      %p232 = scmp.ne.s32.totalorder %s224, %s226
      %p233 = scmp.eq.s32.totalorder %s29, 1
      %p234 = por %p232, %p233
      %p235 = scmp.ne.s32.totalorder %s226, %s227
      %p236 = scmp.eq.s32.totalorder %s29, 0
      %p237 = por %p235, %p236
      %p238 = scmp.ne.s32.totalorder %s226, %s227
      %p239 = scmp.eq.s32.totalorder %s30, 1
      %p240 = por %p238, %p239
      %p242 = scmp.ne.s32.totalorder %s227, %s241
      %p243 = scmp.eq.s32.totalorder %s30, 0
      %p244 = por %p242, %p243
      %s245 = ssub.s32 %s31, %s43
      %s246 = ssub.s32 %s32, %s39
      %s247 = sor.u32 %s245, %s246
      %p248 = scmp.eq.s32.totalorder %s247, 0
      %s250 = sadd.s32 %s249, 1
      %s251 = scalar_select %p248, %s249, %s250
      %p254 = pneg %p248
      %p255 = scmp.eq.s32.totalorder %s24, 1
      %p256 = por %p254, %p255
      %p257 = scmp.ne.s32.totalorder %s249, %s252
      %p258 = scmp.eq.s32.totalorder %s24, 0
      %p259 = por %p257, %p258
      %p260 = scmp.ne.s32.totalorder %s249, %s252
      %p261 = scmp.eq.s32.totalorder %s29, 1
      %p262 = por %p260, %p261
      %p263 = scmp.ne.s32.totalorder %s252, %s253
      %p264 = scmp.eq.s32.totalorder %s29, 0
      %p265 = por %p263, %p264
      %p266 = scmp.ne.s32.totalorder %s252, %s253
      %p267 = scmp.eq.s32.totalorder %s30, 1
      %p268 = por %p266, %p267
      %p270 = scmp.ne.s32.totalorder %s253, %s269
      %p271 = scmp.eq.s32.totalorder %s30, 0
      %p272 = por %p270, %p271
      %p273 = scmp.le.s32.totalorder 1, %s24
      %p274 = scmp.lt.s32.totalorder %s24, 3
      %p275 = pnand %p273, %p274
      %p276 = pneg %p275
      // Predicated region
      $region9: #{tpu_custom_call.1} parent=5 // pred_check
        _
      $region10: #{tpu_custom_call.1} parent=5 // pred_check_branch
        %278 = sbr.rel (%p275) target = $region12
      $region11: #{tpu_custom_call.1} parent=5 // pred_region
        %s279 = ssub.s32 %s24, 1
        // Predicated region
        $region13: #{tpu_custom_call.1} parent=11 // pred_check
          %p280 = pneg %p111
        $region14: #{tpu_custom_call.1} parent=11 // pred_check_branch
          %282 = sbr.rel (%p280) target = $region16
        $region15: #{tpu_custom_call.1} parent=11 // pred_region
          %s284 = ssub.s32 256, 256
          %285 = vsyncadd [#allocation6], %s284
          %s287 = sshll.u32 [#allocation7], 4
          %s288 = int_to_ptr.vmem [resolvable:$true] %s287
          %290 = dma.hbm_to_vmem [thread:$0]  %s2, 256, %s288, [#allocation6]
        $region16: #{tpu_custom_call.1} parent=11 // pred_fallthru
          _
        // Predicated region
        $region17: #{tpu_custom_call.1} parent=11 // pred_check
          %p291 = pneg %p132
        $region18: #{tpu_custom_call.1} parent=11 // pred_check_branch
          %293 = sbr.rel (%p291) target = $region20
        $region19: #{tpu_custom_call.1} parent=11 // pred_region
          _
        $region20: #{tpu_custom_call.1} parent=11 // pred_fallthru
          _
        // Predicated region
        $region21: #{tpu_custom_call.1} parent=11 // pred_check
          %p294 = pneg %p153
        $region22: #{tpu_custom_call.1} parent=11 // pred_check_branch
          %296 = sbr.rel (%p294) target = $region24
        $region23: #{tpu_custom_call.1} parent=11 // pred_region
          _
        $region24: #{tpu_custom_call.1} parent=11 // pred_fallthru
          _
        // Predicated region
        $region25: #{tpu_custom_call.1} parent=11 // pred_check
          %p297 = pneg %p174
        $region26: #{tpu_custom_call.1} parent=11 // pred_check_branch
          %299 = sbr.rel (%p297) target = $region28
        $region27: #{tpu_custom_call.1} parent=11 // pred_region
          _
        $region28: #{tpu_custom_call.1} parent=11 // pred_fallthru
          _
        // Predicated region
        $region29: #{tpu_custom_call.1} parent=11 // pred_check
          %p300 = pneg %p195
        $region30: #{tpu_custom_call.1} parent=11 // pred_check_branch
          %302 = sbr.rel (%p300) target = $region32
        $region31: #{tpu_custom_call.1} parent=11 // pred_region
          _
        $region32: #{tpu_custom_call.1} parent=11 // pred_fallthru
          _
        // Predicated region
        $region33: #{tpu_custom_call.1} parent=11 // pred_check
          %p303 = pneg %p216
        $region34: #{tpu_custom_call.1} parent=11 // pred_check_branch
          %305 = sbr.rel (%p303) target = $region36
        $region35: #{tpu_custom_call.1} parent=11 // pred_region
          _
        $region36: #{tpu_custom_call.1} parent=11 // pred_fallthru
          _
        // Predicated region
        $region37: #{tpu_custom_call.1} parent=11 // pred_check
          %p306 = pneg %p237
        $region38: #{tpu_custom_call.1} parent=11 // pred_check_branch
          %308 = sbr.rel (%p306) target = $region40
        $region39: #{tpu_custom_call.1} parent=11 // pred_region
          _
        $region40: #{tpu_custom_call.1} parent=11 // pred_fallthru
          _
      $region12: #{tpu_custom_call.1} parent=5 // pred_fallthru
        _
      %p309 = scmp.lt.s32.totalorder %s24, 2
      // Predicated region
      $region41: #{tpu_custom_call.1} parent=5 // pred_check
        %p310 = pneg %p309
      $region42: #{tpu_custom_call.1} parent=5 // pred_check_branch
        %312 = sbr.rel (%p310) target = $region44
      $region43: #{tpu_custom_call.1} parent=5 // pred_region
        // Predicated region
        $region45: #{tpu_custom_call.1} parent=43 // pred_check
          %p313 = pneg %p58
        $region46: #{tpu_custom_call.1} parent=43 // pred_check_branch
          %315 = sbr.rel (%p313) target = $region48
        $region47: #{tpu_custom_call.1} parent=43 // pred_region
          %s316 = sand.u32 %s48, 1
          %s317 = scalar_lea.sflag [#allocation3], %s316
          %s318 = sand.u32 %s48, 1
          %s319 = smul.addr %s318, 8
          %s320 = scalar_lea.vmem [#allocation2], %s319
          %s322 = ssub.s32 128, 128
          %323 = vsyncadd %s317, %s322
          %s324 = sadd.s32 %s32, %s31
          %s325 = smul.addr %s324, 128
          %s326 = scalar_lea.hbm %s0, %s325
          %s328 = sshll.u32 %s320, 4
          %s329 = int_to_ptr.vmem [resolvable:$true] %s328
          %331 = dma.hbm_to_vmem [thread:$0]  %s326, 128, %s329, %s317
        $region48: #{tpu_custom_call.1} parent=43 // pred_fallthru
          _
        // Predicated region
        $region49: #{tpu_custom_call.1} parent=43 // pred_check
          %p332 = pneg %p84
        $region50: #{tpu_custom_call.1} parent=43 // pred_check_branch
          %334 = sbr.rel (%p332) target = $region52
        $region51: #{tpu_custom_call.1} parent=43 // pred_region
          %s335 = sand.u32 %s24, 1
          %s336 = scalar_lea.sflag [#allocation6], %s335
          %s337 = sand.u32 %s74, 1
          %s338 = smul.addr %s337, 8
          %s339 = scalar_lea.vmem [#allocation5], %s338
          %s341 = ssub.s32 128, 128
          %342 = vsyncadd %s336, %s341
          %s343 = smul.addr %s31, 128
          %s344 = scalar_lea.hbm %s1, %s343
          %s346 = sshll.u32 %s339, 4
          %s347 = int_to_ptr.vmem [resolvable:$true] %s346
          %349 = dma.hbm_to_vmem [thread:$0]  %s344, 128, %s347, %s336
        $region52: #{tpu_custom_call.1} parent=43 // pred_fallthru
          _
      $region44: #{tpu_custom_call.1} parent=5 // pred_fallthru
        _
      %p350 = scmp.le.s32.totalorder 1, %s24
      %p351 = scmp.lt.s32.totalorder %s24, 3
      %p352 = pnand %p350, %p351
      %p353 = pneg %p352
      // Predicated region
      $region53: #{tpu_custom_call.1} parent=5 // pred_check
        _
      $region54: #{tpu_custom_call.1} parent=5 // pred_check_branch
        %355 = sbr.rel (%p352) target = $region56
      $region55: #{tpu_custom_call.1} parent=5 // pred_region
        %s356 = ssub.s32 %s24, 1
        %s357 = sand.u32 %s51, 1
        %s358 = scalar_lea.sflag [#allocation3], %s357
        %s359 = sand.u32 %s51, 1
        %s360 = smul.addr %s359, 8
        %s361 = scalar_lea.vmem [#allocation2], %s360
        // Predicated region
        $region57: #{tpu_custom_call.1} parent=55 // pred_check
          %p362 = pneg %p64
        $region58: #{tpu_custom_call.1} parent=55 // pred_check_branch
          %364 = sbr.rel (%p362) target = $region60
        $region59: #{tpu_custom_call.1} parent=55 // pred_region
          %365 = dma.done %s358, 128
        $region60: #{tpu_custom_call.1} parent=55 // pred_fallthru
          _
        %s366 = sand.u32 %s29, 1
        %s367 = scalar_lea.sflag [#allocation6], %s366
        %s368 = sand.u32 %s77, 1
        %s369 = smul.addr %s368, 8
        %s370 = scalar_lea.vmem [#allocation5], %s369
        // Predicated region
        $region61: #{tpu_custom_call.1} parent=55 // pred_check
          %p371 = pneg %p90
        $region62: #{tpu_custom_call.1} parent=55 // pred_check_branch
          %373 = sbr.rel (%p371) target = $region64
        $region63: #{tpu_custom_call.1} parent=55 // pred_region
          %374 = dma.done %s367, 128
        $region64: #{tpu_custom_call.1} parent=55 // pred_fallthru
          _
        // Predicated region
        $region65: #{tpu_custom_call.1} parent=55 // pred_check
          %p375 = pneg %p111
        $region66: #{tpu_custom_call.1} parent=55 // pred_check_branch
          %377 = sbr.rel (%p375) target = $region68
        $region67: #{tpu_custom_call.1} parent=55 // pred_region
          %378 = dma.done [#allocation6], 256
        $region68: #{tpu_custom_call.1} parent=55 // pred_fallthru
          _
        %s379 = sand.u32 %s51, 1
        %s380 = scalar_lea.sflag [#allocation3], %s379
        %s381 = sand.u32 %s51, 1
        %s382 = smul.addr %s381, 8
        %s383 = scalar_lea.vmem [#allocation2], %s382
        %p384 = pneg %p64
        %p385 = pneg %p61
        %s386 = sand.u32 %s29, 1
        %s387 = scalar_lea.sflag [#allocation6], %s386
        %s388 = sand.u32 %s77, 1
        %s389 = smul.addr %s388, 8
        %s390 = scalar_lea.vmem [#allocation5], %s389
        %p391 = pneg %p90
        %p392 = pneg %p87
        %p393 = pneg %p111
        %p394 = pneg %p108
        %p395 = pneg %p132
        %p396 = pneg %p129
        %p397 = pneg %p153
        %p398 = pneg %p150
        %p399 = pneg %p174
        %p400 = pneg %p171
        %p401 = pneg %p195
        %p402 = pneg %p192
        %p403 = pneg %p216
        %p404 = pneg %p213
        %p405 = pneg %p237
        %p406 = pneg %p234
        %p407 = pneg %p265
        %p408 = pneg %p262
        %s409 = sand.u32 %s252, 1
        %s410 = scalar_lea.sflag [#allocation4], %s409
        %s411 = sand.u32 %s252, 1
        %s412 = smul.addr %s411, 8
        %s413 = scalar_lea.vmem [#allocation8], %s412
        %v415 = vld [vmem:[%s361] sm:$0xff]
        %v416 = vld [vmem:[%s370] sm:$0xff]
        %v417 = vld [vmem:[#allocation7] sm:$0xff]
        %v418 = vld [vmem:[#allocation7 + $0x8] sm:$0xff]
        %vm419 = vcmask 523264
        %v420 = vsel %vm419, %v415, 0.0
        %421 = vadd.xlane.f32.xlu0 %v420
        %v422 = vpop.xlane.xlu0 %421
        %v423 = vrcp.pop 64.0
        %v424 = vmul.f32 %v422, %v423
        %v425 = vsub.f32 %v415, %v424
        %v426 = vmul.f32 %v425, %v425
        %v427 = vsel %vm419, %v426, 0.0
        %428 = vadd.xlane.f32.xlu0 %v427
        %v429 = vpop.xlane.xlu0 %428
        %v430 = vmul.f32 %v429, %v423
        %v431 = vadd.f32 %v430, 1e-05
        %v432 = vrsqrt.pop %v431
        %v433 = vmul.f32 %v425, %v432
        %v434 = vlaneseq
        %v435 = vshrl.u32 %v434, 7
        %v436 = vsub.s32 0, %v435
        %v437 = vrot.slane %v417, %v436
        %v438 = vmul.f32 %v433, %v437
        %v439 = vlaneseq
        %v440 = vshrl.u32 %v439, 7
        %v441 = vsub.s32 1, %v440
        %v442 = vrot.slane %v417, %v441
        %v443 = vadd.f32 %v438, %v442
        %v444 = vpack.c.bf16 %v443, %v443
        %v445 = vsel %vm419, %v416, 0.0
        %446 = vadd.xlane.f32.xlu0 %v445
        %v447 = vpop.xlane.xlu0 %446
        %v448 = vmul.f32 %v447, %v423
        %v449 = vsub.f32 %v416, %v448
        %v450 = vmul.f32 %v449, %v449
        %v451 = vsel %vm419, %v450, 0.0
        %452 = vadd.xlane.f32.xlu0 %v451
        %v453 = vpop.xlane.xlu0 %452
        %v454 = vmul.f32 %v453, %v423
        %v455 = vadd.f32 %v454, 1e-05
        %v456 = vrsqrt.pop %v455
        %v457 = vmul.f32 %v449, %v456
        %v458 = vmul.f32 %v457, %v437
        %v459 = vadd.f32 %v458, %v442
        %v460 = vpack.c.bf16 %v459, %v459
        %v461 = vld [vmem:[%s3] sm:$0xf]
        %v462 = vld [vmem:[%s3 + $0x4] sm:$0xf]
        %v463 = vld [vmem:[%s3 + $0x8] sm:$0xf]
        %v464 = vld [vmem:[%s3 + $0xc] sm:$0xf]
        %v465 = vld [vmem:[%s3 + $0x10] sm:$0xf]
        %v466 = vld [vmem:[%s3 + $0x14] sm:$0xf]
        %v467 = vld [vmem:[%s3 + $0x18] sm:$0xf]
        %v468 = vld [vmem:[%s3 + $0x1c] sm:$0xf]
        %v477 = vunpack.c.l.b16 %v461
        %v478 = vunpack.c.l.b16 %v462
        %v479 = vunpack.c.l.b16 %v463
        %v480 = vunpack.c.l.b16 %v464
        %v481 = vunpack.c.l.b16 %v465
        %v482 = vunpack.c.l.b16 %v466
        %v483 = vunpack.c.l.b16 %v467
        %v484 = vunpack.c.l.b16 %v468
        %v485 = vpack.c.b16 %v478, %v477
        %v486 = vpack.c.b16 %v480, %v479
        %v487 = vpack.c.b16 %v482, %v481
        %v488 = vpack.c.b16 %v484, %v483
        %v494 = vsel %vm419, %v444, 0
        %496 = vmatprep.subr.bf16.mxu0 0
        %497 = vmatpush1.bf16.msra.mxu0 %v485
        %498 = vmatprep.subr.bf16.mxu0 0
        %499 = vmatpush1.bf16.msra.mxu0 %v486
        %500 = vmatprep.subr.bf16.mxu0 0
        %501 = vmatpush1.bf16.msra.mxu0 %v487
        %502 = vmatprep.subr.bf16.mxu0 0
        %503 = vmatpush1.bf16.msra.mxu0 %v488
        %504 = vmatprep.subr.bf16.mxu0 0
        %505 = vmatpush1.bf16.msra.mxu0 0
        %506 = vmatprep.subr.bf16.mxu0 0
        %507 = vmatpush1.bf16.msra.mxu0 0
        %508 = vmatprep.subr.bf16.mxu0 0
        %509 = vmatpush1.bf16.msra.mxu0 0
        %510 = vmatprep.subr.bf16.mxu0 0
        %511 = vmatpush1.bf16.msra.mxu0 0
        %512 = vmatprep.subr.bf16.mxu0 0
        %513 = vmatpush1.bf16.msra.mxu0 0
        %514 = vmatprep.subr.bf16.mxu0 0
        %515 = vmatpush1.bf16.msra.mxu0 0
        %516 = vmatprep.subr.bf16.mxu0 0
        %517 = vmatpush1.bf16.msra.mxu0 0
        %518 = vmatprep.subr.bf16.mxu0 0
        %519 = vmatpush1.bf16.msra.mxu0 0
        %520 = vmatprep.subr.bf16.mxu0 0
        %521 = vmatpush1.bf16.msra.mxu0 0
        %522 = vmatprep.subr.bf16.mxu0 0
        %523 = vmatpush1.bf16.msra.mxu0 0
        %524 = vmatprep.subr.bf16.mxu0 0
        %525 = vmatpush1.bf16.msra.mxu0 0
        %526 = vmatprep.subr.bf16.mxu0 0
        %527 = vmatpush1.bf16.msra.mxu0 0
        %528 = vmatprep.mubr.bf16.mxu0 0
        %529 = vmatmul.mubr.bf16.gmra.mrb[0].mxu0 %v494
        %v530 = vpop.f32.mrb[0].mxu0
        %v531 = vadd.f32 0.0, %v530
        %v532 = vpop.f32.mrb[0].mxu0
        %v533 = vpop.f32.mrb[0].mxu0
        %v534 = vpop.f32.mrb[0].mxu0
        %535 = vdwg.mxu0
        %v536 = vld [vmem:[%s4] sm:$0xf]
        %v537 = vld [vmem:[%s4 + $0x4] sm:$0xf]
        %v538 = vld [vmem:[%s4 + $0x8] sm:$0xf]
        %v539 = vld [vmem:[%s4 + $0xc] sm:$0xf]
        %v540 = vld [vmem:[%s4 + $0x10] sm:$0xf]
        %v541 = vld [vmem:[%s4 + $0x14] sm:$0xf]
        %v542 = vld [vmem:[%s4 + $0x18] sm:$0xf]
        %v543 = vld [vmem:[%s4 + $0x1c] sm:$0xf]
        %v552 = vunpack.c.l.b16 %v536
        %v553 = vunpack.c.l.b16 %v537
        %v554 = vunpack.c.l.b16 %v538
        %v555 = vunpack.c.l.b16 %v539
        %v556 = vunpack.c.l.b16 %v540
        %v557 = vunpack.c.l.b16 %v541
        %v558 = vunpack.c.l.b16 %v542
        %v559 = vunpack.c.l.b16 %v543
        %v560 = vpack.c.b16 %v553, %v552
        %v561 = vpack.c.b16 %v555, %v554
        %v562 = vpack.c.b16 %v557, %v556
        %v563 = vpack.c.b16 %v559, %v558
        %v569 = vsel %vm419, %v460, 0
        %571 = vmatprep.subr.bf16.mxu0 0
        %572 = vmatpush1.bf16.msra.mxu0 %v560
        %573 = vmatprep.subr.bf16.mxu0 0
        %574 = vmatpush1.bf16.msra.mxu0 %v561
        %575 = vmatprep.subr.bf16.mxu0 0
        %576 = vmatpush1.bf16.msra.mxu0 %v562
        %577 = vmatprep.subr.bf16.mxu0 0
        %578 = vmatpush1.bf16.msra.mxu0 %v563
        %579 = vmatprep.subr.bf16.mxu0 0
        %580 = vmatpush1.bf16.msra.mxu0 0
        %581 = vmatprep.subr.bf16.mxu0 0
        %582 = vmatpush1.bf16.msra.mxu0 0
        %583 = vmatprep.subr.bf16.mxu0 0
        %584 = vmatpush1.bf16.msra.mxu0 0
        %585 = vmatprep.subr.bf16.mxu0 0
        %586 = vmatpush1.bf16.msra.mxu0 0
        %587 = vmatprep.subr.bf16.mxu0 0
        %588 = vmatpush1.bf16.msra.mxu0 0
        %589 = vmatprep.subr.bf16.mxu0 0
        %590 = vmatpush1.bf16.msra.mxu0 0
        %591 = vmatprep.subr.bf16.mxu0 0
        %592 = vmatpush1.bf16.msra.mxu0 0
        %593 = vmatprep.subr.bf16.mxu0 0
        %594 = vmatpush1.bf16.msra.mxu0 0
        %595 = vmatprep.subr.bf16.mxu0 0
        %596 = vmatpush1.bf16.msra.mxu0 0
        %597 = vmatprep.subr.bf16.mxu0 0
        %598 = vmatpush1.bf16.msra.mxu0 0
        %599 = vmatprep.subr.bf16.mxu0 0
        %600 = vmatpush1.bf16.msra.mxu0 0
        %601 = vmatprep.subr.bf16.mxu0 0
        %602 = vmatpush1.bf16.msra.mxu0 0
        %603 = vmatprep.mubr.bf16.mxu0 0
        %604 = vmatmul.mubr.bf16.gmra.mrb[0].mxu0 %v569
        %v605 = vpop.f32.mrb[0].mxu0
        %v606 = vadd.f32 0.0, %v605
        %v607 = vpop.f32.mrb[0].mxu0
        %v608 = vpop.f32.mrb[0].mxu0
        %v609 = vpop.f32.mrb[0].mxu0
        %610 = vdwg.mxu0
        %v611 = vld [vmem:[%s5] sm:$0xf]
        %v612 = vld [vmem:[%s5 + $0x4] sm:$0xf]
        %v613 = vld [vmem:[%s5 + $0x8] sm:$0xf]
        %v614 = vld [vmem:[%s5 + $0xc] sm:$0xf]
        %v615 = vld [vmem:[%s5 + $0x10] sm:$0xf]
        %v616 = vld [vmem:[%s5 + $0x14] sm:$0xf]
        %v617 = vld [vmem:[%s5 + $0x18] sm:$0xf]
        %v618 = vld [vmem:[%s5 + $0x1c] sm:$0xf]
        %v627 = vunpack.c.l.b16 %v611
        %v628 = vunpack.c.l.b16 %v612
        %v629 = vunpack.c.l.b16 %v613
        %v630 = vunpack.c.l.b16 %v614
        %v631 = vunpack.c.l.b16 %v615
        %v632 = vunpack.c.l.b16 %v616
        %v633 = vunpack.c.l.b16 %v617
        %v634 = vunpack.c.l.b16 %v618
        %v635 = vpack.c.b16 %v628, %v627
        %v636 = vpack.c.b16 %v630, %v629
        %v637 = vpack.c.b16 %v632, %v631
        %v638 = vpack.c.b16 %v634, %v633
        %643 = vmatprep.subr.bf16.mxu0 0
        %644 = vmatpush1.bf16.msra.mxu0 %v635
        %645 = vmatprep.subr.bf16.mxu0 0
        %646 = vmatpush1.bf16.msra.mxu0 %v636
        %647 = vmatprep.subr.bf16.mxu0 0
        %648 = vmatpush1.bf16.msra.mxu0 %v637
        %649 = vmatprep.subr.bf16.mxu0 0
        %650 = vmatpush1.bf16.msra.mxu0 %v638
        %651 = vmatprep.subr.bf16.mxu0 0
        %652 = vmatpush1.bf16.msra.mxu0 0
        %653 = vmatprep.subr.bf16.mxu0 0
        %654 = vmatpush1.bf16.msra.mxu0 0
        %655 = vmatprep.subr.bf16.mxu0 0
        %656 = vmatpush1.bf16.msra.mxu0 0
        %657 = vmatprep.subr.bf16.mxu0 0
        %658 = vmatpush1.bf16.msra.mxu0 0
        %659 = vmatprep.subr.bf16.mxu0 0
        %660 = vmatpush1.bf16.msra.mxu0 0
        %661 = vmatprep.subr.bf16.mxu0 0
        %662 = vmatpush1.bf16.msra.mxu0 0
        %663 = vmatprep.subr.bf16.mxu0 0
        %664 = vmatpush1.bf16.msra.mxu0 0
        %665 = vmatprep.subr.bf16.mxu0 0
        %666 = vmatpush1.bf16.msra.mxu0 0
        %667 = vmatprep.subr.bf16.mxu0 0
        %668 = vmatpush1.bf16.msra.mxu0 0
        %669 = vmatprep.subr.bf16.mxu0 0
        %670 = vmatpush1.bf16.msra.mxu0 0
        %671 = vmatprep.subr.bf16.mxu0 0
        %672 = vmatpush1.bf16.msra.mxu0 0
        %673 = vmatprep.subr.bf16.mxu0 0
        %674 = vmatpush1.bf16.msra.mxu0 0
        %675 = vmatprep.mubr.bf16.mxu0 0
        %676 = vmatmul.mubr.bf16.gmra.mrb[0].mxu0 %v569
        %v677 = vpop.f32.mrb[0].mxu0
        %v678 = vadd.f32 0.0, %v677
        %v679 = vpop.f32.mrb[0].mxu0
        %v680 = vpop.f32.mrb[0].mxu0
        %v681 = vpop.f32.mrb[0].mxu0
        %682 = vdwg.mxu0
        %684 = vrot.lane.b32.xlu0 %v531, 120
        %v685 = vpop.permute.xlu0 %684
        %687 = vrot.lane.b32.xlu0 %v531, 112
        %v688 = vpop.permute.xlu0 %687
        %690 = vrot.lane.b32.xlu0 %v531, 104
        %v691 = vpop.permute.xlu0 %690
        %693 = vrot.lane.b32.xlu0 %v531, 96
        %v694 = vpop.permute.xlu0 %693
        %696 = vrot.lane.b32.xlu0 %v531, 88
        %v697 = vpop.permute.xlu0 %696
        %699 = vrot.lane.b32.xlu0 %v531, 80
        %v700 = vpop.permute.xlu0 %699
        %702 = vrot.lane.b32.xlu0 %v531, 72
        %v703 = vpop.permute.xlu0 %702
        %v705 = vcombine.low %v531, %v688
        %v706 = vcombine.high %v531, %v688
        %v708 = vunpack.c.l.s4 1983009808
        %v709 = vunpack.c.0.s8 %v708
        %v710 = vlaneseq
        %v711 = vshrl.u32 %v710, 7
        %v712 = vsub.s32 %v709, %v711
        %v713 = vrot.slane %v705, %v712
        %v715 = vunpack.c.l.s4 1983009808
        %v716 = vunpack.c.0.s8 %v715
        %v717 = vlaneseq
        %v718 = vshrl.u32 %v717, 7
        %v719 = vsub.s32 %v716, %v718
        %v720 = vrot.slane %v706, %v719
        %v721 = vcombine.low %v685, %v691
        %v722 = vcombine.high %v685, %v691
        %v724 = vunpack.c.l.s4 1983009808
        %v725 = vunpack.c.0.s8 %v724
        %v726 = vlaneseq
        %v727 = vshrl.u32 %v726, 7
        %v728 = vsub.s32 %v725, %v727
        %v729 = vrot.slane %v721, %v728
        %v731 = vunpack.c.l.s4 1983009808
        %v732 = vunpack.c.0.s8 %v731
        %v733 = vlaneseq
        %v734 = vshrl.u32 %v733, 7
        %v735 = vsub.s32 %v732, %v734
        %v736 = vrot.slane %v722, %v735
        %v737 = vcombine.low %v694, %v700
        %v738 = vcombine.high %v694, %v700
        %v740 = vunpack.c.l.s4 1983009808
        %v741 = vunpack.c.0.s8 %v740
        %v742 = vlaneseq
        %v743 = vshrl.u32 %v742, 7
        %v744 = vsub.s32 %v741, %v743
        %v745 = vrot.slane %v737, %v744
        %v747 = vunpack.c.l.s4 1983009808
        %v748 = vunpack.c.0.s8 %v747
        %v749 = vlaneseq
        %v750 = vshrl.u32 %v749, 7
        %v751 = vsub.s32 %v748, %v750
        %v752 = vrot.slane %v738, %v751
        %v753 = vcombine.low %v697, %v703
        %v754 = vcombine.high %v697, %v703
        %v756 = vunpack.c.l.s4 1983009808
        %v757 = vunpack.c.0.s8 %v756
        %v758 = vlaneseq
        %v759 = vshrl.u32 %v758, 7
        %v760 = vsub.s32 %v757, %v759
        %v761 = vrot.slane %v753, %v760
        %v763 = vunpack.c.l.s4 1983009808
        %v764 = vunpack.c.0.s8 %v763
        %v765 = vlaneseq
        %v766 = vshrl.u32 %v765, 7
        %v767 = vsub.s32 %v764, %v766
        %v768 = vrot.slane %v754, %v767
        %v769 = vcombine.low %v713, %v729
        %v770 = vcombine.high %v713, %v729
        %v772 = vunpack.c.l.s4 1934713408
        %v773 = vunpack.c.0.s8 %v772
        %v774 = vlaneseq
        %v775 = vshrl.u32 %v774, 7
        %v776 = vsub.s32 %v773, %v775
        %v777 = vrot.slane %v769, %v776
        %v779 = vunpack.c.l.s4 1934713408
        %v780 = vunpack.c.0.s8 %v779
        %v781 = vlaneseq
        %v782 = vshrl.u32 %v781, 7
        %v783 = vsub.s32 %v780, %v782
        %v784 = vrot.slane %v770, %v783
        %v785 = vcombine.low %v720, %v736
        %v786 = vcombine.high %v720, %v736
        %v788 = vunpack.c.l.s4 1934713408
        %v789 = vunpack.c.0.s8 %v788
        %v790 = vlaneseq
        %v791 = vshrl.u32 %v790, 7
        %v792 = vsub.s32 %v789, %v791
        %v793 = vrot.slane %v785, %v792
        %v795 = vunpack.c.l.s4 1934713408
        %v796 = vunpack.c.0.s8 %v795
        %v797 = vlaneseq
        %v798 = vshrl.u32 %v797, 7
        %v799 = vsub.s32 %v796, %v798
        %v800 = vrot.slane %v786, %v799
        %v801 = vcombine.low %v745, %v761
        %v802 = vcombine.high %v745, %v761
        %v804 = vunpack.c.l.s4 1934713408
        %v805 = vunpack.c.0.s8 %v804
        %v806 = vlaneseq
        %v807 = vshrl.u32 %v806, 7
        %v808 = vsub.s32 %v805, %v807
        %v809 = vrot.slane %v801, %v808
        %v811 = vunpack.c.l.s4 1934713408
        %v812 = vunpack.c.0.s8 %v811
        %v813 = vlaneseq
        %v814 = vshrl.u32 %v813, 7
        %v815 = vsub.s32 %v812, %v814
        %v816 = vrot.slane %v802, %v815
        %v817 = vcombine.low %v752, %v768
        %v818 = vcombine.high %v752, %v768
        %v820 = vunpack.c.l.s4 1934713408
        %v821 = vunpack.c.0.s8 %v820
        %v822 = vlaneseq
        %v823 = vshrl.u32 %v822, 7
        %v824 = vsub.s32 %v821, %v823
        %v825 = vrot.slane %v817, %v824
        %v827 = vunpack.c.l.s4 1934713408
        %v828 = vunpack.c.0.s8 %v827
        %v829 = vlaneseq
        %v830 = vshrl.u32 %v829, 7
        %v831 = vsub.s32 %v828, %v830
        %v832 = vrot.slane %v818, %v831
        %v833 = vcombine.low %v777, %v809
        %v834 = vcombine.high %v777, %v809
        %v835 = vcombine.low %v784, %v816
        %v836 = vcombine.high %v784, %v816
        %v837 = vcombine.low %v793, %v825
        %v838 = vcombine.high %v793, %v825
        %v839 = vcombine.low %v800, %v832
        %v840 = vcombine.high %v800, %v832
        %v841 = vcombine.low %v833, %v835
        %v842 = vcombine.high %v833, %v835
        %v844 = vunpack.c.l.s4 1983009808
        %v845 = vunpack.c.0.s8 %v844
        %v846 = vlaneseq
        %v847 = vshrl.u32 %v846, 7
        %v848 = vsub.s32 %v845, %v847
        %v849 = vrot.slane %v841, %v848
        %v851 = vunpack.c.l.s4 1983009808
        %v852 = vunpack.c.0.s8 %v851
        %v853 = vlaneseq
        %v854 = vshrl.u32 %v853, 7
        %v855 = vsub.s32 %v852, %v854
        %v856 = vrot.slane %v842, %v855
        %v857 = vcombine.low %v834, %v836
        %v858 = vcombine.high %v834, %v836
        %v860 = vunpack.c.l.s4 1983009808
        %v861 = vunpack.c.0.s8 %v860
        %v862 = vlaneseq
        %v863 = vshrl.u32 %v862, 7
        %v864 = vsub.s32 %v861, %v863
        %v865 = vrot.slane %v857, %v864
        %v867 = vunpack.c.l.s4 1983009808
        %v868 = vunpack.c.0.s8 %v867
        %v869 = vlaneseq
        %v870 = vshrl.u32 %v869, 7
        %v871 = vsub.s32 %v868, %v870
        %v872 = vrot.slane %v858, %v871
        %v873 = vcombine.low %v837, %v839
        %v874 = vcombine.high %v837, %v839
        %v876 = vunpack.c.l.s4 1983009808
        %v877 = vunpack.c.0.s8 %v876
        %v878 = vlaneseq
        %v879 = vshrl.u32 %v878, 7
        %v880 = vsub.s32 %v877, %v879
        %v881 = vrot.slane %v873, %v880
        %v883 = vunpack.c.l.s4 1983009808
        %v884 = vunpack.c.0.s8 %v883
        %v885 = vlaneseq
        %v886 = vshrl.u32 %v885, 7
        %v887 = vsub.s32 %v884, %v886
        %v888 = vrot.slane %v874, %v887
        %v889 = vcombine.low %v838, %v840
        %v890 = vcombine.high %v838, %v840
        %v892 = vunpack.c.l.s4 1983009808
        %v893 = vunpack.c.0.s8 %v892
        %v894 = vlaneseq
        %v895 = vshrl.u32 %v894, 7
        %v896 = vsub.s32 %v893, %v895
        %v897 = vrot.slane %v889, %v896
        %v899 = vunpack.c.l.s4 1983009808
        %v900 = vunpack.c.0.s8 %v899
        %v901 = vlaneseq
        %v902 = vshrl.u32 %v901, 7
        %v903 = vsub.s32 %v900, %v902
        %v904 = vrot.slane %v890, %v903
        %v905 = vcombine.low %v849, %v865
        %v906 = vcombine.high %v849, %v865
        %v908 = vunpack.c.l.s4 1934713408
        %v909 = vunpack.c.0.s8 %v908
        %v910 = vlaneseq
        %v911 = vshrl.u32 %v910, 7
        %v912 = vsub.s32 %v909, %v911
        %v913 = vrot.slane %v905, %v912
        %v915 = vunpack.c.l.s4 1934713408
        %v916 = vunpack.c.0.s8 %v915
        %v917 = vlaneseq
        %v918 = vshrl.u32 %v917, 7
        %v919 = vsub.s32 %v916, %v918
        %v920 = vrot.slane %v906, %v919
        %v921 = vcombine.low %v856, %v872
        %v922 = vcombine.high %v856, %v872
        %v924 = vunpack.c.l.s4 1934713408
        %v925 = vunpack.c.0.s8 %v924
        %v926 = vlaneseq
        %v927 = vshrl.u32 %v926, 7
        %v928 = vsub.s32 %v925, %v927
        %v929 = vrot.slane %v921, %v928
        %v931 = vunpack.c.l.s4 1934713408
        %v932 = vunpack.c.0.s8 %v931
        %v933 = vlaneseq
        %v934 = vshrl.u32 %v933, 7
        %v935 = vsub.s32 %v932, %v934
        %v936 = vrot.slane %v922, %v935
        %v937 = vcombine.low %v881, %v897
        %v938 = vcombine.high %v881, %v897
        %v940 = vunpack.c.l.s4 1934713408
        %v941 = vunpack.c.0.s8 %v940
        %v942 = vlaneseq
        %v943 = vshrl.u32 %v942, 7
        %v944 = vsub.s32 %v941, %v943
        %v945 = vrot.slane %v937, %v944
        %v947 = vunpack.c.l.s4 1934713408
        %v948 = vunpack.c.0.s8 %v947
        %v949 = vlaneseq
        %v950 = vshrl.u32 %v949, 7
        %v951 = vsub.s32 %v948, %v950
        %v952 = vrot.slane %v938, %v951
        %v953 = vcombine.low %v888, %v904
        %v954 = vcombine.high %v888, %v904
        %v956 = vunpack.c.l.s4 1934713408
        %v957 = vunpack.c.0.s8 %v956
        %v958 = vlaneseq
        %v959 = vshrl.u32 %v958, 7
        %v960 = vsub.s32 %v957, %v959
        %v961 = vrot.slane %v953, %v960
        %v963 = vunpack.c.l.s4 1934713408
        %v964 = vunpack.c.0.s8 %v963
        %v965 = vlaneseq
        %v966 = vshrl.u32 %v965, 7
        %v967 = vsub.s32 %v964, %v966
        %v968 = vrot.slane %v954, %v967
        %v969 = vcombine.low %v913, %v945
        %v970 = vcombine.high %v913, %v945
        %v971 = vcombine.low %v920, %v952
        %v972 = vcombine.high %v920, %v952
        %v973 = vcombine.low %v929, %v961
        %v974 = vcombine.high %v929, %v961
        %v975 = vcombine.low %v936, %v968
        %v976 = vcombine.high %v936, %v968
        %v977 = vpack.c.bf16 %v969, %v969
        %v978 = vpack.c.bf16 %v970, %v970
        %v979 = vpack.c.bf16 %v971, %v971
        %v980 = vpack.c.bf16 %v972, %v972
        %v981 = vpack.c.bf16 %v973, %v973
        %v982 = vpack.c.bf16 %v974, %v974
        %v983 = vpack.c.bf16 %v975, %v975
        %v984 = vpack.c.bf16 %v976, %v976
        %986 = vrot.lane.b32.xlu0 %v606, 120
        %v987 = vpop.permute.xlu0 %986
        %989 = vrot.lane.b32.xlu0 %v606, 112
        %v990 = vpop.permute.xlu0 %989
        %992 = vrot.lane.b32.xlu0 %v606, 104
        %v993 = vpop.permute.xlu0 %992
        %995 = vrot.lane.b32.xlu0 %v606, 96
        %v996 = vpop.permute.xlu0 %995
        %998 = vrot.lane.b32.xlu0 %v606, 88
        %v999 = vpop.permute.xlu0 %998
        %1001 = vrot.lane.b32.xlu0 %v606, 80
        %v1002 = vpop.permute.xlu0 %1001
        %1004 = vrot.lane.b32.xlu0 %v606, 72
        %v1005 = vpop.permute.xlu0 %1004
        %v1007 = vcombine.low %v606, %v990
        %v1008 = vcombine.high %v606, %v990
        %v1010 = vunpack.c.l.s4 1983009808
        %v1011 = vunpack.c.0.s8 %v1010
        %v1012 = vlaneseq
        %v1013 = vshrl.u32 %v1012, 7
        %v1014 = vsub.s32 %v1011, %v1013
        %v1015 = vrot.slane %v1007, %v1014
        %v1017 = vunpack.c.l.s4 1983009808
        %v1018 = vunpack.c.0.s8 %v1017
        %v1019 = vlaneseq
        %v1020 = vshrl.u32 %v1019, 7
        %v1021 = vsub.s32 %v1018, %v1020
        %v1022 = vrot.slane %v1008, %v1021
        %v1023 = vcombine.low %v987, %v993
        %v1024 = vcombine.high %v987, %v993
        %v1026 = vunpack.c.l.s4 1983009808
        %v1027 = vunpack.c.0.s8 %v1026
        %v1028 = vlaneseq
        %v1029 = vshrl.u32 %v1028, 7
        %v1030 = vsub.s32 %v1027, %v1029
        %v1031 = vrot.slane %v1023, %v1030
        %v1033 = vunpack.c.l.s4 1983009808
        %v1034 = vunpack.c.0.s8 %v1033
        %v1035 = vlaneseq
        %v1036 = vshrl.u32 %v1035, 7
        %v1037 = vsub.s32 %v1034, %v1036
        %v1038 = vrot.slane %v1024, %v1037
        %v1039 = vcombine.low %v996, %v1002
        %v1040 = vcombine.high %v996, %v1002
        %v1042 = vunpack.c.l.s4 1983009808
        %v1043 = vunpack.c.0.s8 %v1042
        %v1044 = vlaneseq
        %v1045 = vshrl.u32 %v1044, 7
        %v1046 = vsub.s32 %v1043, %v1045
        %v1047 = vrot.slane %v1039, %v1046
        %v1049 = vunpack.c.l.s4 1983009808
        %v1050 = vunpack.c.0.s8 %v1049
        %v1051 = vlaneseq
        %v1052 = vshrl.u32 %v1051, 7
        %v1053 = vsub.s32 %v1050, %v1052
        %v1054 = vrot.slane %v1040, %v1053
        %v1055 = vcombine.low %v999, %v1005
        %v1056 = vcombine.high %v999, %v1005
        %v1058 = vunpack.c.l.s4 1983009808
        %v1059 = vunpack.c.0.s8 %v1058
        %v1060 = vlaneseq
        %v1061 = vshrl.u32 %v1060, 7
        %v1062 = vsub.s32 %v1059, %v1061
        %v1063 = vrot.slane %v1055, %v1062
        %v1065 = vunpack.c.l.s4 1983009808
        %v1066 = vunpack.c.0.s8 %v1065
        %v1067 = vlaneseq
        %v1068 = vshrl.u32 %v1067, 7
        %v1069 = vsub.s32 %v1066, %v1068
        %v1070 = vrot.slane %v1056, %v1069
        %v1071 = vcombine.low %v1015, %v1031
        %v1072 = vcombine.high %v1015, %v1031
        %v1074 = vunpack.c.l.s4 1934713408
        %v1075 = vunpack.c.0.s8 %v1074
        %v1076 = vlaneseq
        %v1077 = vshrl.u32 %v1076, 7
        %v1078 = vsub.s32 %v1075, %v1077
        %v1079 = vrot.slane %v1071, %v1078
        %v1081 = vunpack.c.l.s4 1934713408
        %v1082 = vunpack.c.0.s8 %v1081
        %v1083 = vlaneseq
        %v1084 = vshrl.u32 %v1083, 7
        %v1085 = vsub.s32 %v1082, %v1084
        %v1086 = vrot.slane %v1072, %v1085
        %v1087 = vcombine.low %v1022, %v1038
        %v1088 = vcombine.high %v1022, %v1038
        %v1090 = vunpack.c.l.s4 1934713408
        %v1091 = vunpack.c.0.s8 %v1090
        %v1092 = vlaneseq
        %v1093 = vshrl.u32 %v1092, 7
        %v1094 = vsub.s32 %v1091, %v1093
        %v1095 = vrot.slane %v1087, %v1094
        %v1097 = vunpack.c.l.s4 1934713408
        %v1098 = vunpack.c.0.s8 %v1097
        %v1099 = vlaneseq
        %v1100 = vshrl.u32 %v1099, 7
        %v1101 = vsub.s32 %v1098, %v1100
        %v1102 = vrot.slane %v1088, %v1101
        %v1103 = vcombine.low %v1047, %v1063
        %v1104 = vcombine.high %v1047, %v1063
        %v1106 = vunpack.c.l.s4 1934713408
        %v1107 = vunpack.c.0.s8 %v1106
        %v1108 = vlaneseq
        %v1109 = vshrl.u32 %v1108, 7
        %v1110 = vsub.s32 %v1107, %v1109
        %v1111 = vrot.slane %v1103, %v1110
        %v1113 = vunpack.c.l.s4 1934713408
        %v1114 = vunpack.c.0.s8 %v1113
        %v1115 = vlaneseq
        %v1116 = vshrl.u32 %v1115, 7
        %v1117 = vsub.s32 %v1114, %v1116
        %v1118 = vrot.slane %v1104, %v1117
        %v1119 = vcombine.low %v1054, %v1070
        %v1120 = vcombine.high %v1054, %v1070
        %v1122 = vunpack.c.l.s4 1934713408
        %v1123 = vunpack.c.0.s8 %v1122
        %v1124 = vlaneseq
        %v1125 = vshrl.u32 %v1124, 7
        %v1126 = vsub.s32 %v1123, %v1125
        %v1127 = vrot.slane %v1119, %v1126
        %v1129 = vunpack.c.l.s4 1934713408
        %v1130 = vunpack.c.0.s8 %v1129
        %v1131 = vlaneseq
        %v1132 = vshrl.u32 %v1131, 7
        %v1133 = vsub.s32 %v1130, %v1132
        %v1134 = vrot.slane %v1120, %v1133
        %v1135 = vcombine.low %v1079, %v1111
        %v1136 = vcombine.high %v1079, %v1111
        %v1137 = vcombine.low %v1086, %v1118
        %v1138 = vcombine.high %v1086, %v1118
        %v1139 = vcombine.low %v1095, %v1127
        %v1140 = vcombine.high %v1095, %v1127
        %v1141 = vcombine.low %v1102, %v1134
        %v1142 = vcombine.high %v1102, %v1134
        %v1143 = vcombine.low %v1135, %v1137
        %v1144 = vcombine.high %v1135, %v1137
        %v1146 = vunpack.c.l.s4 1983009808
        %v1147 = vunpack.c.0.s8 %v1146
        %v1148 = vlaneseq
        %v1149 = vshrl.u32 %v1148, 7
        %v1150 = vsub.s32 %v1147, %v1149
        %v1151 = vrot.slane %v1143, %v1150
        %v1153 = vunpack.c.l.s4 1983009808
        %v1154 = vunpack.c.0.s8 %v1153
        %v1155 = vlaneseq
        %v1156 = vshrl.u32 %v1155, 7
        %v1157 = vsub.s32 %v1154, %v1156
        %v1158 = vrot.slane %v1144, %v1157
        %v1159 = vcombine.low %v1136, %v1138
        %v1160 = vcombine.high %v1136, %v1138
        %v1162 = vunpack.c.l.s4 1983009808
        %v1163 = vunpack.c.0.s8 %v1162
        %v1164 = vlaneseq
        %v1165 = vshrl.u32 %v1164, 7
        %v1166 = vsub.s32 %v1163, %v1165
        %v1167 = vrot.slane %v1159, %v1166
        %v1169 = vunpack.c.l.s4 1983009808
        %v1170 = vunpack.c.0.s8 %v1169
        %v1171 = vlaneseq
        %v1172 = vshrl.u32 %v1171, 7
        %v1173 = vsub.s32 %v1170, %v1172
        %v1174 = vrot.slane %v1160, %v1173
        %v1175 = vcombine.low %v1139, %v1141
        %v1176 = vcombine.high %v1139, %v1141
        %v1178 = vunpack.c.l.s4 1983009808
        %v1179 = vunpack.c.0.s8 %v1178
        %v1180 = vlaneseq
        %v1181 = vshrl.u32 %v1180, 7
        %v1182 = vsub.s32 %v1179, %v1181
        %v1183 = vrot.slane %v1175, %v1182
        %v1185 = vunpack.c.l.s4 1983009808
        %v1186 = vunpack.c.0.s8 %v1185
        %v1187 = vlaneseq
        %v1188 = vshrl.u32 %v1187, 7
        %v1189 = vsub.s32 %v1186, %v1188
        %v1190 = vrot.slane %v1176, %v1189
        %v1191 = vcombine.low %v1140, %v1142
        %v1192 = vcombine.high %v1140, %v1142
        %v1194 = vunpack.c.l.s4 1983009808
        %v1195 = vunpack.c.0.s8 %v1194
        %v1196 = vlaneseq
        %v1197 = vshrl.u32 %v1196, 7
        %v1198 = vsub.s32 %v1195, %v1197
        %v1199 = vrot.slane %v1191, %v1198
        %v1201 = vunpack.c.l.s4 1983009808
        %v1202 = vunpack.c.0.s8 %v1201
        %v1203 = vlaneseq
        %v1204 = vshrl.u32 %v1203, 7
        %v1205 = vsub.s32 %v1202, %v1204
        %v1206 = vrot.slane %v1192, %v1205
        %v1207 = vcombine.low %v1151, %v1167
        %v1208 = vcombine.high %v1151, %v1167
        %v1210 = vunpack.c.l.s4 1934713408
        %v1211 = vunpack.c.0.s8 %v1210
        %v1212 = vlaneseq
        %v1213 = vshrl.u32 %v1212, 7
        %v1214 = vsub.s32 %v1211, %v1213
        %v1215 = vrot.slane %v1207, %v1214
        %v1217 = vunpack.c.l.s4 1934713408
        %v1218 = vunpack.c.0.s8 %v1217
        %v1219 = vlaneseq
        %v1220 = vshrl.u32 %v1219, 7
        %v1221 = vsub.s32 %v1218, %v1220
        %v1222 = vrot.slane %v1208, %v1221
        %v1223 = vcombine.low %v1158, %v1174
        %v1224 = vcombine.high %v1158, %v1174
        %v1226 = vunpack.c.l.s4 1934713408
        %v1227 = vunpack.c.0.s8 %v1226
        %v1228 = vlaneseq
        %v1229 = vshrl.u32 %v1228, 7
        %v1230 = vsub.s32 %v1227, %v1229
        %v1231 = vrot.slane %v1223, %v1230
        %v1233 = vunpack.c.l.s4 1934713408
        %v1234 = vunpack.c.0.s8 %v1233
        %v1235 = vlaneseq
        %v1236 = vshrl.u32 %v1235, 7
        %v1237 = vsub.s32 %v1234, %v1236
        %v1238 = vrot.slane %v1224, %v1237
        %v1239 = vcombine.low %v1183, %v1199
        %v1240 = vcombine.high %v1183, %v1199
        %v1242 = vunpack.c.l.s4 1934713408
        %v1243 = vunpack.c.0.s8 %v1242
        %v1244 = vlaneseq
        %v1245 = vshrl.u32 %v1244, 7
        %v1246 = vsub.s32 %v1243, %v1245
        %v1247 = vrot.slane %v1239, %v1246
        %v1249 = vunpack.c.l.s4 1934713408
        %v1250 = vunpack.c.0.s8 %v1249
        %v1251 = vlaneseq
        %v1252 = vshrl.u32 %v1251, 7
        %v1253 = vsub.s32 %v1250, %v1252
        %v1254 = vrot.slane %v1240, %v1253
        %v1255 = vcombine.low %v1190, %v1206
        %v1256 = vcombine.high %v1190, %v1206
        %v1258 = vunpack.c.l.s4 1934713408
        %v1259 = vunpack.c.0.s8 %v1258
        %v1260 = vlaneseq
        %v1261 = vshrl.u32 %v1260, 7
        %v1262 = vsub.s32 %v1259, %v1261
        %v1263 = vrot.slane %v1255, %v1262
        %v1265 = vunpack.c.l.s4 1934713408
        %v1266 = vunpack.c.0.s8 %v1265
        %v1267 = vlaneseq
        %v1268 = vshrl.u32 %v1267, 7
        %v1269 = vsub.s32 %v1266, %v1268
        %v1270 = vrot.slane %v1256, %v1269
        %v1271 = vcombine.low %v1215, %v1247
        %v1272 = vcombine.high %v1215, %v1247
        %v1273 = vcombine.low %v1222, %v1254
        %v1274 = vcombine.high %v1222, %v1254
        %v1275 = vcombine.low %v1231, %v1263
        %v1276 = vcombine.high %v1231, %v1263
        %v1277 = vcombine.low %v1238, %v1270
        %v1278 = vcombine.high %v1238, %v1270
        %v1279 = vpack.c.bf16 %v1271, %v1271
        %v1280 = vpack.c.bf16 %v1272, %v1272
        %v1281 = vpack.c.bf16 %v1273, %v1273
        %v1282 = vpack.c.bf16 %v1274, %v1274
        %v1283 = vpack.c.bf16 %v1275, %v1275
        %v1284 = vpack.c.bf16 %v1276, %v1276
        %v1285 = vpack.c.bf16 %v1277, %v1277
        %v1286 = vpack.c.bf16 %v1278, %v1278
        %1288 = vrot.lane.b32.xlu0 %v678, 120
        %v1289 = vpop.permute.xlu0 %1288
        %1291 = vrot.lane.b32.xlu0 %v678, 112
        %v1292 = vpop.permute.xlu0 %1291
        %1294 = vrot.lane.b32.xlu0 %v678, 104
        %v1295 = vpop.permute.xlu0 %1294
        %1297 = vrot.lane.b32.xlu0 %v678, 96
        %v1298 = vpop.permute.xlu0 %1297
        %1300 = vrot.lane.b32.xlu0 %v678, 88
        %v1301 = vpop.permute.xlu0 %1300
        %1303 = vrot.lane.b32.xlu0 %v678, 80
        %v1304 = vpop.permute.xlu0 %1303
        %1306 = vrot.lane.b32.xlu0 %v678, 72
        %v1307 = vpop.permute.xlu0 %1306
        %v1309 = vcombine.low %v678, %v1292
        %v1310 = vcombine.high %v678, %v1292
        %v1312 = vunpack.c.l.s4 1983009808
        %v1313 = vunpack.c.0.s8 %v1312
        %v1314 = vlaneseq
        %v1315 = vshrl.u32 %v1314, 7
        %v1316 = vsub.s32 %v1313, %v1315
        %v1317 = vrot.slane %v1309, %v1316
        %v1319 = vunpack.c.l.s4 1983009808
        %v1320 = vunpack.c.0.s8 %v1319
        %v1321 = vlaneseq
        %v1322 = vshrl.u32 %v1321, 7
        %v1323 = vsub.s32 %v1320, %v1322
        %v1324 = vrot.slane %v1310, %v1323
        %v1325 = vcombine.low %v1289, %v1295
        %v1326 = vcombine.high %v1289, %v1295
        %v1328 = vunpack.c.l.s4 1983009808
        %v1329 = vunpack.c.0.s8 %v1328
        %v1330 = vlaneseq
        %v1331 = vshrl.u32 %v1330, 7
        %v1332 = vsub.s32 %v1329, %v1331
        %v1333 = vrot.slane %v1325, %v1332
        %v1335 = vunpack.c.l.s4 1983009808
        %v1336 = vunpack.c.0.s8 %v1335
        %v1337 = vlaneseq
        %v1338 = vshrl.u32 %v1337, 7
        %v1339 = vsub.s32 %v1336, %v1338
        %v1340 = vrot.slane %v1326, %v1339
        %v1341 = vcombine.low %v1298, %v1304
        %v1342 = vcombine.high %v1298, %v1304
        %v1344 = vunpack.c.l.s4 1983009808
        %v1345 = vunpack.c.0.s8 %v1344
        %v1346 = vlaneseq
        %v1347 = vshrl.u32 %v1346, 7
        %v1348 = vsub.s32 %v1345, %v1347
        %v1349 = vrot.slane %v1341, %v1348
        %v1351 = vunpack.c.l.s4 1983009808
        %v1352 = vunpack.c.0.s8 %v1351
        %v1353 = vlaneseq
        %v1354 = vshrl.u32 %v1353, 7
        %v1355 = vsub.s32 %v1352, %v1354
        %v1356 = vrot.slane %v1342, %v1355
        %v1357 = vcombine.low %v1301, %v1307
        %v1358 = vcombine.high %v1301, %v1307
        %v1360 = vunpack.c.l.s4 1983009808
        %v1361 = vunpack.c.0.s8 %v1360
        %v1362 = vlaneseq
        %v1363 = vshrl.u32 %v1362, 7
        %v1364 = vsub.s32 %v1361, %v1363
        %v1365 = vrot.slane %v1357, %v1364
        %v1367 = vunpack.c.l.s4 1983009808
        %v1368 = vunpack.c.0.s8 %v1367
        %v1369 = vlaneseq
        %v1370 = vshrl.u32 %v1369, 7
        %v1371 = vsub.s32 %v1368, %v1370
        %v1372 = vrot.slane %v1358, %v1371
        %v1373 = vcombine.low %v1317, %v1333
        %v1374 = vcombine.high %v1317, %v1333
        %v1376 = vunpack.c.l.s4 1934713408
        %v1377 = vunpack.c.0.s8 %v1376
        %v1378 = vlaneseq
        %v1379 = vshrl.u32 %v1378, 7
        %v1380 = vsub.s32 %v1377, %v1379
        %v1381 = vrot.slane %v1373, %v1380
        %v1383 = vunpack.c.l.s4 1934713408
        %v1384 = vunpack.c.0.s8 %v1383
        %v1385 = vlaneseq
        %v1386 = vshrl.u32 %v1385, 7
        %v1387 = vsub.s32 %v1384, %v1386
        %v1388 = vrot.slane %v1374, %v1387
        %v1389 = vcombine.low %v1324, %v1340
        %v1390 = vcombine.high %v1324, %v1340
        %v1392 = vunpack.c.l.s4 1934713408
        %v1393 = vunpack.c.0.s8 %v1392
        %v1394 = vlaneseq
        %v1395 = vshrl.u32 %v1394, 7
        %v1396 = vsub.s32 %v1393, %v1395
        %v1397 = vrot.slane %v1389, %v1396
        %v1399 = vunpack.c.l.s4 1934713408
        %v1400 = vunpack.c.0.s8 %v1399
        %v1401 = vlaneseq
        %v1402 = vshrl.u32 %v1401, 7
        %v1403 = vsub.s32 %v1400, %v1402
        %v1404 = vrot.slane %v1390, %v1403
        %v1405 = vcombine.low %v1349, %v1365
        %v1406 = vcombine.high %v1349, %v1365
        %v1408 = vunpack.c.l.s4 1934713408
        %v1409 = vunpack.c.0.s8 %v1408
        %v1410 = vlaneseq
        %v1411 = vshrl.u32 %v1410, 7
        %v1412 = vsub.s32 %v1409, %v1411
        %v1413 = vrot.slane %v1405, %v1412
        %v1415 = vunpack.c.l.s4 1934713408
        %v1416 = vunpack.c.0.s8 %v1415
        %v1417 = vlaneseq
        %v1418 = vshrl.u32 %v1417, 7
        %v1419 = vsub.s32 %v1416, %v1418
        %v1420 = vrot.slane %v1406, %v1419
        %v1421 = vcombine.low %v1356, %v1372
        %v1422 = vcombine.high %v1356, %v1372
        %v1424 = vunpack.c.l.s4 1934713408
        %v1425 = vunpack.c.0.s8 %v1424
        %v1426 = vlaneseq
        %v1427 = vshrl.u32 %v1426, 7
        %v1428 = vsub.s32 %v1425, %v1427
        %v1429 = vrot.slane %v1421, %v1428
        %v1431 = vunpack.c.l.s4 1934713408
        %v1432 = vunpack.c.0.s8 %v1431
        %v1433 = vlaneseq
        %v1434 = vshrl.u32 %v1433, 7
        %v1435 = vsub.s32 %v1432, %v1434
        %v1436 = vrot.slane %v1422, %v1435
        %v1437 = vcombine.low %v1381, %v1413
        %v1438 = vcombine.high %v1381, %v1413
        %v1439 = vcombine.low %v1388, %v1420
        %v1440 = vcombine.high %v1388, %v1420
        %v1441 = vcombine.low %v1397, %v1429
        %v1442 = vcombine.high %v1397, %v1429
        %v1443 = vcombine.low %v1404, %v1436
        %v1444 = vcombine.high %v1404, %v1436
        %v1445 = vcombine.low %v1437, %v1439
        %v1446 = vcombine.high %v1437, %v1439
        %v1448 = vunpack.c.l.s4 1983009808
        %v1449 = vunpack.c.0.s8 %v1448
        %v1450 = vlaneseq
        %v1451 = vshrl.u32 %v1450, 7
        %v1452 = vsub.s32 %v1449, %v1451
        %v1453 = vrot.slane %v1445, %v1452
        %v1455 = vunpack.c.l.s4 1983009808
        %v1456 = vunpack.c.0.s8 %v1455
        %v1457 = vlaneseq
        %v1458 = vshrl.u32 %v1457, 7
        %v1459 = vsub.s32 %v1456, %v1458
        %v1460 = vrot.slane %v1446, %v1459
        %v1461 = vcombine.low %v1438, %v1440
        %v1462 = vcombine.high %v1438, %v1440
        %v1464 = vunpack.c.l.s4 1983009808
        %v1465 = vunpack.c.0.s8 %v1464
        %v1466 = vlaneseq
        %v1467 = vshrl.u32 %v1466, 7
        %v1468 = vsub.s32 %v1465, %v1467
        %v1469 = vrot.slane %v1461, %v1468
        %v1471 = vunpack.c.l.s4 1983009808
        %v1472 = vunpack.c.0.s8 %v1471
        %v1473 = vlaneseq
        %v1474 = vshrl.u32 %v1473, 7
        %v1475 = vsub.s32 %v1472, %v1474
        %v1476 = vrot.slane %v1462, %v1475
        %v1477 = vcombine.low %v1441, %v1443
        %v1478 = vcombine.high %v1441, %v1443
        %v1480 = vunpack.c.l.s4 1983009808
        %v1481 = vunpack.c.0.s8 %v1480
        %v1482 = vlaneseq
        %v1483 = vshrl.u32 %v1482, 7
        %v1484 = vsub.s32 %v1481, %v1483
        %v1485 = vrot.slane %v1477, %v1484
        %v1487 = vunpack.c.l.s4 1983009808
        %v1488 = vunpack.c.0.s8 %v1487
        %v1489 = vlaneseq
        %v1490 = vshrl.u32 %v1489, 7
        %v1491 = vsub.s32 %v1488, %v1490
        %v1492 = vrot.slane %v1478, %v1491
        %v1493 = vcombine.low %v1442, %v1444
        %v1494 = vcombine.high %v1442, %v1444
        %v1496 = vunpack.c.l.s4 1983009808
        %v1497 = vunpack.c.0.s8 %v1496
        %v1498 = vlaneseq
        %v1499 = vshrl.u32 %v1498, 7
        %v1500 = vsub.s32 %v1497, %v1499
        %v1501 = vrot.slane %v1493, %v1500
        %v1503 = vunpack.c.l.s4 1983009808
        %v1504 = vunpack.c.0.s8 %v1503
        %v1505 = vlaneseq
        %v1506 = vshrl.u32 %v1505, 7
        %v1507 = vsub.s32 %v1504, %v1506
        %v1508 = vrot.slane %v1494, %v1507
        %v1509 = vcombine.low %v1453, %v1469
        %v1510 = vcombine.high %v1453, %v1469
        %v1512 = vunpack.c.l.s4 1934713408
        %v1513 = vunpack.c.0.s8 %v1512
        %v1514 = vlaneseq
        %v1515 = vshrl.u32 %v1514, 7
        %v1516 = vsub.s32 %v1513, %v1515
        %v1517 = vrot.slane %v1509, %v1516
        %v1519 = vunpack.c.l.s4 1934713408
        %v1520 = vunpack.c.0.s8 %v1519
        %v1521 = vlaneseq
        %v1522 = vshrl.u32 %v1521, 7
        %v1523 = vsub.s32 %v1520, %v1522
        %v1524 = vrot.slane %v1510, %v1523
        %v1525 = vcombine.low %v1460, %v1476
        %v1526 = vcombine.high %v1460, %v1476
        %v1528 = vunpack.c.l.s4 1934713408
        %v1529 = vunpack.c.0.s8 %v1528
        %v1530 = vlaneseq
        %v1531 = vshrl.u32 %v1530, 7
        %v1532 = vsub.s32 %v1529, %v1531
        %v1533 = vrot.slane %v1525, %v1532
        %v1535 = vunpack.c.l.s4 1934713408
        %v1536 = vunpack.c.0.s8 %v1535
        %v1537 = vlaneseq
        %v1538 = vshrl.u32 %v1537, 7
        %v1539 = vsub.s32 %v1536, %v1538
        %v1540 = vrot.slane %v1526, %v1539
        %v1541 = vcombine.low %v1485, %v1501
        %v1542 = vcombine.high %v1485, %v1501
        %v1544 = vunpack.c.l.s4 1934713408
        %v1545 = vunpack.c.0.s8 %v1544
        %v1546 = vlaneseq
        %v1547 = vshrl.u32 %v1546, 7
        %v1548 = vsub.s32 %v1545, %v1547
        %v1549 = vrot.slane %v1541, %v1548
        %v1551 = vunpack.c.l.s4 1934713408
        %v1552 = vunpack.c.0.s8 %v1551
        %v1553 = vlaneseq
        %v1554 = vshrl.u32 %v1553, 7
        %v1555 = vsub.s32 %v1552, %v1554
        %v1556 = vrot.slane %v1542, %v1555
        %v1557 = vcombine.low %v1492, %v1508
        %v1558 = vcombine.high %v1492, %v1508
        %v1560 = vunpack.c.l.s4 1934713408
        %v1561 = vunpack.c.0.s8 %v1560
        %v1562 = vlaneseq
        %v1563 = vshrl.u32 %v1562, 7
        %v1564 = vsub.s32 %v1561, %v1563
        %v1565 = vrot.slane %v1557, %v1564
        %v1567 = vunpack.c.l.s4 1934713408
        %v1568 = vunpack.c.0.s8 %v1567
        %v1569 = vlaneseq
        %v1570 = vshrl.u32 %v1569, 7
        %v1571 = vsub.s32 %v1568, %v1570
        %v1572 = vrot.slane %v1558, %v1571
        %v1573 = vcombine.low %v1517, %v1549
        %v1574 = vcombine.high %v1517, %v1549
        %v1575 = vcombine.low %v1524, %v1556
        %v1576 = vcombine.high %v1524, %v1556
        %v1577 = vcombine.low %v1533, %v1565
        %v1578 = vcombine.high %v1533, %v1565
        %v1579 = vcombine.low %v1540, %v1572
        %v1580 = vcombine.high %v1540, %v1572
        %v1581 = vpack.c.bf16 %v1573, %v1573
        %v1582 = vpack.c.bf16 %v1574, %v1574
        %v1583 = vpack.c.bf16 %v1575, %v1575
        %v1584 = vpack.c.bf16 %v1576, %v1576
        %v1585 = vpack.c.bf16 %v1577, %v1577
        %v1586 = vpack.c.bf16 %v1578, %v1578
        %v1587 = vpack.c.bf16 %v1579, %v1579
        %v1588 = vpack.c.bf16 %v1580, %v1580
        %vm1589 = vcmask 64512
        %v1591 = vsel %vm1589, %v977, 0
        %v1594 = vsel %vm1589, %v1279, 0
        %1596 = vmatprep.subr.bf16.mxu0 0
        %1597 = vmatpush1.bf16.xpose.msra.mxu0 %v1594
        %1598 = vmatprep.subr.bf16.mxu0 0
        %1599 = vmatpush1.bf16.xpose.msra.mxu0 0
        %1600 = vmatprep.subr.bf16.mxu0 0
        %1601 = vmatpush1.bf16.xpose.msra.mxu0 0
        %1602 = vmatprep.subr.bf16.mxu0 0
        %1603 = vmatpush1.bf16.xpose.msra.mxu0 0
        %1604 = vmatprep.subr.bf16.mxu0 0
        %1605 = vmatpush1.bf16.xpose.msra.mxu0 0
        %1606 = vmatprep.subr.bf16.mxu0 0
        %1607 = vmatpush1.bf16.xpose.msra.mxu0 0
        %1608 = vmatprep.subr.bf16.mxu0 0
        %1609 = vmatpush1.bf16.xpose.msra.mxu0 0
        %1610 = vmatprep.subr.bf16.mxu0 0
        %1611 = vmatpush1.bf16.xpose.msra.mxu0 0
        %1612 = vmatprep.subr.bf16.mxu0 0
        %1613 = vmatpush1.bf16.xpose.msra.mxu0 0
        %1614 = vmatprep.subr.bf16.mxu0 0
        %1615 = vmatpush1.bf16.xpose.msra.mxu0 0
        %1616 = vmatprep.subr.bf16.mxu0 0
        %1617 = vmatpush1.bf16.xpose.msra.mxu0 0
        %1618 = vmatprep.subr.bf16.mxu0 0
        %1619 = vmatpush1.bf16.xpose.msra.mxu0 0
        %1620 = vmatprep.subr.bf16.mxu0 0
        %1621 = vmatpush1.bf16.xpose.msra.mxu0 0
        %1622 = vmatprep.subr.bf16.mxu0 0
        %1623 = vmatpush1.bf16.xpose.msra.mxu0 0
        %1624 = vmatprep.subr.bf16.mxu0 0
        %1625 = vmatpush1.bf16.xpose.msra.mxu0 0
        %1626 = vmatprep.subr.bf16.mxu0 0
        %1627 = vmatpush1.bf16.xpose.msra.mxu0 0
        %1628 = vmatprep.mubr.bf16.mxu0 0
        %1629 = vmatmul.mubr.bf16.gmra.mrb[0].mxu0 %v1591
        %v1630 = vpop.f32.mrb[0].mxu0
        %v1631 = vadd.f32 0.0, %v1630
        %v1632 = vpop.f32.mrb[0].mxu0
        %v1633 = vpop.f32.mrb[0].mxu0
        %v1634 = vpop.f32.mrb[0].mxu0
        %1635 = vdwg.mxu0
        %v1637 = vsel %vm1589, %v978, 0
        %v1640 = vsel %vm1589, %v1280, 0
        %1642 = vmatprep.subr.bf16.mxu0 0
        %1643 = vmatpush1.bf16.xpose.msra.mxu0 %v1640
        %1644 = vmatprep.subr.bf16.mxu0 0
        %1645 = vmatpush1.bf16.xpose.msra.mxu0 0
        %1646 = vmatprep.subr.bf16.mxu0 0
        %1647 = vmatpush1.bf16.xpose.msra.mxu0 0
        %1648 = vmatprep.subr.bf16.mxu0 0
        %1649 = vmatpush1.bf16.xpose.msra.mxu0 0
        %1650 = vmatprep.subr.bf16.mxu0 0
        %1651 = vmatpush1.bf16.xpose.msra.mxu0 0
        %1652 = vmatprep.subr.bf16.mxu0 0
        %1653 = vmatpush1.bf16.xpose.msra.mxu0 0
        %1654 = vmatprep.subr.bf16.mxu0 0
        %1655 = vmatpush1.bf16.xpose.msra.mxu0 0
        %1656 = vmatprep.subr.bf16.mxu0 0
        %1657 = vmatpush1.bf16.xpose.msra.mxu0 0
        %1658 = vmatprep.subr.bf16.mxu0 0
        %1659 = vmatpush1.bf16.xpose.msra.mxu0 0
        %1660 = vmatprep.subr.bf16.mxu0 0
        %1661 = vmatpush1.bf16.xpose.msra.mxu0 0
        %1662 = vmatprep.subr.bf16.mxu0 0
        %1663 = vmatpush1.bf16.xpose.msra.mxu0 0
        %1664 = vmatprep.subr.bf16.mxu0 0
        %1665 = vmatpush1.bf16.xpose.msra.mxu0 0
        %1666 = vmatprep.subr.bf16.mxu0 0
        %1667 = vmatpush1.bf16.xpose.msra.mxu0 0
        %1668 = vmatprep.subr.bf16.mxu0 0
        %1669 = vmatpush1.bf16.xpose.msra.mxu0 0
        %1670 = vmatprep.subr.bf16.mxu0 0
        %1671 = vmatpush1.bf16.xpose.msra.mxu0 0
        %1672 = vmatprep.subr.bf16.mxu0 0
        %1673 = vmatpush1.bf16.xpose.msra.mxu0 0
        %1674 = vmatprep.mubr.bf16.mxu0 0
        %1675 = vmatmul.mubr.bf16.gmra.mrb[0].mxu0 %v1637
        %v1676 = vpop.f32.mrb[0].mxu0
        %v1677 = vadd.f32 0.0, %v1676
        %v1678 = vpop.f32.mrb[0].mxu0
        %v1679 = vpop.f32.mrb[0].mxu0
        %v1680 = vpop.f32.mrb[0].mxu0
        %1681 = vdwg.mxu0
        %v1683 = vsel %vm1589, %v979, 0
        %v1686 = vsel %vm1589, %v1281, 0
        %1688 = vmatprep.subr.bf16.mxu0 0
        %1689 = vmatpush1.bf16.xpose.msra.mxu0 %v1686
        %1690 = vmatprep.subr.bf16.mxu0 0
        %1691 = vmatpush1.bf16.xpose.msra.mxu0 0
        %1692 = vmatprep.subr.bf16.mxu0 0
        %1693 = vmatpush1.bf16.xpose.msra.mxu0 0
        %1694 = vmatprep.subr.bf16.mxu0 0
        %1695 = vmatpush1.bf16.xpose.msra.mxu0 0
        %1696 = vmatprep.subr.bf16.mxu0 0
        %1697 = vmatpush1.bf16.xpose.msra.mxu0 0
        %1698 = vmatprep.subr.bf16.mxu0 0
        %1699 = vmatpush1.bf16.xpose.msra.mxu0 0
        %1700 = vmatprep.subr.bf16.mxu0 0
        %1701 = vmatpush1.bf16.xpose.msra.mxu0 0
        %1702 = vmatprep.subr.bf16.mxu0 0
        %1703 = vmatpush1.bf16.xpose.msra.mxu0 0
        %1704 = vmatprep.subr.bf16.mxu0 0
        %1705 = vmatpush1.bf16.xpose.msra.mxu0 0
        %1706 = vmatprep.subr.bf16.mxu0 0
        %1707 = vmatpush1.bf16.xpose.msra.mxu0 0
        %1708 = vmatprep.subr.bf16.mxu0 0
        %1709 = vmatpush1.bf16.xpose.msra.mxu0 0
        %1710 = vmatprep.subr.bf16.mxu0 0
        %1711 = vmatpush1.bf16.xpose.msra.mxu0 0
        %1712 = vmatprep.subr.bf16.mxu0 0
        %1713 = vmatpush1.bf16.xpose.msra.mxu0 0
        %1714 = vmatprep.subr.bf16.mxu0 0
        %1715 = vmatpush1.bf16.xpose.msra.mxu0 0
        %1716 = vmatprep.subr.bf16.mxu0 0
        %1717 = vmatpush1.bf16.xpose.msra.mxu0 0
        %1718 = vmatprep.subr.bf16.mxu0 0
        %1719 = vmatpush1.bf16.xpose.msra.mxu0 0
        %1720 = vmatprep.mubr.bf16.mxu0 0
        %1721 = vmatmul.mubr.bf16.gmra.mrb[0].mxu0 %v1683
        %v1722 = vpop.f32.mrb[0].mxu0
        %v1723 = vadd.f32 0.0, %v1722
        %v1724 = vpop.f32.mrb[0].mxu0
        %v1725 = vpop.f32.mrb[0].mxu0
        %v1726 = vpop.f32.mrb[0].mxu0
        %1727 = vdwg.mxu0
        %v1729 = vsel %vm1589, %v980, 0
        %v1732 = vsel %vm1589, %v1282, 0
        %1734 = vmatprep.subr.bf16.mxu0 0
        %1735 = vmatpush1.bf16.xpose.msra.mxu0 %v1732
        %1736 = vmatprep.subr.bf16.mxu0 0
        %1737 = vmatpush1.bf16.xpose.msra.mxu0 0
        %1738 = vmatprep.subr.bf16.mxu0 0
        %1739 = vmatpush1.bf16.xpose.msra.mxu0 0
        %1740 = vmatprep.subr.bf16.mxu0 0
        %1741 = vmatpush1.bf16.xpose.msra.mxu0 0
        %1742 = vmatprep.subr.bf16.mxu0 0
        %1743 = vmatpush1.bf16.xpose.msra.mxu0 0
        %1744 = vmatprep.subr.bf16.mxu0 0
        %1745 = vmatpush1.bf16.xpose.msra.mxu0 0
        %1746 = vmatprep.subr.bf16.mxu0 0
        %1747 = vmatpush1.bf16.xpose.msra.mxu0 0
        %1748 = vmatprep.subr.bf16.mxu0 0
        %1749 = vmatpush1.bf16.xpose.msra.mxu0 0
        %1750 = vmatprep.subr.bf16.mxu0 0
        %1751 = vmatpush1.bf16.xpose.msra.mxu0 0
        %1752 = vmatprep.subr.bf16.mxu0 0
        %1753 = vmatpush1.bf16.xpose.msra.mxu0 0
        %1754 = vmatprep.subr.bf16.mxu0 0
        %1755 = vmatpush1.bf16.xpose.msra.mxu0 0
        %1756 = vmatprep.subr.bf16.mxu0 0
        %1757 = vmatpush1.bf16.xpose.msra.mxu0 0
        %1758 = vmatprep.subr.bf16.mxu0 0
        %1759 = vmatpush1.bf16.xpose.msra.mxu0 0
        %1760 = vmatprep.subr.bf16.mxu0 0
        %1761 = vmatpush1.bf16.xpose.msra.mxu0 0
        %1762 = vmatprep.subr.bf16.mxu0 0
        %1763 = vmatpush1.bf16.xpose.msra.mxu0 0
        %1764 = vmatprep.subr.bf16.mxu0 0
        %1765 = vmatpush1.bf16.xpose.msra.mxu0 0
        %1766 = vmatprep.mubr.bf16.mxu0 0
        %1767 = vmatmul.mubr.bf16.gmra.mrb[0].mxu0 %v1729
        %v1768 = vpop.f32.mrb[0].mxu0
        %v1769 = vadd.f32 0.0, %v1768
        %v1770 = vpop.f32.mrb[0].mxu0
        %v1771 = vpop.f32.mrb[0].mxu0
        %v1772 = vpop.f32.mrb[0].mxu0
        %1773 = vdwg.mxu0
        %v1775 = vsel %vm1589, %v981, 0
        %v1778 = vsel %vm1589, %v1283, 0
        %1780 = vmatprep.subr.bf16.mxu0 0
        %1781 = vmatpush1.bf16.xpose.msra.mxu0 %v1778
        %1782 = vmatprep.subr.bf16.mxu0 0
        %1783 = vmatpush1.bf16.xpose.msra.mxu0 0
        %1784 = vmatprep.subr.bf16.mxu0 0
        %1785 = vmatpush1.bf16.xpose.msra.mxu0 0
        %1786 = vmatprep.subr.bf16.mxu0 0
        %1787 = vmatpush1.bf16.xpose.msra.mxu0 0
        %1788 = vmatprep.subr.bf16.mxu0 0
        %1789 = vmatpush1.bf16.xpose.msra.mxu0 0
        %1790 = vmatprep.subr.bf16.mxu0 0
        %1791 = vmatpush1.bf16.xpose.msra.mxu0 0
        %1792 = vmatprep.subr.bf16.mxu0 0
        %1793 = vmatpush1.bf16.xpose.msra.mxu0 0
        %1794 = vmatprep.subr.bf16.mxu0 0
        %1795 = vmatpush1.bf16.xpose.msra.mxu0 0
        %1796 = vmatprep.subr.bf16.mxu0 0
        %1797 = vmatpush1.bf16.xpose.msra.mxu0 0
        %1798 = vmatprep.subr.bf16.mxu0 0
        %1799 = vmatpush1.bf16.xpose.msra.mxu0 0
        %1800 = vmatprep.subr.bf16.mxu0 0
        %1801 = vmatpush1.bf16.xpose.msra.mxu0 0
        %1802 = vmatprep.subr.bf16.mxu0 0
        %1803 = vmatpush1.bf16.xpose.msra.mxu0 0
        %1804 = vmatprep.subr.bf16.mxu0 0
        %1805 = vmatpush1.bf16.xpose.msra.mxu0 0
        %1806 = vmatprep.subr.bf16.mxu0 0
        %1807 = vmatpush1.bf16.xpose.msra.mxu0 0
        %1808 = vmatprep.subr.bf16.mxu0 0
        %1809 = vmatpush1.bf16.xpose.msra.mxu0 0
        %1810 = vmatprep.subr.bf16.mxu0 0
        %1811 = vmatpush1.bf16.xpose.msra.mxu0 0
        %1812 = vmatprep.mubr.bf16.mxu0 0
        %1813 = vmatmul.mubr.bf16.gmra.mrb[0].mxu0 %v1775
        %v1814 = vpop.f32.mrb[0].mxu0
        %v1815 = vadd.f32 0.0, %v1814
        %v1816 = vpop.f32.mrb[0].mxu0
        %v1817 = vpop.f32.mrb[0].mxu0
        %v1818 = vpop.f32.mrb[0].mxu0
        %1819 = vdwg.mxu0
        %v1821 = vsel %vm1589, %v982, 0
        %v1824 = vsel %vm1589, %v1284, 0
        %1826 = vmatprep.subr.bf16.mxu0 0
        %1827 = vmatpush1.bf16.xpose.msra.mxu0 %v1824
        %1828 = vmatprep.subr.bf16.mxu0 0
        %1829 = vmatpush1.bf16.xpose.msra.mxu0 0
        %1830 = vmatprep.subr.bf16.mxu0 0
        %1831 = vmatpush1.bf16.xpose.msra.mxu0 0
        %1832 = vmatprep.subr.bf16.mxu0 0
        %1833 = vmatpush1.bf16.xpose.msra.mxu0 0
        %1834 = vmatprep.subr.bf16.mxu0 0
        %1835 = vmatpush1.bf16.xpose.msra.mxu0 0
        %1836 = vmatprep.subr.bf16.mxu0 0
        %1837 = vmatpush1.bf16.xpose.msra.mxu0 0
        %1838 = vmatprep.subr.bf16.mxu0 0
        %1839 = vmatpush1.bf16.xpose.msra.mxu0 0
        %1840 = vmatprep.subr.bf16.mxu0 0
        %1841 = vmatpush1.bf16.xpose.msra.mxu0 0
        %1842 = vmatprep.subr.bf16.mxu0 0
        %1843 = vmatpush1.bf16.xpose.msra.mxu0 0
        %1844 = vmatprep.subr.bf16.mxu0 0
        %1845 = vmatpush1.bf16.xpose.msra.mxu0 0
        %1846 = vmatprep.subr.bf16.mxu0 0
        %1847 = vmatpush1.bf16.xpose.msra.mxu0 0
        %1848 = vmatprep.subr.bf16.mxu0 0
        %1849 = vmatpush1.bf16.xpose.msra.mxu0 0
        %1850 = vmatprep.subr.bf16.mxu0 0
        %1851 = vmatpush1.bf16.xpose.msra.mxu0 0
        %1852 = vmatprep.subr.bf16.mxu0 0
        %1853 = vmatpush1.bf16.xpose.msra.mxu0 0
        %1854 = vmatprep.subr.bf16.mxu0 0
        %1855 = vmatpush1.bf16.xpose.msra.mxu0 0
        %1856 = vmatprep.subr.bf16.mxu0 0
        %1857 = vmatpush1.bf16.xpose.msra.mxu0 0
        %1858 = vmatprep.mubr.bf16.mxu0 0
        %1859 = vmatmul.mubr.bf16.gmra.mrb[0].mxu0 %v1821
        %v1860 = vpop.f32.mrb[0].mxu0
        %v1861 = vadd.f32 0.0, %v1860
        %v1862 = vpop.f32.mrb[0].mxu0
        %v1863 = vpop.f32.mrb[0].mxu0
        %v1864 = vpop.f32.mrb[0].mxu0
        %1865 = vdwg.mxu0
        %v1867 = vsel %vm1589, %v983, 0
        %v1870 = vsel %vm1589, %v1285, 0
        %1872 = vmatprep.subr.bf16.mxu0 0
        %1873 = vmatpush1.bf16.xpose.msra.mxu0 %v1870
        %1874 = vmatprep.subr.bf16.mxu0 0
        %1875 = vmatpush1.bf16.xpose.msra.mxu0 0
        %1876 = vmatprep.subr.bf16.mxu0 0
        %1877 = vmatpush1.bf16.xpose.msra.mxu0 0
        %1878 = vmatprep.subr.bf16.mxu0 0
        %1879 = vmatpush1.bf16.xpose.msra.mxu0 0
        %1880 = vmatprep.subr.bf16.mxu0 0
        %1881 = vmatpush1.bf16.xpose.msra.mxu0 0
        %1882 = vmatprep.subr.bf16.mxu0 0
        %1883 = vmatpush1.bf16.xpose.msra.mxu0 0
        %1884 = vmatprep.subr.bf16.mxu0 0
        %1885 = vmatpush1.bf16.xpose.msra.mxu0 0
        %1886 = vmatprep.subr.bf16.mxu0 0
        %1887 = vmatpush1.bf16.xpose.msra.mxu0 0
        %1888 = vmatprep.subr.bf16.mxu0 0
        %1889 = vmatpush1.bf16.xpose.msra.mxu0 0
        %1890 = vmatprep.subr.bf16.mxu0 0
        %1891 = vmatpush1.bf16.xpose.msra.mxu0 0
        %1892 = vmatprep.subr.bf16.mxu0 0
        %1893 = vmatpush1.bf16.xpose.msra.mxu0 0
        %1894 = vmatprep.subr.bf16.mxu0 0
        %1895 = vmatpush1.bf16.xpose.msra.mxu0 0
        %1896 = vmatprep.subr.bf16.mxu0 0
        %1897 = vmatpush1.bf16.xpose.msra.mxu0 0
        %1898 = vmatprep.subr.bf16.mxu0 0
        %1899 = vmatpush1.bf16.xpose.msra.mxu0 0
        %1900 = vmatprep.subr.bf16.mxu0 0
        %1901 = vmatpush1.bf16.xpose.msra.mxu0 0
        %1902 = vmatprep.subr.bf16.mxu0 0
        %1903 = vmatpush1.bf16.xpose.msra.mxu0 0
        %1904 = vmatprep.mubr.bf16.mxu0 0
        %1905 = vmatmul.mubr.bf16.gmra.mrb[0].mxu0 %v1867
        %v1906 = vpop.f32.mrb[0].mxu0
        %v1907 = vadd.f32 0.0, %v1906
        %v1908 = vpop.f32.mrb[0].mxu0
        %v1909 = vpop.f32.mrb[0].mxu0
        %v1910 = vpop.f32.mrb[0].mxu0
        %1911 = vdwg.mxu0
        %v1913 = vsel %vm1589, %v984, 0
        %v1916 = vsel %vm1589, %v1286, 0
        %1918 = vmatprep.subr.bf16.mxu0 0
        %1919 = vmatpush1.bf16.xpose.msra.mxu0 %v1916
        %1920 = vmatprep.subr.bf16.mxu0 0
        %1921 = vmatpush1.bf16.xpose.msra.mxu0 0
        %1922 = vmatprep.subr.bf16.mxu0 0
        %1923 = vmatpush1.bf16.xpose.msra.mxu0 0
        %1924 = vmatprep.subr.bf16.mxu0 0
        %1925 = vmatpush1.bf16.xpose.msra.mxu0 0
        %1926 = vmatprep.subr.bf16.mxu0 0
        %1927 = vmatpush1.bf16.xpose.msra.mxu0 0
        %1928 = vmatprep.subr.bf16.mxu0 0
        %1929 = vmatpush1.bf16.xpose.msra.mxu0 0
        %1930 = vmatprep.subr.bf16.mxu0 0
        %1931 = vmatpush1.bf16.xpose.msra.mxu0 0
        %1932 = vmatprep.subr.bf16.mxu0 0
        %1933 = vmatpush1.bf16.xpose.msra.mxu0 0
        %1934 = vmatprep.subr.bf16.mxu0 0
        %1935 = vmatpush1.bf16.xpose.msra.mxu0 0
        %1936 = vmatprep.subr.bf16.mxu0 0
        %1937 = vmatpush1.bf16.xpose.msra.mxu0 0
        %1938 = vmatprep.subr.bf16.mxu0 0
        %1939 = vmatpush1.bf16.xpose.msra.mxu0 0
        %1940 = vmatprep.subr.bf16.mxu0 0
        %1941 = vmatpush1.bf16.xpose.msra.mxu0 0
        %1942 = vmatprep.subr.bf16.mxu0 0
        %1943 = vmatpush1.bf16.xpose.msra.mxu0 0
        %1944 = vmatprep.subr.bf16.mxu0 0
        %1945 = vmatpush1.bf16.xpose.msra.mxu0 0
        %1946 = vmatprep.subr.bf16.mxu0 0
        %1947 = vmatpush1.bf16.xpose.msra.mxu0 0
        %1948 = vmatprep.subr.bf16.mxu0 0
        %1949 = vmatpush1.bf16.xpose.msra.mxu0 0
        %1950 = vmatprep.mubr.bf16.mxu0 0
        %1951 = vmatmul.mubr.bf16.gmra.mrb[0].mxu0 %v1913
        %v1952 = vpop.f32.mrb[0].mxu0
        %v1953 = vadd.f32 0.0, %v1952
        %v1954 = vpop.f32.mrb[0].mxu0
        %v1955 = vpop.f32.mrb[0].mxu0
        %v1956 = vpop.f32.mrb[0].mxu0
        %1957 = vdwg.mxu0
        %v1958 = vmul.f32 %v1631, 0.35355338
        %v1959 = vmul.f32 %v1677, 0.35355338
        %v1960 = vmul.f32 %v1723, 0.35355338
        %v1961 = vmul.f32 %v1769, 0.35355338
        %v1962 = vmul.f32 %v1815, 0.35355338
        %v1963 = vmul.f32 %v1861, 0.35355338
        %v1964 = vmul.f32 %v1907, 0.35355338
        %v1965 = vmul.f32 %v1953, 0.35355338
        %v1966 = vsel %vm1589, %v1958, -inf
        %1967 = vmax.xlane.f32.xlu0 %v1966
        %v1968 = vpop.xlane.xlu0 %1967
        %v1969 = vsel %vm1589, %v1959, -inf
        %1970 = vmax.xlane.f32.xlu0 %v1969
        %v1971 = vpop.xlane.xlu0 %1970
        %v1972 = vsel %vm1589, %v1960, -inf
        %1973 = vmax.xlane.f32.xlu0 %v1972
        %v1974 = vpop.xlane.xlu0 %1973
        %v1975 = vsel %vm1589, %v1961, -inf
        %1976 = vmax.xlane.f32.xlu0 %v1975
        %v1977 = vpop.xlane.xlu0 %1976
        %v1978 = vsel %vm1589, %v1962, -inf
        %1979 = vmax.xlane.f32.xlu0 %v1978
        %v1980 = vpop.xlane.xlu0 %1979
        %v1981 = vsel %vm1589, %v1963, -inf
        %1982 = vmax.xlane.f32.xlu0 %v1981
        %v1983 = vpop.xlane.xlu0 %1982
        %v1984 = vsel %vm1589, %v1964, -inf
        %1985 = vmax.xlane.f32.xlu0 %v1984
        %v1986 = vpop.xlane.xlu0 %1985
        %v1987 = vsel %vm1589, %v1965, -inf
        %1988 = vmax.xlane.f32.xlu0 %v1987
        %v1989 = vpop.xlane.xlu0 %1988
        %v1990 = vsub.f32 %v1958, %v1968
        %v1991 = vsub.f32 %v1959, %v1971
        %v1992 = vsub.f32 %v1960, %v1974
        %v1993 = vsub.f32 %v1961, %v1977
        %v1994 = vsub.f32 %v1962, %v1980
        %v1995 = vsub.f32 %v1963, %v1983
        %v1996 = vsub.f32 %v1964, %v1986
        %v1997 = vsub.f32 %v1965, %v1989
        %v1998 = vmul.f32 %v1990, 1.442695
        %v1999 = vpow.pop %v1998
        %v2000 = vmul.f32 %v1991, 1.442695
        %v2001 = vpow.pop %v2000
        %v2002 = vmul.f32 %v1992, 1.442695
        %v2003 = vpow.pop %v2002
        %v2004 = vmul.f32 %v1993, 1.442695
        %v2005 = vpow.pop %v2004
        %v2006 = vmul.f32 %v1994, 1.442695
        %v2007 = vpow.pop %v2006
        %v2008 = vmul.f32 %v1995, 1.442695
        %v2009 = vpow.pop %v2008
        %v2010 = vmul.f32 %v1996, 1.442695
        %v2011 = vpow.pop %v2010
        %v2012 = vmul.f32 %v1997, 1.442695
        %v2013 = vpow.pop %v2012
        %v2014 = vsel %vm1589, %v1999, 0.0
        %2015 = vadd.xlane.f32.xlu0 %v2014
        %v2016 = vpop.xlane.xlu0 %2015
        %v2017 = vsel %vm1589, %v2001, 0.0
        %2018 = vadd.xlane.f32.xlu0 %v2017
        %v2019 = vpop.xlane.xlu0 %2018
        %v2020 = vsel %vm1589, %v2003, 0.0
        %2021 = vadd.xlane.f32.xlu0 %v2020
        %v2022 = vpop.xlane.xlu0 %2021
        %v2023 = vsel %vm1589, %v2005, 0.0
        %2024 = vadd.xlane.f32.xlu0 %v2023
        %v2025 = vpop.xlane.xlu0 %2024
        %v2026 = vsel %vm1589, %v2007, 0.0
        %2027 = vadd.xlane.f32.xlu0 %v2026
        %v2028 = vpop.xlane.xlu0 %2027
        %v2029 = vsel %vm1589, %v2009, 0.0
        %2030 = vadd.xlane.f32.xlu0 %v2029
        %v2031 = vpop.xlane.xlu0 %2030
        %v2032 = vsel %vm1589, %v2011, 0.0
        %2033 = vadd.xlane.f32.xlu0 %v2032
        %v2034 = vpop.xlane.xlu0 %2033
        %v2035 = vsel %vm1589, %v2013, 0.0
        %2036 = vadd.xlane.f32.xlu0 %v2035
        %v2037 = vpop.xlane.xlu0 %2036
        %v2038 = vrcp.pop %v2016
        %v2039 = vrcp.pop %v2019
        %v2040 = vrcp.pop %v2022
        %v2041 = vrcp.pop %v2025
        %v2042 = vrcp.pop %v2028
        %v2043 = vrcp.pop %v2031
        %v2044 = vrcp.pop %v2034
        %v2045 = vrcp.pop %v2037
        %v2046 = vmul.f32 %v1999, %v2038
        %v2047 = vmul.f32 %v2001, %v2039
        %v2048 = vmul.f32 %v2003, %v2040
        %v2049 = vmul.f32 %v2005, %v2041
        %v2050 = vmul.f32 %v2007, %v2042
        %v2051 = vmul.f32 %v2009, %v2043
        %v2052 = vmul.f32 %v2011, %v2044
        %v2053 = vmul.f32 %v2013, %v2045
        %v2054 = vpack.c.bf16 %v2046, %v2046
        %v2055 = vpack.c.bf16 %v2047, %v2047
        %v2056 = vpack.c.bf16 %v2048, %v2048
        %v2057 = vpack.c.bf16 %v2049, %v2049
        %v2058 = vpack.c.bf16 %v2050, %v2050
        %v2059 = vpack.c.bf16 %v2051, %v2051
        %v2060 = vpack.c.bf16 %v2052, %v2052
        %v2061 = vpack.c.bf16 %v2053, %v2053
        %v2063 = vsel %vm1589, %v2054, 0
        %vm2065 = vcmask 1043456
        %v2067 = vsel %vm2065, %v1581, 0
        %2069 = vmatprep.subr.bf16.mxu0 0
        %2070 = vmatpush1.bf16.msra.mxu0 %v2067
        %2071 = vmatprep.subr.bf16.mxu0 0
        %2072 = vmatpush1.bf16.msra.mxu0 0
        %2073 = vmatprep.subr.bf16.mxu0 0
        %2074 = vmatpush1.bf16.msra.mxu0 0
        %2075 = vmatprep.subr.bf16.mxu0 0
        %2076 = vmatpush1.bf16.msra.mxu0 0
        %2077 = vmatprep.subr.bf16.mxu0 0
        %2078 = vmatpush1.bf16.msra.mxu0 0
        %2079 = vmatprep.subr.bf16.mxu0 0
        %2080 = vmatpush1.bf16.msra.mxu0 0
        %2081 = vmatprep.subr.bf16.mxu0 0
        %2082 = vmatpush1.bf16.msra.mxu0 0
        %2083 = vmatprep.subr.bf16.mxu0 0
        %2084 = vmatpush1.bf16.msra.mxu0 0
        %2085 = vmatprep.subr.bf16.mxu0 0
        %2086 = vmatpush1.bf16.msra.mxu0 0
        %2087 = vmatprep.subr.bf16.mxu0 0
        %2088 = vmatpush1.bf16.msra.mxu0 0
        %2089 = vmatprep.subr.bf16.mxu0 0
        %2090 = vmatpush1.bf16.msra.mxu0 0
        %2091 = vmatprep.subr.bf16.mxu0 0
        %2092 = vmatpush1.bf16.msra.mxu0 0
        %2093 = vmatprep.subr.bf16.mxu0 0
        %2094 = vmatpush1.bf16.msra.mxu0 0
        %2095 = vmatprep.subr.bf16.mxu0 0
        %2096 = vmatpush1.bf16.msra.mxu0 0
        %2097 = vmatprep.subr.bf16.mxu0 0
        %2098 = vmatpush1.bf16.msra.mxu0 0
        %2099 = vmatprep.subr.bf16.mxu0 0
        %2100 = vmatpush1.bf16.msra.mxu0 0
        %2101 = vmatprep.mubr.bf16.mxu0 0
        %2102 = vmatmul.mubr.bf16.gmra.mrb[0].mxu0 %v2063
        %v2103 = vpop.f32.mrb[0].mxu0
        %v2104 = vadd.f32 0.0, %v2103
        %v2105 = vpop.f32.mrb[0].mxu0
        %v2106 = vpop.f32.mrb[0].mxu0
        %v2107 = vpop.f32.mrb[0].mxu0
        %2108 = vdwg.mxu0
        %v2110 = vsel %vm1589, %v2055, 0
        %v2113 = vsel %vm2065, %v1582, 0
        %2115 = vmatprep.subr.bf16.mxu0 0
        %2116 = vmatpush1.bf16.msra.mxu0 %v2113
        %2117 = vmatprep.subr.bf16.mxu0 0
        %2118 = vmatpush1.bf16.msra.mxu0 0
        %2119 = vmatprep.subr.bf16.mxu0 0
        %2120 = vmatpush1.bf16.msra.mxu0 0
        %2121 = vmatprep.subr.bf16.mxu0 0
        %2122 = vmatpush1.bf16.msra.mxu0 0
        %2123 = vmatprep.subr.bf16.mxu0 0
        %2124 = vmatpush1.bf16.msra.mxu0 0
        %2125 = vmatprep.subr.bf16.mxu0 0
        %2126 = vmatpush1.bf16.msra.mxu0 0
        %2127 = vmatprep.subr.bf16.mxu0 0
        %2128 = vmatpush1.bf16.msra.mxu0 0
        %2129 = vmatprep.subr.bf16.mxu0 0
        %2130 = vmatpush1.bf16.msra.mxu0 0
        %2131 = vmatprep.subr.bf16.mxu0 0
        %2132 = vmatpush1.bf16.msra.mxu0 0
        %2133 = vmatprep.subr.bf16.mxu0 0
        %2134 = vmatpush1.bf16.msra.mxu0 0
        %2135 = vmatprep.subr.bf16.mxu0 0
        %2136 = vmatpush1.bf16.msra.mxu0 0
        %2137 = vmatprep.subr.bf16.mxu0 0
        %2138 = vmatpush1.bf16.msra.mxu0 0
        %2139 = vmatprep.subr.bf16.mxu0 0
        %2140 = vmatpush1.bf16.msra.mxu0 0
        %2141 = vmatprep.subr.bf16.mxu0 0
        %2142 = vmatpush1.bf16.msra.mxu0 0
        %2143 = vmatprep.subr.bf16.mxu0 0
        %2144 = vmatpush1.bf16.msra.mxu0 0
        %2145 = vmatprep.subr.bf16.mxu0 0
        %2146 = vmatpush1.bf16.msra.mxu0 0
        %2147 = vmatprep.mubr.bf16.mxu0 0
        %2148 = vmatmul.mubr.bf16.gmra.mrb[0].mxu0 %v2110
        %v2149 = vpop.f32.mrb[0].mxu0
        %v2150 = vadd.f32 0.0, %v2149
        %v2151 = vpop.f32.mrb[0].mxu0
        %v2152 = vpop.f32.mrb[0].mxu0
        %v2153 = vpop.f32.mrb[0].mxu0
        %2154 = vdwg.mxu0
        %v2156 = vsel %vm1589, %v2056, 0
        %v2159 = vsel %vm2065, %v1583, 0
        %2161 = vmatprep.subr.bf16.mxu0 0
        %2162 = vmatpush1.bf16.msra.mxu0 %v2159
        %2163 = vmatprep.subr.bf16.mxu0 0
        %2164 = vmatpush1.bf16.msra.mxu0 0
        %2165 = vmatprep.subr.bf16.mxu0 0
        %2166 = vmatpush1.bf16.msra.mxu0 0
        %2167 = vmatprep.subr.bf16.mxu0 0
        %2168 = vmatpush1.bf16.msra.mxu0 0
        %2169 = vmatprep.subr.bf16.mxu0 0
        %2170 = vmatpush1.bf16.msra.mxu0 0
        %2171 = vmatprep.subr.bf16.mxu0 0
        %2172 = vmatpush1.bf16.msra.mxu0 0
        %2173 = vmatprep.subr.bf16.mxu0 0
        %2174 = vmatpush1.bf16.msra.mxu0 0
        %2175 = vmatprep.subr.bf16.mxu0 0
        %2176 = vmatpush1.bf16.msra.mxu0 0
        %2177 = vmatprep.subr.bf16.mxu0 0
        %2178 = vmatpush1.bf16.msra.mxu0 0
        %2179 = vmatprep.subr.bf16.mxu0 0
        %2180 = vmatpush1.bf16.msra.mxu0 0
        %2181 = vmatprep.subr.bf16.mxu0 0
        %2182 = vmatpush1.bf16.msra.mxu0 0
        %2183 = vmatprep.subr.bf16.mxu0 0
        %2184 = vmatpush1.bf16.msra.mxu0 0
        %2185 = vmatprep.subr.bf16.mxu0 0
        %2186 = vmatpush1.bf16.msra.mxu0 0
        %2187 = vmatprep.subr.bf16.mxu0 0
        %2188 = vmatpush1.bf16.msra.mxu0 0
        %2189 = vmatprep.subr.bf16.mxu0 0
        %2190 = vmatpush1.bf16.msra.mxu0 0
        %2191 = vmatprep.subr.bf16.mxu0 0
        %2192 = vmatpush1.bf16.msra.mxu0 0
        %2193 = vmatprep.mubr.bf16.mxu0 0
        %2194 = vmatmul.mubr.bf16.gmra.mrb[0].mxu0 %v2156
        %v2195 = vpop.f32.mrb[0].mxu0
        %v2196 = vadd.f32 0.0, %v2195
        %v2197 = vpop.f32.mrb[0].mxu0
        %v2198 = vpop.f32.mrb[0].mxu0
        %v2199 = vpop.f32.mrb[0].mxu0
        %2200 = vdwg.mxu0
        %v2202 = vsel %vm1589, %v2057, 0
        %v2205 = vsel %vm2065, %v1584, 0
        %2207 = vmatprep.subr.bf16.mxu0 0
        %2208 = vmatpush1.bf16.msra.mxu0 %v2205
        %2209 = vmatprep.subr.bf16.mxu0 0
        %2210 = vmatpush1.bf16.msra.mxu0 0
        %2211 = vmatprep.subr.bf16.mxu0 0
        %2212 = vmatpush1.bf16.msra.mxu0 0
        %2213 = vmatprep.subr.bf16.mxu0 0
        %2214 = vmatpush1.bf16.msra.mxu0 0
        %2215 = vmatprep.subr.bf16.mxu0 0
        %2216 = vmatpush1.bf16.msra.mxu0 0
        %2217 = vmatprep.subr.bf16.mxu0 0
        %2218 = vmatpush1.bf16.msra.mxu0 0
        %2219 = vmatprep.subr.bf16.mxu0 0
        %2220 = vmatpush1.bf16.msra.mxu0 0
        %2221 = vmatprep.subr.bf16.mxu0 0
        %2222 = vmatpush1.bf16.msra.mxu0 0
        %2223 = vmatprep.subr.bf16.mxu0 0
        %2224 = vmatpush1.bf16.msra.mxu0 0
        %2225 = vmatprep.subr.bf16.mxu0 0
        %2226 = vmatpush1.bf16.msra.mxu0 0
        %2227 = vmatprep.subr.bf16.mxu0 0
        %2228 = vmatpush1.bf16.msra.mxu0 0
        %2229 = vmatprep.subr.bf16.mxu0 0
        %2230 = vmatpush1.bf16.msra.mxu0 0
        %2231 = vmatprep.subr.bf16.mxu0 0
        %2232 = vmatpush1.bf16.msra.mxu0 0
        %2233 = vmatprep.subr.bf16.mxu0 0
        %2234 = vmatpush1.bf16.msra.mxu0 0
        %2235 = vmatprep.subr.bf16.mxu0 0
        %2236 = vmatpush1.bf16.msra.mxu0 0
        %2237 = vmatprep.subr.bf16.mxu0 0
        %2238 = vmatpush1.bf16.msra.mxu0 0
        %2239 = vmatprep.mubr.bf16.mxu0 0
        %2240 = vmatmul.mubr.bf16.gmra.mrb[0].mxu0 %v2202
        %v2241 = vpop.f32.mrb[0].mxu0
        %v2242 = vadd.f32 0.0, %v2241
        %v2243 = vpop.f32.mrb[0].mxu0
        %v2244 = vpop.f32.mrb[0].mxu0
        %v2245 = vpop.f32.mrb[0].mxu0
        %2246 = vdwg.mxu0
        %v2248 = vsel %vm1589, %v2058, 0
        %v2251 = vsel %vm2065, %v1585, 0
        %2253 = vmatprep.subr.bf16.mxu0 0
        %2254 = vmatpush1.bf16.msra.mxu0 %v2251
        %2255 = vmatprep.subr.bf16.mxu0 0
        %2256 = vmatpush1.bf16.msra.mxu0 0
        %2257 = vmatprep.subr.bf16.mxu0 0
        %2258 = vmatpush1.bf16.msra.mxu0 0
        %2259 = vmatprep.subr.bf16.mxu0 0
        %2260 = vmatpush1.bf16.msra.mxu0 0
        %2261 = vmatprep.subr.bf16.mxu0 0
        %2262 = vmatpush1.bf16.msra.mxu0 0
        %2263 = vmatprep.subr.bf16.mxu0 0
        %2264 = vmatpush1.bf16.msra.mxu0 0
        %2265 = vmatprep.subr.bf16.mxu0 0
        %2266 = vmatpush1.bf16.msra.mxu0 0
        %2267 = vmatprep.subr.bf16.mxu0 0
        %2268 = vmatpush1.bf16.msra.mxu0 0
        %2269 = vmatprep.subr.bf16.mxu0 0
        %2270 = vmatpush1.bf16.msra.mxu0 0
        %2271 = vmatprep.subr.bf16.mxu0 0
        %2272 = vmatpush1.bf16.msra.mxu0 0
        %2273 = vmatprep.subr.bf16.mxu0 0
        %2274 = vmatpush1.bf16.msra.mxu0 0
        %2275 = vmatprep.subr.bf16.mxu0 0
        %2276 = vmatpush1.bf16.msra.mxu0 0
        %2277 = vmatprep.subr.bf16.mxu0 0
        %2278 = vmatpush1.bf16.msra.mxu0 0
        %2279 = vmatprep.subr.bf16.mxu0 0
        %2280 = vmatpush1.bf16.msra.mxu0 0
        %2281 = vmatprep.subr.bf16.mxu0 0
        %2282 = vmatpush1.bf16.msra.mxu0 0
        %2283 = vmatprep.subr.bf16.mxu0 0
        %2284 = vmatpush1.bf16.msra.mxu0 0
        %2285 = vmatprep.mubr.bf16.mxu0 0
        %2286 = vmatmul.mubr.bf16.gmra.mrb[0].mxu0 %v2248
        %v2287 = vpop.f32.mrb[0].mxu0
        %v2288 = vadd.f32 0.0, %v2287
        %v2289 = vpop.f32.mrb[0].mxu0
        %v2290 = vpop.f32.mrb[0].mxu0
        %v2291 = vpop.f32.mrb[0].mxu0
        %2292 = vdwg.mxu0
        %v2294 = vsel %vm1589, %v2059, 0
        %v2297 = vsel %vm2065, %v1586, 0
        %2299 = vmatprep.subr.bf16.mxu0 0
        %2300 = vmatpush1.bf16.msra.mxu0 %v2297
        %2301 = vmatprep.subr.bf16.mxu0 0
        %2302 = vmatpush1.bf16.msra.mxu0 0
        %2303 = vmatprep.subr.bf16.mxu0 0
        %2304 = vmatpush1.bf16.msra.mxu0 0
        %2305 = vmatprep.subr.bf16.mxu0 0
        %2306 = vmatpush1.bf16.msra.mxu0 0
        %2307 = vmatprep.subr.bf16.mxu0 0
        %2308 = vmatpush1.bf16.msra.mxu0 0
        %2309 = vmatprep.subr.bf16.mxu0 0
        %2310 = vmatpush1.bf16.msra.mxu0 0
        %2311 = vmatprep.subr.bf16.mxu0 0
        %2312 = vmatpush1.bf16.msra.mxu0 0
        %2313 = vmatprep.subr.bf16.mxu0 0
        %2314 = vmatpush1.bf16.msra.mxu0 0
        %2315 = vmatprep.subr.bf16.mxu0 0
        %2316 = vmatpush1.bf16.msra.mxu0 0
        %2317 = vmatprep.subr.bf16.mxu0 0
        %2318 = vmatpush1.bf16.msra.mxu0 0
        %2319 = vmatprep.subr.bf16.mxu0 0
        %2320 = vmatpush1.bf16.msra.mxu0 0
        %2321 = vmatprep.subr.bf16.mxu0 0
        %2322 = vmatpush1.bf16.msra.mxu0 0
        %2323 = vmatprep.subr.bf16.mxu0 0
        %2324 = vmatpush1.bf16.msra.mxu0 0
        %2325 = vmatprep.subr.bf16.mxu0 0
        %2326 = vmatpush1.bf16.msra.mxu0 0
        %2327 = vmatprep.subr.bf16.mxu0 0
        %2328 = vmatpush1.bf16.msra.mxu0 0
        %2329 = vmatprep.subr.bf16.mxu0 0
        %2330 = vmatpush1.bf16.msra.mxu0 0
        %2331 = vmatprep.mubr.bf16.mxu0 0
        %2332 = vmatmul.mubr.bf16.gmra.mrb[0].mxu0 %v2294
        %v2333 = vpop.f32.mrb[0].mxu0
        %v2334 = vadd.f32 0.0, %v2333
        %v2335 = vpop.f32.mrb[0].mxu0
        %v2336 = vpop.f32.mrb[0].mxu0
        %v2337 = vpop.f32.mrb[0].mxu0
        %2338 = vdwg.mxu0
        %v2340 = vsel %vm1589, %v2060, 0
        %v2343 = vsel %vm2065, %v1587, 0
        %2345 = vmatprep.subr.bf16.mxu0 0
        %2346 = vmatpush1.bf16.msra.mxu0 %v2343
        %2347 = vmatprep.subr.bf16.mxu0 0
        %2348 = vmatpush1.bf16.msra.mxu0 0
        %2349 = vmatprep.subr.bf16.mxu0 0
        %2350 = vmatpush1.bf16.msra.mxu0 0
        %2351 = vmatprep.subr.bf16.mxu0 0
        %2352 = vmatpush1.bf16.msra.mxu0 0
        %2353 = vmatprep.subr.bf16.mxu0 0
        %2354 = vmatpush1.bf16.msra.mxu0 0
        %2355 = vmatprep.subr.bf16.mxu0 0
        %2356 = vmatpush1.bf16.msra.mxu0 0
        %2357 = vmatprep.subr.bf16.mxu0 0
        %2358 = vmatpush1.bf16.msra.mxu0 0
        %2359 = vmatprep.subr.bf16.mxu0 0
        %2360 = vmatpush1.bf16.msra.mxu0 0
        %2361 = vmatprep.subr.bf16.mxu0 0
        %2362 = vmatpush1.bf16.msra.mxu0 0
        %2363 = vmatprep.subr.bf16.mxu0 0
        %2364 = vmatpush1.bf16.msra.mxu0 0
        %2365 = vmatprep.subr.bf16.mxu0 0
        %2366 = vmatpush1.bf16.msra.mxu0 0
        %2367 = vmatprep.subr.bf16.mxu0 0
        %2368 = vmatpush1.bf16.msra.mxu0 0
        %2369 = vmatprep.subr.bf16.mxu0 0
        %2370 = vmatpush1.bf16.msra.mxu0 0
        %2371 = vmatprep.subr.bf16.mxu0 0
        %2372 = vmatpush1.bf16.msra.mxu0 0
        %2373 = vmatprep.subr.bf16.mxu0 0
        %2374 = vmatpush1.bf16.msra.mxu0 0
        %2375 = vmatprep.subr.bf16.mxu0 0
        %2376 = vmatpush1.bf16.msra.mxu0 0
        %2377 = vmatprep.mubr.bf16.mxu0 0
        %2378 = vmatmul.mubr.bf16.gmra.mrb[0].mxu0 %v2340
        %v2379 = vpop.f32.mrb[0].mxu0
        %v2380 = vadd.f32 0.0, %v2379
        %v2381 = vpop.f32.mrb[0].mxu0
        %v2382 = vpop.f32.mrb[0].mxu0
        %v2383 = vpop.f32.mrb[0].mxu0
        %2384 = vdwg.mxu0
        %v2386 = vsel %vm1589, %v2061, 0
        %v2389 = vsel %vm2065, %v1588, 0
        %2391 = vmatprep.subr.bf16.mxu0 0
        %2392 = vmatpush1.bf16.msra.mxu0 %v2389
        %2393 = vmatprep.subr.bf16.mxu0 0
        %2394 = vmatpush1.bf16.msra.mxu0 0
        %2395 = vmatprep.subr.bf16.mxu0 0
        %2396 = vmatpush1.bf16.msra.mxu0 0
        %2397 = vmatprep.subr.bf16.mxu0 0
        %2398 = vmatpush1.bf16.msra.mxu0 0
        %2399 = vmatprep.subr.bf16.mxu0 0
        %2400 = vmatpush1.bf16.msra.mxu0 0
        %2401 = vmatprep.subr.bf16.mxu0 0
        %2402 = vmatpush1.bf16.msra.mxu0 0
        %2403 = vmatprep.subr.bf16.mxu0 0
        %2404 = vmatpush1.bf16.msra.mxu0 0
        %2405 = vmatprep.subr.bf16.mxu0 0
        %2406 = vmatpush1.bf16.msra.mxu0 0
        %2407 = vmatprep.subr.bf16.mxu0 0
        %2408 = vmatpush1.bf16.msra.mxu0 0
        %2409 = vmatprep.subr.bf16.mxu0 0
        %2410 = vmatpush1.bf16.msra.mxu0 0
        %2411 = vmatprep.subr.bf16.mxu0 0
        %2412 = vmatpush1.bf16.msra.mxu0 0
        %2413 = vmatprep.subr.bf16.mxu0 0
        %2414 = vmatpush1.bf16.msra.mxu0 0
        %2415 = vmatprep.subr.bf16.mxu0 0
        %2416 = vmatpush1.bf16.msra.mxu0 0
        %2417 = vmatprep.subr.bf16.mxu0 0
        %2418 = vmatpush1.bf16.msra.mxu0 0
        %2419 = vmatprep.subr.bf16.mxu0 0
        %2420 = vmatpush1.bf16.msra.mxu0 0
        %2421 = vmatprep.subr.bf16.mxu0 0
        %2422 = vmatpush1.bf16.msra.mxu0 0
        %2423 = vmatprep.mubr.bf16.mxu0 0
        %2424 = vmatmul.mubr.bf16.gmra.mrb[0].mxu0 %v2386
        %v2425 = vpop.f32.mrb[0].mxu0
        %v2426 = vadd.f32 0.0, %v2425
        %v2427 = vpop.f32.mrb[0].mxu0
        %v2428 = vpop.f32.mrb[0].mxu0
        %v2429 = vpop.f32.mrb[0].mxu0
        %2430 = vdwg.mxu0
        %v2431 = vcombine.low %v2104, %v2196
        %v2432 = vcombine.high %v2104, %v2196
        %v2434 = vunpack.c.l.s4 1983009808
        %v2435 = vunpack.c.0.s8 %v2434
        %v2436 = vlaneseq
        %v2437 = vshrl.u32 %v2436, 7
        %v2438 = vsub.s32 %v2435, %v2437
        %v2439 = vrot.slane %v2431, %v2438
        %v2441 = vunpack.c.l.s4 1983009808
        %v2442 = vunpack.c.0.s8 %v2441
        %v2443 = vlaneseq
        %v2444 = vshrl.u32 %v2443, 7
        %v2445 = vsub.s32 %v2442, %v2444
        %v2446 = vrot.slane %v2432, %v2445
        %v2447 = vcombine.low %v2150, %v2242
        %v2448 = vcombine.high %v2150, %v2242
        %v2450 = vunpack.c.l.s4 1983009808
        %v2451 = vunpack.c.0.s8 %v2450
        %v2452 = vlaneseq
        %v2453 = vshrl.u32 %v2452, 7
        %v2454 = vsub.s32 %v2451, %v2453
        %v2455 = vrot.slane %v2447, %v2454
        %v2457 = vunpack.c.l.s4 1983009808
        %v2458 = vunpack.c.0.s8 %v2457
        %v2459 = vlaneseq
        %v2460 = vshrl.u32 %v2459, 7
        %v2461 = vsub.s32 %v2458, %v2460
        %v2462 = vrot.slane %v2448, %v2461
        %v2463 = vcombine.low %v2288, %v2380
        %v2464 = vcombine.high %v2288, %v2380
        %v2466 = vunpack.c.l.s4 1983009808
        %v2467 = vunpack.c.0.s8 %v2466
        %v2468 = vlaneseq
        %v2469 = vshrl.u32 %v2468, 7
        %v2470 = vsub.s32 %v2467, %v2469
        %v2471 = vrot.slane %v2463, %v2470
        %v2473 = vunpack.c.l.s4 1983009808
        %v2474 = vunpack.c.0.s8 %v2473
        %v2475 = vlaneseq
        %v2476 = vshrl.u32 %v2475, 7
        %v2477 = vsub.s32 %v2474, %v2476
        %v2478 = vrot.slane %v2464, %v2477
        %v2479 = vcombine.low %v2334, %v2426
        %v2480 = vcombine.high %v2334, %v2426
        %v2482 = vunpack.c.l.s4 1983009808
        %v2483 = vunpack.c.0.s8 %v2482
        %v2484 = vlaneseq
        %v2485 = vshrl.u32 %v2484, 7
        %v2486 = vsub.s32 %v2483, %v2485
        %v2487 = vrot.slane %v2479, %v2486
        %v2489 = vunpack.c.l.s4 1983009808
        %v2490 = vunpack.c.0.s8 %v2489
        %v2491 = vlaneseq
        %v2492 = vshrl.u32 %v2491, 7
        %v2493 = vsub.s32 %v2490, %v2492
        %v2494 = vrot.slane %v2480, %v2493
        %v2495 = vcombine.low %v2439, %v2455
        %v2496 = vcombine.high %v2439, %v2455
        %v2498 = vunpack.c.l.s4 1934713408
        %v2499 = vunpack.c.0.s8 %v2498
        %v2500 = vlaneseq
        %v2501 = vshrl.u32 %v2500, 7
        %v2502 = vsub.s32 %v2499, %v2501
        %v2503 = vrot.slane %v2495, %v2502
        %v2505 = vunpack.c.l.s4 1934713408
        %v2506 = vunpack.c.0.s8 %v2505
        %v2507 = vlaneseq
        %v2508 = vshrl.u32 %v2507, 7
        %v2509 = vsub.s32 %v2506, %v2508
        %v2510 = vrot.slane %v2496, %v2509
        %v2511 = vcombine.low %v2446, %v2462
        %v2512 = vcombine.high %v2446, %v2462
        %v2514 = vunpack.c.l.s4 1934713408
        %v2515 = vunpack.c.0.s8 %v2514
        %v2516 = vlaneseq
        %v2517 = vshrl.u32 %v2516, 7
        %v2518 = vsub.s32 %v2515, %v2517
        %v2519 = vrot.slane %v2511, %v2518
        %v2521 = vunpack.c.l.s4 1934713408
        %v2522 = vunpack.c.0.s8 %v2521
        %v2523 = vlaneseq
        %v2524 = vshrl.u32 %v2523, 7
        %v2525 = vsub.s32 %v2522, %v2524
        %v2526 = vrot.slane %v2512, %v2525
        %v2527 = vcombine.low %v2471, %v2487
        %v2528 = vcombine.high %v2471, %v2487
        %v2530 = vunpack.c.l.s4 1934713408
        %v2531 = vunpack.c.0.s8 %v2530
        %v2532 = vlaneseq
        %v2533 = vshrl.u32 %v2532, 7
        %v2534 = vsub.s32 %v2531, %v2533
        %v2535 = vrot.slane %v2527, %v2534
        %v2537 = vunpack.c.l.s4 1934713408
        %v2538 = vunpack.c.0.s8 %v2537
        %v2539 = vlaneseq
        %v2540 = vshrl.u32 %v2539, 7
        %v2541 = vsub.s32 %v2538, %v2540
        %v2542 = vrot.slane %v2528, %v2541
        %v2543 = vcombine.low %v2478, %v2494
        %v2544 = vcombine.high %v2478, %v2494
        %v2546 = vunpack.c.l.s4 1934713408
        %v2547 = vunpack.c.0.s8 %v2546
        %v2548 = vlaneseq
        %v2549 = vshrl.u32 %v2548, 7
        %v2550 = vsub.s32 %v2547, %v2549
        %v2551 = vrot.slane %v2543, %v2550
        %v2553 = vunpack.c.l.s4 1934713408
        %v2554 = vunpack.c.0.s8 %v2553
        %v2555 = vlaneseq
        %v2556 = vshrl.u32 %v2555, 7
        %v2557 = vsub.s32 %v2554, %v2556
        %v2558 = vrot.slane %v2544, %v2557
        %v2559 = vcombine.low %v2503, %v2535
        %v2560 = vcombine.high %v2503, %v2535
        %v2561 = vcombine.low %v2510, %v2542
        %v2562 = vcombine.high %v2510, %v2542
        %v2563 = vcombine.low %v2519, %v2551
        %v2564 = vcombine.high %v2519, %v2551
        %v2565 = vcombine.low %v2526, %v2558
        %v2566 = vcombine.high %v2526, %v2558
        %v2567 = vcombine.low %v2559, %v2561
        %v2568 = vcombine.high %v2559, %v2561
        %v2570 = vunpack.c.l.s4 1983009808
        %v2571 = vunpack.c.0.s8 %v2570
        %v2572 = vlaneseq
        %v2573 = vshrl.u32 %v2572, 7
        %v2574 = vsub.s32 %v2571, %v2573
        %v2575 = vrot.slane %v2567, %v2574
        %v2577 = vunpack.c.l.s4 1983009808
        %v2578 = vunpack.c.0.s8 %v2577
        %v2579 = vlaneseq
        %v2580 = vshrl.u32 %v2579, 7
        %v2581 = vsub.s32 %v2578, %v2580
        %v2582 = vrot.slane %v2568, %v2581
        %v2583 = vcombine.low %v2560, %v2562
        %v2584 = vcombine.high %v2560, %v2562
        %v2586 = vunpack.c.l.s4 1983009808
        %v2587 = vunpack.c.0.s8 %v2586
        %v2588 = vlaneseq
        %v2589 = vshrl.u32 %v2588, 7
        %v2590 = vsub.s32 %v2587, %v2589
        %v2591 = vrot.slane %v2583, %v2590
        %v2593 = vunpack.c.l.s4 1983009808
        %v2594 = vunpack.c.0.s8 %v2593
        %v2595 = vlaneseq
        %v2596 = vshrl.u32 %v2595, 7
        %v2597 = vsub.s32 %v2594, %v2596
        %v2598 = vrot.slane %v2584, %v2597
        %v2599 = vcombine.low %v2563, %v2565
        %v2600 = vcombine.high %v2563, %v2565
        %v2602 = vunpack.c.l.s4 1983009808
        %v2603 = vunpack.c.0.s8 %v2602
        %v2604 = vlaneseq
        %v2605 = vshrl.u32 %v2604, 7
        %v2606 = vsub.s32 %v2603, %v2605
        %v2607 = vrot.slane %v2599, %v2606
        %v2609 = vunpack.c.l.s4 1983009808
        %v2610 = vunpack.c.0.s8 %v2609
        %v2611 = vlaneseq
        %v2612 = vshrl.u32 %v2611, 7
        %v2613 = vsub.s32 %v2610, %v2612
        %v2614 = vrot.slane %v2600, %v2613
        %v2615 = vcombine.low %v2564, %v2566
        %v2616 = vcombine.high %v2564, %v2566
        %v2618 = vunpack.c.l.s4 1983009808
        %v2619 = vunpack.c.0.s8 %v2618
        %v2620 = vlaneseq
        %v2621 = vshrl.u32 %v2620, 7
        %v2622 = vsub.s32 %v2619, %v2621
        %v2623 = vrot.slane %v2615, %v2622
        %v2625 = vunpack.c.l.s4 1983009808
        %v2626 = vunpack.c.0.s8 %v2625
        %v2627 = vlaneseq
        %v2628 = vshrl.u32 %v2627, 7
        %v2629 = vsub.s32 %v2626, %v2628
        %v2630 = vrot.slane %v2616, %v2629
        %v2631 = vcombine.low %v2575, %v2591
        %v2632 = vcombine.high %v2575, %v2591
        %v2634 = vunpack.c.l.s4 1934713408
        %v2635 = vunpack.c.0.s8 %v2634
        %v2636 = vlaneseq
        %v2637 = vshrl.u32 %v2636, 7
        %v2638 = vsub.s32 %v2635, %v2637
        %v2639 = vrot.slane %v2631, %v2638
        %v2641 = vunpack.c.l.s4 1934713408
        %v2642 = vunpack.c.0.s8 %v2641
        %v2643 = vlaneseq
        %v2644 = vshrl.u32 %v2643, 7
        %v2645 = vsub.s32 %v2642, %v2644
        %v2646 = vrot.slane %v2632, %v2645
        %v2647 = vcombine.low %v2582, %v2598
        %v2648 = vcombine.high %v2582, %v2598
        %v2650 = vunpack.c.l.s4 1934713408
        %v2651 = vunpack.c.0.s8 %v2650
        %v2652 = vlaneseq
        %v2653 = vshrl.u32 %v2652, 7
        %v2654 = vsub.s32 %v2651, %v2653
        %v2655 = vrot.slane %v2647, %v2654
        %v2657 = vunpack.c.l.s4 1934713408
        %v2658 = vunpack.c.0.s8 %v2657
        %v2659 = vlaneseq
        %v2660 = vshrl.u32 %v2659, 7
        %v2661 = vsub.s32 %v2658, %v2660
        %v2662 = vrot.slane %v2648, %v2661
        %v2663 = vcombine.low %v2607, %v2623
        %v2664 = vcombine.high %v2607, %v2623
        %v2666 = vunpack.c.l.s4 1934713408
        %v2667 = vunpack.c.0.s8 %v2666
        %v2668 = vlaneseq
        %v2669 = vshrl.u32 %v2668, 7
        %v2670 = vsub.s32 %v2667, %v2669
        %v2671 = vrot.slane %v2663, %v2670
        %v2673 = vunpack.c.l.s4 1934713408
        %v2674 = vunpack.c.0.s8 %v2673
        %v2675 = vlaneseq
        %v2676 = vshrl.u32 %v2675, 7
        %v2677 = vsub.s32 %v2674, %v2676
        %v2678 = vrot.slane %v2664, %v2677
        %v2679 = vcombine.low %v2614, %v2630
        %v2680 = vcombine.high %v2614, %v2630
        %v2682 = vunpack.c.l.s4 1934713408
        %v2683 = vunpack.c.0.s8 %v2682
        %v2684 = vlaneseq
        %v2685 = vshrl.u32 %v2684, 7
        %v2686 = vsub.s32 %v2683, %v2685
        %v2687 = vrot.slane %v2679, %v2686
        %v2689 = vunpack.c.l.s4 1934713408
        %v2690 = vunpack.c.0.s8 %v2689
        %v2691 = vlaneseq
        %v2692 = vshrl.u32 %v2691, 7
        %v2693 = vsub.s32 %v2690, %v2692
        %v2694 = vrot.slane %v2680, %v2693
        %v2695 = vcombine.low %v2639, %v2671
        %v2696 = vcombine.high %v2639, %v2671
        %v2697 = vcombine.low %v2646, %v2678
        %v2698 = vcombine.high %v2646, %v2678
        %v2699 = vcombine.low %v2655, %v2687
        %v2700 = vcombine.high %v2655, %v2687
        %v2701 = vcombine.low %v2662, %v2694
        %v2702 = vcombine.high %v2662, %v2694
        %2704 = vrot.lane.b32.xlu0 %v2696, 8
        %v2705 = vpop.permute.xlu0 %2704
        %2708 = vrot.lane.b32.xlu0 %v2697, 16
        %v2709 = vpop.permute.xlu0 %2708
        %2712 = vrot.lane.b32.xlu0 %v2698, 24
        %v2713 = vpop.permute.xlu0 %2712
        %2716 = vrot.lane.b32.xlu0 %v2699, 32
        %v2717 = vpop.permute.xlu0 %2716
        %2720 = vrot.lane.b32.xlu0 %v2700, 40
        %v2721 = vpop.permute.xlu0 %2720
        %2724 = vrot.lane.b32.xlu0 %v2701, 48
        %v2725 = vpop.permute.xlu0 %2724
        %2728 = vrot.lane.b32.xlu0 %v2702, 56
        %v2729 = vpop.permute.xlu0 %2728
        %v2731 = vsel %vm1589, %v2695, %v2705
        %vm2732 = vcmask 130048
        %v2733 = vsel %vm2732, %v2731, %v2709
        %vm2734 = vcmask 195584
        %v2735 = vsel %vm2734, %v2733, %v2713
        %vm2736 = vcmask 261120
        %v2737 = vsel %vm2736, %v2735, %v2717
        %vm2738 = vcmask 326656
        %v2739 = vsel %vm2738, %v2737, %v2721
        %vm2740 = vcmask 392192
        %v2741 = vsel %vm2740, %v2739, %v2725
        %vm2742 = vcmask 457728
        %v2743 = vsel %vm2742, %v2741, %v2729
        %v2744 = vpack.c.bf16 %v2743, %v2743
        %v2745 = vld [vmem:[%s6] sm:$0xf]
        %v2746 = vld [vmem:[%s6 + $0x4] sm:$0xf]
        %v2747 = vld [vmem:[%s6 + $0x8] sm:$0xf]
        %v2748 = vld [vmem:[%s6 + $0xc] sm:$0xf]
        %v2749 = vld [vmem:[%s6 + $0x10] sm:$0xf]
        %v2750 = vld [vmem:[%s6 + $0x14] sm:$0xf]
        %v2751 = vld [vmem:[%s6 + $0x18] sm:$0xf]
        %v2752 = vld [vmem:[%s6 + $0x1c] sm:$0xf]
        %v2753 = vlaneseq
        %v2754 = vshrl.u32 %v2753, 7
        %v2755 = vsub.s32 4, %v2754
        %v2756 = vrot.slane %v417, %v2755
        %v2765 = vunpack.c.l.b16 %v2745
        %v2766 = vunpack.c.l.b16 %v2746
        %v2767 = vunpack.c.l.b16 %v2747
        %v2768 = vunpack.c.l.b16 %v2748
        %v2769 = vunpack.c.l.b16 %v2749
        %v2770 = vunpack.c.l.b16 %v2750
        %v2771 = vunpack.c.l.b16 %v2751
        %v2772 = vunpack.c.l.b16 %v2752
        %v2773 = vpack.c.b16 %v2766, %v2765
        %v2774 = vpack.c.b16 %v2768, %v2767
        %v2775 = vpack.c.b16 %v2770, %v2769
        %v2776 = vpack.c.b16 %v2772, %v2771
        %v2782 = vsel %vm419, %v2744, 0
        %2784 = vmatprep.subr.bf16.mxu0 0
        %2785 = vmatpush1.bf16.msra.mxu0 %v2773
        %2786 = vmatprep.subr.bf16.mxu0 0
        %2787 = vmatpush1.bf16.msra.mxu0 %v2774
        %2788 = vmatprep.subr.bf16.mxu0 0
        %2789 = vmatpush1.bf16.msra.mxu0 %v2775
        %2790 = vmatprep.subr.bf16.mxu0 0
        %2791 = vmatpush1.bf16.msra.mxu0 %v2776
        %2792 = vmatprep.subr.bf16.mxu0 0
        %2793 = vmatpush1.bf16.msra.mxu0 0
        %2794 = vmatprep.subr.bf16.mxu0 0
        %2795 = vmatpush1.bf16.msra.mxu0 0
        %2796 = vmatprep.subr.bf16.mxu0 0
        %2797 = vmatpush1.bf16.msra.mxu0 0
        %2798 = vmatprep.subr.bf16.mxu0 0
        %2799 = vmatpush1.bf16.msra.mxu0 0
        %2800 = vmatprep.subr.bf16.mxu0 0
        %2801 = vmatpush1.bf16.msra.mxu0 0
        %2802 = vmatprep.subr.bf16.mxu0 0
        %2803 = vmatpush1.bf16.msra.mxu0 0
        %2804 = vmatprep.subr.bf16.mxu0 0
        %2805 = vmatpush1.bf16.msra.mxu0 0
        %2806 = vmatprep.subr.bf16.mxu0 0
        %2807 = vmatpush1.bf16.msra.mxu0 0
        %2808 = vmatprep.subr.bf16.mxu0 0
        %2809 = vmatpush1.bf16.msra.mxu0 0
        %2810 = vmatprep.subr.bf16.mxu0 0
        %2811 = vmatpush1.bf16.msra.mxu0 0
        %2812 = vmatprep.subr.bf16.mxu0 0
        %2813 = vmatpush1.bf16.msra.mxu0 0
        %2814 = vmatprep.subr.bf16.mxu0 0
        %2815 = vmatpush1.bf16.msra.mxu0 0
        %2816 = vmatprep.mubr.bf16.mxu0 0
        %2817 = vmatmul.mubr.bf16.gmra.mrb[0].mxu0 %v2782
        %v2818 = vpop.f32.mrb[0].mxu0
        %v2819 = vadd.f32 %v2756, %v2818
        %v2820 = vpop.f32.mrb[0].mxu0
        %v2821 = vpop.f32.mrb[0].mxu0
        %v2822 = vpop.f32.mrb[0].mxu0
        %2823 = vdwg.mxu0
        %v2824 = vadd.f32 %v2819, %v415
        %v2825 = vsel %vm419, %v2824, 0.0
        %2826 = vadd.xlane.f32.xlu0 %v2825
        %v2827 = vpop.xlane.xlu0 %2826
        %v2828 = vmul.f32 %v2827, %v423
        %v2829 = vsub.f32 %v2824, %v2828
        %v2830 = vmul.f32 %v2829, %v2829
        %v2831 = vsel %vm419, %v2830, 0.0
        %2832 = vadd.xlane.f32.xlu0 %v2831
        %v2833 = vpop.xlane.xlu0 %2832
        %v2834 = vmul.f32 %v2833, %v423
        %v2835 = vadd.f32 %v2834, 1e-05
        %v2836 = vrsqrt.pop %v2835
        %v2837 = vmul.f32 %v2829, %v2836
        %v2838 = vlaneseq
        %v2839 = vshrl.u32 %v2838, 7
        %v2840 = vsub.s32 2, %v2839
        %v2841 = vrot.slane %v417, %v2840
        %v2842 = vmul.f32 %v2837, %v2841
        %v2843 = vlaneseq
        %v2844 = vshrl.u32 %v2843, 7
        %v2845 = vsub.s32 3, %v2844
        %v2846 = vrot.slane %v417, %v2845
        %v2847 = vadd.f32 %v2842, %v2846
        %v2848 = vpack.c.bf16 %v2847, %v2847
        %v2849 = vld [vmem:[%s7] sm:$0xff]
        %v2850 = vld [vmem:[%s7 + $0x8] sm:$0xff]
        %v2851 = vld [vmem:[%s7 + $0x10] sm:$0xff]
        %v2852 = vld [vmem:[%s7 + $0x18] sm:$0xff]
        %v2853 = vld [vmem:[%s7 + $0x20] sm:$0xff]
        %v2854 = vld [vmem:[%s7 + $0x28] sm:$0xff]
        %v2855 = vld [vmem:[%s7 + $0x30] sm:$0xff]
        %v2856 = vld [vmem:[%s7 + $0x38] sm:$0xff]
        %v2857 = vlaneseq
        %v2858 = vshrl.u32 %v2857, 7
        %v2859 = vsub.s32 6, %v2858
        %v2860 = vrot.slane %v417, %v2859
        %v2861 = vlaneseq
        %v2862 = vshrl.u32 %v2861, 7
        %v2863 = vsub.s32 6, %v2862
        %v2864 = vrot.slane %v418, %v2863
        %v2873 = vunpack.c.l.b16 %v2849
        %v2874 = vunpack.c.h.b16 %v2849
        %v2875 = vunpack.c.l.b16 %v2850
        %v2876 = vunpack.c.h.b16 %v2850
        %v2877 = vunpack.c.l.b16 %v2851
        %v2878 = vunpack.c.h.b16 %v2851
        %v2879 = vunpack.c.l.b16 %v2852
        %v2880 = vunpack.c.h.b16 %v2852
        %v2881 = vunpack.c.l.b16 %v2853
        %v2882 = vunpack.c.h.b16 %v2853
        %v2883 = vunpack.c.l.b16 %v2854
        %v2884 = vunpack.c.h.b16 %v2854
        %v2885 = vunpack.c.l.b16 %v2855
        %v2886 = vunpack.c.h.b16 %v2855
        %v2887 = vunpack.c.l.b16 %v2856
        %v2888 = vunpack.c.h.b16 %v2856
        %v2889 = vpack.c.b16 %v2875, %v2873
        %v2890 = vpack.c.b16 %v2876, %v2874
        %v2891 = vpack.c.b16 %v2879, %v2877
        %v2892 = vpack.c.b16 %v2880, %v2878
        %v2893 = vpack.c.b16 %v2883, %v2881
        %v2894 = vpack.c.b16 %v2884, %v2882
        %v2895 = vpack.c.b16 %v2887, %v2885
        %v2896 = vpack.c.b16 %v2888, %v2886
        %v2906 = vsel %vm419, %v2848, 0
        %2908 = vmatprep.subr.bf16.mxu0 %v2890
        %2909 = vmatpush1.bf16.msra.mxu0 %v2889
        %2910 = vmatprep.subr.bf16.mxu0 %v2892
        %2911 = vmatpush1.bf16.msra.mxu0 %v2891
        %2912 = vmatprep.subr.bf16.mxu0 %v2894
        %2913 = vmatpush1.bf16.msra.mxu0 %v2893
        %2914 = vmatprep.subr.bf16.mxu0 %v2896
        %2915 = vmatpush1.bf16.msra.mxu0 %v2895
        %2916 = vmatprep.subr.bf16.mxu0 0
        %2917 = vmatpush1.bf16.msra.mxu0 0
        %2918 = vmatprep.subr.bf16.mxu0 0
        %2919 = vmatpush1.bf16.msra.mxu0 0
        %2920 = vmatprep.subr.bf16.mxu0 0
        %2921 = vmatpush1.bf16.msra.mxu0 0
        %2922 = vmatprep.subr.bf16.mxu0 0
        %2923 = vmatpush1.bf16.msra.mxu0 0
        %2924 = vmatprep.subr.bf16.mxu0 0
        %2925 = vmatpush1.bf16.msra.mxu0 0
        %2926 = vmatprep.subr.bf16.mxu0 0
        %2927 = vmatpush1.bf16.msra.mxu0 0
        %2928 = vmatprep.subr.bf16.mxu0 0
        %2929 = vmatpush1.bf16.msra.mxu0 0
        %2930 = vmatprep.subr.bf16.mxu0 0
        %2931 = vmatpush1.bf16.msra.mxu0 0
        %2932 = vmatprep.subr.bf16.mxu0 0
        %2933 = vmatpush1.bf16.msra.mxu0 0
        %2934 = vmatprep.subr.bf16.mxu0 0
        %2935 = vmatpush1.bf16.msra.mxu0 0
        %2936 = vmatprep.subr.bf16.mxu0 0
        %2937 = vmatpush1.bf16.msra.mxu0 0
        %2938 = vmatprep.subr.bf16.mxu0 0
        %2939 = vmatpush1.bf16.msra.mxu0 0
        %2940 = vmatprep.mubr.bf16.mxu0 0
        %2941 = vmatmul.mubr.bf16.gmra.mrb[0].mxu0 %v2906
        %v2942 = vpop.f32.mrb[0].mxu0
        %v2943 = vadd.f32 %v2860, %v2942
        %v2944 = vpop.f32.mrb[0].mxu0
        %v2945 = vadd.f32 %v2864, %v2944
        %v2946 = vpop.f32.mrb[0].mxu0
        %v2947 = vpop.f32.mrb[0].mxu0
        %2948 = vdwg.mxu0
        %v2949 = vmul.f32 %v2943, 0.5
        %v2950 = vmul.f32 %v2945, 0.5
        %v2951 = vmul.f32 %v2943, 0.70710677
        %v2952 = vmul.f32 %v2945, 0.70710677
        %v2953 = verf.f32.pop %v2951
        %v2954 = verf.f32.pop %v2952
        %v2955 = vadd.f32 %v2953, 1.0
        %v2956 = vadd.f32 %v2954, 1.0
        %v2957 = vmul.f32 %v2949, %v2955
        %v2958 = vmul.f32 %v2950, %v2956
        %v2959 = vpack.c.bf16 %v2957, %v2957
        %v2960 = vpack.c.bf16 %v2958, %v2958
        %v2961 = vld [vmem:[%s8] sm:$0xf]
        %v2962 = vld [vmem:[%s8 + $0x4] sm:$0xf]
        %v2963 = vld [vmem:[%s8 + $0x8] sm:$0xf]
        %v2964 = vld [vmem:[%s8 + $0xc] sm:$0xf]
        %v2965 = vld [vmem:[%s8 + $0x10] sm:$0xf]
        %v2966 = vld [vmem:[%s8 + $0x14] sm:$0xf]
        %v2967 = vld [vmem:[%s8 + $0x18] sm:$0xf]
        %v2968 = vld [vmem:[%s8 + $0x1c] sm:$0xf]
        %v2969 = vld [vmem:[%s8 + $0x20] sm:$0xf]
        %v2970 = vld [vmem:[%s8 + $0x24] sm:$0xf]
        %v2971 = vld [vmem:[%s8 + $0x28] sm:$0xf]
        %v2972 = vld [vmem:[%s8 + $0x2c] sm:$0xf]
        %v2973 = vld [vmem:[%s8 + $0x30] sm:$0xf]
        %v2974 = vld [vmem:[%s8 + $0x34] sm:$0xf]
        %v2975 = vld [vmem:[%s8 + $0x38] sm:$0xf]
        %v2976 = vld [vmem:[%s8 + $0x3c] sm:$0xf]
        %v2977 = vld [vmem:[%s8 + $0x40] sm:$0xf]
        %v2978 = vld [vmem:[%s8 + $0x44] sm:$0xf]
        %v2979 = vld [vmem:[%s8 + $0x48] sm:$0xf]
        %v2980 = vld [vmem:[%s8 + $0x4c] sm:$0xf]
        %v2981 = vld [vmem:[%s8 + $0x50] sm:$0xf]
        %v2982 = vld [vmem:[%s8 + $0x54] sm:$0xf]
        %v2983 = vld [vmem:[%s8 + $0x58] sm:$0xf]
        %v2984 = vld [vmem:[%s8 + $0x5c] sm:$0xf]
        %v2985 = vld [vmem:[%s8 + $0x60] sm:$0xf]
        %v2986 = vld [vmem:[%s8 + $0x64] sm:$0xf]
        %v2987 = vld [vmem:[%s8 + $0x68] sm:$0xf]
        %v2988 = vld [vmem:[%s8 + $0x6c] sm:$0xf]
        %v2989 = vld [vmem:[%s8 + $0x70] sm:$0xf]
        %v2990 = vld [vmem:[%s8 + $0x74] sm:$0xf]
        %v2991 = vld [vmem:[%s8 + $0x78] sm:$0xf]
        %v2992 = vld [vmem:[%s8 + $0x7c] sm:$0xf]
        %v2993 = vlaneseq
        %v2994 = vshrl.u32 %v2993, 7
        %v2995 = vsub.s32 5, %v2994
        %v2996 = vrot.slane %v417, %v2995
        %v3029 = vunpack.c.l.b16 %v2961
        %v3030 = vunpack.c.l.b16 %v2962
        %v3031 = vunpack.c.l.b16 %v2963
        %v3032 = vunpack.c.l.b16 %v2964
        %v3033 = vunpack.c.l.b16 %v2965
        %v3034 = vunpack.c.l.b16 %v2966
        %v3035 = vunpack.c.l.b16 %v2967
        %v3036 = vunpack.c.l.b16 %v2968
        %v3037 = vunpack.c.l.b16 %v2969
        %v3038 = vunpack.c.l.b16 %v2970
        %v3039 = vunpack.c.l.b16 %v2971
        %v3040 = vunpack.c.l.b16 %v2972
        %v3041 = vunpack.c.l.b16 %v2973
        %v3042 = vunpack.c.l.b16 %v2974
        %v3043 = vunpack.c.l.b16 %v2975
        %v3044 = vunpack.c.l.b16 %v2976
        %v3045 = vunpack.c.l.b16 %v2977
        %v3046 = vunpack.c.l.b16 %v2978
        %v3047 = vunpack.c.l.b16 %v2979
        %v3048 = vunpack.c.l.b16 %v2980
        %v3049 = vunpack.c.l.b16 %v2981
        %v3050 = vunpack.c.l.b16 %v2982
        %v3051 = vunpack.c.l.b16 %v2983
        %v3052 = vunpack.c.l.b16 %v2984
        %v3053 = vunpack.c.l.b16 %v2985
        %v3054 = vunpack.c.l.b16 %v2986
        %v3055 = vunpack.c.l.b16 %v2987
        %v3056 = vunpack.c.l.b16 %v2988
        %v3057 = vunpack.c.l.b16 %v2989
        %v3058 = vunpack.c.l.b16 %v2990
        %v3059 = vunpack.c.l.b16 %v2991
        %v3060 = vunpack.c.l.b16 %v2992
        %v3061 = vpack.c.b16 %v3030, %v3029
        %v3062 = vpack.c.b16 %v3032, %v3031
        %v3063 = vpack.c.b16 %v3034, %v3033
        %v3064 = vpack.c.b16 %v3036, %v3035
        %v3065 = vpack.c.b16 %v3038, %v3037
        %v3066 = vpack.c.b16 %v3040, %v3039
        %v3067 = vpack.c.b16 %v3042, %v3041
        %v3068 = vpack.c.b16 %v3044, %v3043
        %v3069 = vpack.c.b16 %v3046, %v3045
        %v3070 = vpack.c.b16 %v3048, %v3047
        %v3071 = vpack.c.b16 %v3050, %v3049
        %v3072 = vpack.c.b16 %v3052, %v3051
        %v3073 = vpack.c.b16 %v3054, %v3053
        %v3074 = vpack.c.b16 %v3056, %v3055
        %v3075 = vpack.c.b16 %v3058, %v3057
        %v3076 = vpack.c.b16 %v3060, %v3059
        %3093 = vmatprep.subr.bf16.mxu0 0
        %3094 = vmatpush1.bf16.msra.mxu0 %v3061
        %3095 = vmatprep.subr.bf16.mxu0 0
        %3096 = vmatpush1.bf16.msra.mxu0 %v3062
        %3097 = vmatprep.subr.bf16.mxu0 0
        %3098 = vmatpush1.bf16.msra.mxu0 %v3063
        %3099 = vmatprep.subr.bf16.mxu0 0
        %3100 = vmatpush1.bf16.msra.mxu0 %v3064
        %3101 = vmatprep.subr.bf16.mxu0 0
        %3102 = vmatpush1.bf16.msra.mxu0 %v3065
        %3103 = vmatprep.subr.bf16.mxu0 0
        %3104 = vmatpush1.bf16.msra.mxu0 %v3066
        %3105 = vmatprep.subr.bf16.mxu0 0
        %3106 = vmatpush1.bf16.msra.mxu0 %v3067
        %3107 = vmatprep.subr.bf16.mxu0 0
        %3108 = vmatpush1.bf16.msra.mxu0 %v3068
        %3109 = vmatprep.subr.bf16.mxu0 0
        %3110 = vmatpush1.bf16.msra.mxu0 %v3069
        %3111 = vmatprep.subr.bf16.mxu0 0
        %3112 = vmatpush1.bf16.msra.mxu0 %v3070
        %3113 = vmatprep.subr.bf16.mxu0 0
        %3114 = vmatpush1.bf16.msra.mxu0 %v3071
        %3115 = vmatprep.subr.bf16.mxu0 0
        %3116 = vmatpush1.bf16.msra.mxu0 %v3072
        %3117 = vmatprep.subr.bf16.mxu0 0
        %3118 = vmatpush1.bf16.msra.mxu0 %v3073
        %3119 = vmatprep.subr.bf16.mxu0 0
        %3120 = vmatpush1.bf16.msra.mxu0 %v3074
        %3121 = vmatprep.subr.bf16.mxu0 0
        %3122 = vmatpush1.bf16.msra.mxu0 %v3075
        %3123 = vmatprep.subr.bf16.mxu0 0
        %3124 = vmatpush1.bf16.msra.mxu0 %v3076
        %3125 = vmatprep.mubr.bf16.mxu0 %v2960
        %3126 = vmatmul.mubr.bf16.gmra.mrb[0].mxu0 %v2959
        %v3127 = vpop.f32.mrb[0].mxu0
        %v3128 = vadd.f32 %v2996, %v3127
        %v3129 = vpop.f32.mrb[0].mxu0
        %v3130 = vpop.f32.mrb[0].mxu0
        %v3131 = vpop.f32.mrb[0].mxu0
        %3132 = vdwg.mxu0
        %v3133 = vadd.f32 %v2824, %v3128
        %3134 = vst.msk [vmem:[%s413] sm:$0xff] %vm419, %v3133
        %s3135 = sand.u32 %s252, 1
        %s3136 = scalar_lea.sflag [#allocation4], %s3135
        %s3137 = sand.u32 %s252, 1
        %s3138 = smul.addr %s3137, 8
        %s3139 = scalar_lea.vmem [#allocation8], %s3138
        // Predicated region
        $region69: #{tpu_custom_call.1} parent=55 // pred_check
          %p3140 = pneg %p262
        $region70: #{tpu_custom_call.1} parent=55 // pred_check_branch
          %3142 = sbr.rel (%p3140) target = $region72
        $region71: #{tpu_custom_call.1} parent=55 // pred_region
          %s3144 = ssub.s32 128, 128
          %3145 = vsyncadd %s3136, %s3144
          %s3146 = sadd.s32 %s34, %s33
          %s3147 = smul.addr %s3146, 128
          %s3148 = scalar_lea.hbm %s9, %s3147
          %s3150 = sshll.u32 %s3139, 4
          %s3151 = int_to_ptr.vmem [resolvable:$true] %s3150
          %3153 = dma.vmem_to_hbm [thread:$0]  %s3151, 128, %s3148, %s3136
        $region72: #{tpu_custom_call.1} parent=55 // pred_fallthru
          _
      $region56: #{tpu_custom_call.1} parent=5 // pred_fallthru
        _
      %p3154 = scmp.le.s32.totalorder 2, %s24
      // Predicated region
      $region73: #{tpu_custom_call.1} parent=5 // pred_check
        %p3155 = pneg %p3154
      $region74: #{tpu_custom_call.1} parent=5 // pred_check_branch
        %3157 = sbr.rel (%p3155) target = $region76
      $region75: #{tpu_custom_call.1} parent=5 // pred_region
        %s3158 = ssub.s32 %s24, 2
        // Predicated region
        $region77: #{tpu_custom_call.1} parent=75 // pred_check
          %p3159 = pneg %p268
        $region78: #{tpu_custom_call.1} parent=75 // pred_check_branch
          %3161 = sbr.rel (%p3159) target = $region80
        $region79: #{tpu_custom_call.1} parent=75 // pred_region
          %s3162 = sand.u32 %s253, 1
          %s3163 = scalar_lea.sflag [#allocation4], %s3162
          %s3164 = sand.u32 %s253, 1
          %s3165 = smul.addr %s3164, 8
          %s3166 = scalar_lea.vmem [#allocation8], %s3165
          %3167 = dma.done %s3163, 128
        $region80: #{tpu_custom_call.1} parent=75 // pred_fallthru
          _
      $region76: #{tpu_custom_call.1} parent=5 // pred_fallthru
        _
    $region6: #{tpu_custom_call.1} parent=1 // loop_footer
      %s28 = sadd.s32 1, %s24
    $region7: #{tpu_custom_call.1} parent=1 // loop_footer_branch
      %23 = sbr.rel target = $region3
    $region8: #{tpu_custom_call.1} parent=1 // loop_exit
      _
    %3168 = vsyncpa [#allocation3], 1
    %s3169 = scalar_lea.sflag [#allocation3], 1
    %3170 = vsyncpa %s3169, 1
    %3171 = vsyncpa [#allocation6], 1
    %s3172 = scalar_lea.sflag [#allocation6], 1
    %3173 = vsyncpa %s3172, 1
    %3174 = vsyncpa [#allocation4], 1
    %s3175 = scalar_lea.sflag [#allocation4], 1
    %3176 = vsyncpa %s3175, 1

</llo_original>
